<compile_context>
chip_gen: v6e
topology: v6e:2x2x1
jax: 0.10.0
libtpu: 0.0.40
codegen_flags: <defaults>
</compile_context>

<pallas_src>
import functools

import jax
import jax.numpy as jnp
from jax.experimental import pallas as pl
from jax.experimental.pallas import tpu as pltpu


_TIME_CHUNK = 4   # GRU time-chunk (per grid step). Small here to exercise the chunked /
                  # pipelined path at toy T; use 64+ at real sequence lengths.


def _divisor_leq(n, target):
    c = min(n, target)
    while n % c:
        c -= 1
    return c


# ----------------------------------------------------------------------------
# GRU recurrence kernel.
# grid = (D, T // tc): D = directions ("parallel" -> one per TensorCore on v7x),
# time chunks ("arbitrary"). Hidden state persists across chunks in a VMEM scratch.
# Per-timestep input projections (x @ W_ih + b_ih) are precomputed outside and
# streamed in per-gate (gir/giz/gin), so the serial loop only does the h @ W_hh
# gate matmuls + elementwise gate math.
# ----------------------------------------------------------------------------
def gru_kernel(gir_ref, giz_ref, gin_ref, h0_ref, len_ref, whh_ref, bhh_ref,
               out_ref, hT_ref, h_scr, *, tc):
    c = pl.program_id(1)

    @pl.when(c == 0)
    def _():
        h_scr[...] = h0_ref[...]

    lens = len_ref[...]                               # (B, 1) int32 — loaded once per chunk
    t0 = c * tc
    # hoisted per-gate (H, H) weights / (1, H) biases — one load per chunk
    w_r, w_z, w_n = whh_ref[0], whh_ref[1], whh_ref[2]
    b_r, b_z, b_n = bhh_ref[0], bhh_ref[1], bhh_ref[2]

    def step(i, carry):
        h = h_scr[...]                                                     # (B, H)
        gh_r = jnp.dot(h, w_r, preferred_element_type=jnp.float32) + b_r
        gh_z = jnp.dot(h, w_z, preferred_element_type=jnp.float32) + b_z
        gh_n = jnp.dot(h, w_n, preferred_element_type=jnp.float32) + b_n
        r = jax.nn.sigmoid(gir_ref[i] + gh_r)
        z = jax.nn.sigmoid(giz_ref[i] + gh_z)
        n = jnp.tanh(gin_ref[i] + r * gh_n)
        h_new = (1.0 - z) * n + z * h
        valid = (t0 + i) < lens                       # (B, 1) bool — packed-seq mask
        h_scr[...] = jnp.where(valid, h_new, h)       # freeze hidden past length
        out_ref[i] = jnp.where(valid, h_new, 0.0)     # pad_packed pads with zeros
        return carry

    jax.lax.fori_loop(0, tc, step, 0, unroll=min(tc, 4))
    hT_ref[...] = h_scr[...]


def run_gru(gir, giz, gin, h0, len_col, whh, bhh):
    D, T, B, H = gir.shape
    tc = _divisor_leq(T, _TIME_CHUNK)
    sq = pl.Squeezed()
    gi_spec = pl.BlockSpec((sq, tc, B, H), lambda d, c: (d, c, 0, 0))
    out, hT = pl.pallas_call(
        functools.partial(gru_kernel, tc=tc),
        grid=(D, T // tc),
        out_shape=(jax.ShapeDtypeStruct((D, T, B, H), jnp.float32),
                   jax.ShapeDtypeStruct((D, B, H), jnp.float32)),
        in_specs=[
            gi_spec, gi_spec, gi_spec,
            pl.BlockSpec((sq, B, H), lambda d, c: (d, 0, 0)),        # h0
            pl.BlockSpec((B, 1), lambda d, c: (0, 0)),               # lengths
            pl.BlockSpec((sq, 3, H, H), lambda d, c: (d, 0, 0, 0)),  # W_hh (per gate)
            pl.BlockSpec((sq, 3, 1, H), lambda d, c: (d, 0, 0, 0)),  # b_hh (per gate)
        ],
        out_specs=(gi_spec,                                          # outputs, same blocking
                   pl.BlockSpec((sq, B, H), lambda d, c: (d, 0, 0))),
        scratch_shapes=[pltpu.VMEM((B, H), jnp.float32)],
        compiler_params=pltpu.CompilerParams(
            dimension_semantics=("parallel", "arbitrary")),
    )(gir, giz, gin, h0, len_col, whh, bhh)
    return out, hT


# ----------------------------------------------------------------------------
# Attention + linear_out kernel (grid over batch, "parallel").
#   scores -> softmax -> context -> tanh(linear_out)
# Writes its result as a flattened (B*Ty, H) slab so the following vocab projection
# runs with M = B*Ty. linear_out's weight is passed split into its ctx / dec parts:
# cat([ctx, dec]) @ W == ctx @ W_ctx + dec @ W_dec (no in-kernel lane concat).
# The attention map is not materialized (unused by PlainSeq2Seq.forward).
# ----------------------------------------------------------------------------
def attn_context_kernel(dec_ref, ctx_ref, win_ref, woc_ref, wod_ref, bo_ref, h_ref):
    dec = dec_ref[0]                                                          # (Ty, H)
    ctx = ctx_ref[0]                                                          # (Tx, 2H)
    ctx_in = jnp.dot(ctx, win_ref[...], preferred_element_type=jnp.float32)   # (Tx, H)
    # contract last dims directly — no materialized transpose of ctx_in
    scores = jax.lax.dot_general(dec, ctx_in, (((1,), (1,)), ((), ())),
                                 preferred_element_type=jnp.float32)          # (Ty, Tx)
    # NOTE: reference masked_fill is not in-place -> faithfully unmasked.
    s = scores - jnp.max(scores, axis=-1, keepdims=True)
    e = jnp.exp(s)
    a = e / jnp.sum(e, axis=-1, keepdims=True)
    context = jnp.dot(a, ctx, preferred_element_type=jnp.float32)             # (Ty, 2H)
    h_ref[...] = jnp.tanh(
        jnp.dot(context, woc_ref[...], preferred_element_type=jnp.float32)
        + jnp.dot(dec, wod_ref[...], preferred_element_type=jnp.float32)
        + bo_ref[...])                                                        # (Ty, H)


def attention_linear_out(dec_out, enc_out, p):
    B, Ty, H = dec_out.shape
    Tx = enc_out.shape[1]
    return pl.pallas_call(
        attn_context_kernel,
        grid=(B,),
        out_shape=jax.ShapeDtypeStruct((B * Ty, H), jnp.float32),
        in_specs=[
            pl.BlockSpec((1, Ty, H), lambda b: (b, 0, 0)),
            pl.BlockSpec((1, Tx, 2 * H), lambda b: (b, 0, 0)),
            pl.BlockSpec((2 * H, H), lambda b: (0, 0)),
            pl.BlockSpec((2 * H, H), lambda b: (0, 0)),
            pl.BlockSpec((H, H), lambda b: (0, 0)),
            pl.BlockSpec((1, H), lambda b: (0, 0)),
        ],
        out_specs=pl.BlockSpec((Ty, H), lambda b: (b, 0)),
        compiler_params=pltpu.CompilerParams(dimension_semantics=("parallel",)),
    )(dec_out, enc_out, p["attn_win"], p["attn_wout_ctx"], p["attn_wout_dec"],
      p["attn_bout"])


# ----------------------------------------------------------------------------
# Vocab projection + log_softmax on the flattened (B*Ty, H) activations.
# Grid over row tiles ("parallel"). At realistic vocab sizes out_w should also be
# tiled over V (two-pass log-softmax) and cast to bf16; V is tiny here so it stays
# fully resident.
# ----------------------------------------------------------------------------
def vocab_head_kernel(h_ref, w_ref, b_ref, o_ref):
    logits = jnp.dot(h_ref[...], w_ref[...],
                     preferred_element_type=jnp.float32) + b_ref[...]
    m = jnp.max(logits, axis=-1, keepdims=True)
    s = logits - m
    lse = jnp.log(jnp.sum(jnp.exp(s), axis=-1, keepdims=True))
    o_ref[...] = s - lse                                                      # log_softmax


def vocab_logsoftmax(h_flat, out_w, out_b, *, row_tile=128):
    M, H = h_flat.shape
    V = out_w.shape[1]
    tm = M if (M <= row_tile or M % row_tile) else row_tile
    return pl.pallas_call(
        vocab_head_kernel,
        grid=(M // tm,),
        out_shape=jax.ShapeDtypeStruct((M, V), jnp.float32),
        in_specs=[pl.BlockSpec((tm, H), lambda i: (i, 0)),
                  pl.BlockSpec((H, V), lambda i: (0, 0)),
                  pl.BlockSpec((1, V), lambda i: (0, 0))],
        out_specs=pl.BlockSpec((tm, V), lambda i: (i, 0)),
        compiler_params=pltpu.CompilerParams(dimension_semantics=("parallel",)),
    )(h_flat, out_w, out_b)


# ----------------------------------------------------------------------------
# Encoder / Decoder / PlainSeq2Seq wrappers (XLA glue: gathers, hoisted input
# projections, transposes, concat).
# ----------------------------------------------------------------------------
def _gate_proj(emb, wih, bih, H):
    """x @ W_ih + b_ih for all timesteps at once (one big matmul), time-major, per gate."""
    gi = jnp.einsum("bte,eg->btg", emb, wih) + bih            # (B, T, 3H)
    gi = jnp.transpose(gi, (1, 0, 2))                         # (T, B, 3H)
    return gi[..., 0:H], gi[..., H:2 * H], gi[..., 2 * H:3 * H]


def encoder_forward(p, x, x_len):
    B, Tx = x.shape
    H = p["fc_w"].shape[1]
    emb = jnp.take(p["enc_embed"], x, axis=0)                 # (B, Tx, E); dropout = identity

    # backward-direction input: reverse only the valid region of each sequence
    t_idx = jnp.arange(Tx)[None, :]
    rev_idx = jnp.clip(x_len[:, None] - 1 - t_idx, 0, Tx - 1)                # (B, Tx)
    rev_gather = jnp.broadcast_to(rev_idx[:, :, None], emb.shape)
    emb_rev = jnp.take_along_axis(emb, rev_gather, axis=1)

    # hoisted input projections (one (B*Tx, E) x (E, 3H) matmul per direction)
    gf = _gate_proj(emb, p["enc_wih_f"], p["enc_bih_f"], H)
    gb = _gate_proj(emb_rev, p["enc_wih_b"], p["enc_bih_b"], H)
    gir, giz, gin = (jnp.stack([a, b]) for a, b in zip(gf, gb))              # (2, Tx, B, H)

    whh = jnp.stack([p["enc_whh_f"], p["enc_whh_b"]])                        # (2, 3, H, H)
    bhh = jnp.stack([p["enc_bhh_f"], p["enc_bhh_b"]])                        # (2, 3, 1, H)
    h0 = jnp.zeros((2, B, H), jnp.float32)
    len_col = x_len.astype(jnp.int32).reshape(B, 1)

    out_tm, hT = run_gru(gir, giz, gin, h0, len_col, whh, bhh)               # (2,Tx,B,H),(2,B,H)

    out_f = jnp.transpose(out_tm[0], (1, 0, 2))                              # (B, Tx, H)
    out_r = jnp.transpose(out_tm[1], (1, 0, 2))
    valid = (t_idx < x_len[:, None])[:, :, None]
    out_b = jnp.where(
        valid,
        jnp.take_along_axis(out_r, jnp.broadcast_to(rev_idx[:, :, None], out_r.shape), axis=1),
        0.0)
    enc_out = jnp.concatenate([out_f, out_b], axis=-1)                       # (B, Tx, 2H)

    # encoder fc: tiny (B, 2H) x (2H, H) matmul — plain XLA (a kernel launch costs more)
    hcat = jnp.concatenate([hT[0], hT[1]], axis=-1)                          # (B, 2H)
    hid = jnp.tanh(hcat @ p["fc_w"] + p["fc_b"])
    return enc_out, hid[None]                                                # (1, B, H)


def decoder_forward(p, enc_out, y, y_len, hid, src):
    B, Ty = y.shape
    H = hid.shape[-1]
    emb = jnp.take(p["dec_embed"], y, axis=0)                 # (B, Ty, E); dropout = identity
    gir, giz, gin = _gate_proj(emb, p["dec_wih"], p["dec_bih"], H)
    len_col = y_len.astype(jnp.int32).reshape(B, 1)
    out_tm, hT = run_gru(gir[None], giz[None], gin[None], hid, len_col,
                         p["dec_whh"][None], p["dec_bhh"][None])
    dec_out = jnp.transpose(out_tm[0], (1, 0, 2))             # (B, Ty, H)
    h_flat = attention_linear_out(dec_out, enc_out, p)        # (B*Ty, H)
    logp = vocab_logsoftmax(h_flat, p["out_w"], p["out_b"]).reshape(B, Ty, -1)
    # attention map is not materialized (unused by PlainSeq2Seq.forward)
    return logp, hT[0][None], None


def plain_seq2seq_forward(p, x, x_len, y, y_len):
    # TODO(synk): reference PlainSeq2Seq.forward omits ctx/src when calling the decoder
    # (would raise in PyTorch); we pass encoder_out / x as the intended attention context.
    enc_out, hid = encoder_forward(p, x, x_len)
    logp, _, _ = decoder_forward(p, enc_out, y, y_len, hid, x)
    return logp, None


# ----------------------------------------------------------------------------
# Deterministic parameter init (shapes from the module __init__; GRU hidden-side
# weights stored pre-split per gate, gate order r|z|n).
# ----------------------------------------------------------------------------
def init_params(key, en_vocab, cn_vocab, E, H):
    keys = jax.random.split(key, 22)
    it = iter(keys)

    def w(shape):
        return jax.random.normal(next(it), shape, jnp.float32) * 0.1

    return {
        # encoder
        "enc_embed": w((en_vocab, E)),
        "enc_wih_f": w((E, 3 * H)), "enc_bih_f": w((3 * H,)),
        "enc_whh_f": w((3, H, H)), "enc_bhh_f": w((3, 1, H)),
        "enc_wih_b": w((E, 3 * H)), "enc_bih_b": w((3 * H,)),
        "enc_whh_b": w((3, H, H)), "enc_bhh_b": w((3, 1, H)),
        "fc_w": w((2 * H, H)), "fc_b": w((H,)),
        # decoder
        "dec_embed": w((cn_vocab, E)),
        "dec_wih": w((E, 3 * H)), "dec_bih": w((3 * H,)),
        "dec_whh": w((3, H, H)), "dec_bhh": w((3, 1, H)),
        # attention (linear_in no bias; linear_out split into ctx / dec parts)
        "attn_win": w((2 * H, H)),
        "attn_wout_ctx": w((2 * H, H)), "attn_wout_dec": w((H, H)), "attn_bout": w((1, H)),
        # output projection to target vocab
        "out_w": w((H, cn_vocab)), "out_b": w((1, cn_vocab)),
    }


if __name__ == "__main__":
    key = jax.random.PRNGKey(0)
    B, Tx, Ty = 2, 8, 8
    E = H = 32
    en_vocab, cn_vocab = 50, 60

    pkey, xkey, ykey = jax.random.split(key, 3)
    params = init_params(pkey, en_vocab, cn_vocab, E, H)

    x = jax.random.randint(xkey, (B, Tx), 2, en_vocab, dtype=jnp.int32)
    y = jax.random.randint(ykey, (B, Ty), 2, cn_vocab, dtype=jnp.int32)
    x_len = jnp.array([Tx, 5], jnp.int32)
    y_len = jnp.array([Ty, 6], jnp.int32)
    # pad positions past the sequence length with pad id 1 (as the dataloader would)
    x = jnp.where(jnp.arange(Tx)[None, :] < x_len[:, None], x, 1)
    y = jnp.where(jnp.arange(Ty)[None, :] < y_len[:, None], y, 1)

    logp, _ = jax.jit(plain_seq2seq_forward)(params, x, x_len, y, y_len)
    jax.block_until_ready(logp)
    assert logp.shape == (B, Ty, cn_vocab)
    assert bool(jnp.all(jnp.isfinite(logp)))
    print("KERNEL_OK")
</pallas_src>

<mosaic_0001>
module attributes {stable_mosaic.version = 11 : i64} {
  func.func @gru_kernel(%arg0: i32, %arg1: i32, %arg2: memref<1x4x2x32xf32, #tpu.memory_space<vmem>>, %arg3: memref<1x4x2x32xf32, #tpu.memory_space<vmem>>, %arg4: memref<1x4x2x32xf32, #tpu.memory_space<vmem>>, %arg5: memref<1x2x32xf32, #tpu.memory_space<vmem>>, %arg6: memref<2x1xi32, #tpu.memory_space<vmem>>, %arg7: memref<1x3x32x32xf32, #tpu.memory_space<vmem>>, %arg8: memref<1x3x1x32xf32, #tpu.memory_space<vmem>>, %arg9: memref<1x4x2x32xf32, #tpu.memory_space<vmem>>, %arg10: memref<1x2x32xf32, #tpu.memory_space<vmem>>, %arg11: memref<2x32xf32, #tpu.memory_space<vmem>>) attributes {dimension_semantics = [#tpu.dimension_semantics<parallel>, #tpu.dimension_semantics<arbitrary>], iteration_bounds = array<i64: 2, 2>, scalar_prefetch = 0 : i64, scratch_operands = 1 : i64, tpu.core_type = #tpu.core_type<tc>, window_params = [{transform_indices = @transform_0, window_bounds = array<i64: 1, 4, 2, 32>}, {transform_indices = @transform_1, window_bounds = array<i64: 1, 4, 2, 32>}, {transform_indices = @transform_2, window_bounds = array<i64: 1, 4, 2, 32>}, {transform_indices = @transform_3, window_bounds = array<i64: 1, 2, 32>}, {pipeline_mode = #tpu.pipeline_mode<synchronous>, transform_indices = @transform_4, window_bounds = array<i64: 2, 1>}, {transform_indices = @transform_5, window_bounds = array<i64: 1, 3, 32, 32>}, {transform_indices = @transform_6, window_bounds = array<i64: 1, 3, 1, 32>}, {transform_indices = @transform_7, window_bounds = array<i64: 1, 4, 2, 32>}, {transform_indices = @transform_8, window_bounds = array<i64: 1, 2, 32>}]} {
    %c0_i32 = arith.constant 0 : i32
    %0 = arith.cmpi eq, %arg1, %c0_i32 : i32
    %1 = arith.extui %0 : i1 to i32
    %c0_i32_0 = arith.constant 0 : i32
    %2 = arith.cmpi ne, %1, %c0_i32_0 : i32
    scf.if %2 {
      %c0_122 = arith.constant 0 : index
      %c0_123 = arith.constant 0 : index
      %c0_124 = arith.constant 0 : index
      %237 = vector.load %arg5[%c0_122, %c0_123, %c0_124] : memref<1x2x32xf32, #tpu.memory_space<vmem>>, vector<1x2x32xf32>
      %238 = vector.shape_cast %237 : vector<1x2x32xf32> to vector<2x32xf32>
      %c0_125 = arith.constant 0 : index
      %c0_126 = arith.constant 0 : index
      %239 = vector.load %arg11[%c0_125, %c0_126] : memref<2x32xf32, #tpu.memory_space<vmem>>, vector<2x32xf32>
      tpu.vector_store %arg11[%c0_125, %c0_126], %238 {strides = array<i32>} : memref<2x32xf32, #tpu.memory_space<vmem>>, vector<2x32xf32>,
    } else {
    }
    %c0 = arith.constant 0 : index
    %c0_1 = arith.constant 0 : index
    %3 = vector.load %arg6[%c0, %c0_1] : memref<2x1xi32, #tpu.memory_space<vmem>>, vector<2x1xi32>
    %c4_i32 = arith.constant 4 : i32
    %4 = arith.muli %arg1, %c4_i32 : i32
    %c0_2 = arith.constant 0 : index
    %c0_3 = arith.constant 0 : index
    %c0_4 = arith.constant 0 : index
    %c0_5 = arith.constant 0 : index
    %5 = vector.load %arg7[%c0_2, %c0_3, %c0_4, %c0_5] : memref<1x3x32x32xf32, #tpu.memory_space<vmem>>, vector<1x1x32x32xf32>
    %6 = vector.shape_cast %5 : vector<1x1x32x32xf32> to vector<32x32xf32>
    %c0_6 = arith.constant 0 : index
    %c1 = arith.constant 1 : index
    %c0_7 = arith.constant 0 : index
    %c0_8 = arith.constant 0 : index
    %7 = vector.load %arg7[%c0_6, %c1, %c0_7, %c0_8] : memref<1x3x32x32xf32, #tpu.memory_space<vmem>>, vector<1x1x32x32xf32>
    %8 = vector.shape_cast %7 : vector<1x1x32x32xf32> to vector<32x32xf32>
    %c0_9 = arith.constant 0 : index
    %c2 = arith.constant 2 : index
    %c0_10 = arith.constant 0 : index
    %c0_11 = arith.constant 0 : index
    %9 = vector.load %arg7[%c0_9, %c2, %c0_10, %c0_11] : memref<1x3x32x32xf32, #tpu.memory_space<vmem>>, vector<1x1x32x32xf32>
    %10 = vector.shape_cast %9 : vector<1x1x32x32xf32> to vector<32x32xf32>
    %c0_12 = arith.constant 0 : index
    %c0_13 = arith.constant 0 : index
    %c0_14 = arith.constant 0 : index
    %c0_15 = arith.constant 0 : index
    %11 = vector.load %arg8[%c0_12, %c0_13, %c0_14, %c0_15] : memref<1x3x1x32xf32, #tpu.memory_space<vmem>>, vector<1x1x1x32xf32>
    %12 = vector.shape_cast %11 : vector<1x1x1x32xf32> to vector<1x32xf32>
    %c0_16 = arith.constant 0 : index
    %c1_17 = arith.constant 1 : index
    %c0_18 = arith.constant 0 : index
    %c0_19 = arith.constant 0 : index
    %13 = vector.load %arg8[%c0_16, %c1_17, %c0_18, %c0_19] : memref<1x3x1x32xf32, #tpu.memory_space<vmem>>, vector<1x1x1x32xf32>
    %14 = vector.shape_cast %13 : vector<1x1x1x32xf32> to vector<1x32xf32>
    %c0_20 = arith.constant 0 : index
    %c2_21 = arith.constant 2 : index
    %c0_22 = arith.constant 0 : index
    %c0_23 = arith.constant 0 : index
    %15 = vector.load %arg8[%c0_20, %c2_21, %c0_22, %c0_23] : memref<1x3x1x32xf32, #tpu.memory_space<vmem>>, vector<1x1x1x32xf32>
    %16 = vector.shape_cast %15 : vector<1x1x1x32xf32> to vector<1x32xf32>
    %c0_i32_24 = arith.constant 0 : i32
    %c0_25 = arith.constant 0 : index
    %c0_26 = arith.constant 0 : index
    %17 = vector.load %arg11[%c0_25, %c0_26] : memref<2x32xf32, #tpu.memory_space<vmem>>, vector<2x32xf32>
    %cst = arith.constant dense<0.000000e+00> : vector<2x32xf32>
    %18 = tpu.matmul %17, %6, %cst {dimension_numbers = #tpu.dot_dimension_numbers<[1], [0], [0], [1], [0, 0, 1, 1], [], []>} : vector<2x32xf32>, vector<32x32xf32>, vector<2x32xf32> -> vector<2x32xf32>
    %19 = vector.broadcast %12 : vector<1x32xf32> to vector<2x32xf32>
    %20 = arith.addf %18, %19 : vector<2x32xf32>
    %cst_27 = arith.constant dense<0.000000e+00> : vector<2x32xf32>
    %21 = tpu.matmul %17, %8, %cst_27 {dimension_numbers = #tpu.dot_dimension_numbers<[1], [0], [0], [1], [0, 0, 1, 1], [], []>} : vector<2x32xf32>, vector<32x32xf32>, vector<2x32xf32> -> vector<2x32xf32>
    %22 = vector.broadcast %14 : vector<1x32xf32> to vector<2x32xf32>
    %23 = arith.addf %21, %22 : vector<2x32xf32>
    %cst_28 = arith.constant dense<0.000000e+00> : vector<2x32xf32>
    %24 = tpu.matmul %17, %10, %cst_28 {dimension_numbers = #tpu.dot_dimension_numbers<[1], [0], [0], [1], [0, 0, 1, 1], [], []>} : vector<2x32xf32>, vector<32x32xf32>, vector<2x32xf32> -> vector<2x32xf32>
    %25 = vector.broadcast %16 : vector<1x32xf32> to vector<2x32xf32>
    %26 = arith.addf %24, %25 : vector<2x32xf32>
    %c0_29 = arith.constant 0 : index
    %27 = arith.index_cast %c0_i32_24 : i32 to index
    %c0_30 = arith.constant 0 : index
    %c0_31 = arith.constant 0 : index
    %28 = vector.load %arg2[%c0_29, %27, %c0_30, %c0_31] : memref<1x4x2x32xf32, #tpu.memory_space<vmem>>, vector<1x1x2x32xf32>
    %29 = vector.shape_cast %28 : vector<1x1x2x32xf32> to vector<2x32xf32>
    %30 = arith.addf %29, %20 : vector<2x32xf32>
    %31 = arith.negf %30 : vector<2x32xf32>
    %32 = math.exp %31 : vector<2x32xf32>
    %cst_32 = arith.constant 1.000000e+00 : f32
    %33 = vector.broadcast %cst_32 : f32 to vector<2x32xf32>
    %34 = arith.addf %33, %32 : vector<2x32xf32>
    %35 = arith.divf %33, %34 : vector<2x32xf32>
    %c0_33 = arith.constant 0 : index
    %36 = arith.index_cast %c0_i32_24 : i32 to index
    %c0_34 = arith.constant 0 : index
    %c0_35 = arith.constant 0 : index
    %37 = vector.load %arg3[%c0_33, %36, %c0_34, %c0_35] : memref<1x4x2x32xf32, #tpu.memory_space<vmem>>, vector<1x1x2x32xf32>
    %38 = vector.shape_cast %37 : vector<1x1x2x32xf32> to vector<2x32xf32>
    %39 = arith.addf %38, %23 : vector<2x32xf32>
    %40 = arith.negf %39 : vector<2x32xf32>
    %41 = math.exp %40 : vector<2x32xf32>
    %cst_36 = arith.constant 1.000000e+00 : f32
    %42 = vector.broadcast %cst_36 : f32 to vector<2x32xf32>
    %43 = arith.addf %42, %41 : vector<2x32xf32>
    %44 = arith.divf %42, %43 : vector<2x32xf32>
    %c0_37 = arith.constant 0 : index
    %45 = arith.index_cast %c0_i32_24 : i32 to index
    %c0_38 = arith.constant 0 : index
    %c0_39 = arith.constant 0 : index
    %46 = vector.load %arg4[%c0_37, %45, %c0_38, %c0_39] : memref<1x4x2x32xf32, #tpu.memory_space<vmem>>, vector<1x1x2x32xf32>
    %47 = vector.shape_cast %46 : vector<1x1x2x32xf32> to vector<2x32xf32>
    %48 = arith.mulf %35, %26 : vector<2x32xf32>
    %49 = arith.addf %47, %48 : vector<2x32xf32>
    %50 = math.tanh %49 : vector<2x32xf32>
    %cst_40 = arith.constant 1.000000e+00 : f32
    %51 = vector.broadcast %cst_40 : f32 to vector<2x32xf32>
    %52 = arith.subf %51, %44 : vector<2x32xf32>
    %53 = arith.mulf %52, %50 : vector<2x32xf32>
    %54 = arith.mulf %44, %17 : vector<2x32xf32>
    %55 = arith.addf %53, %54 : vector<2x32xf32>
    %56 = arith.addi %4, %c0_i32_24 : i32
    %57 = vector.broadcast %56 : i32 to vector<2x1xi32>
    %58 = arith.cmpi slt, %57, %3 : vector<2x1xi32>
    %59 = vector.shape_cast %58 : vector<2x1xi1> to vector<2x1xi1>
    %60 = vector.broadcast %59 : vector<2x1xi1> to vector<2x32xi1>
    %61 = arith.select %60, %55, %17 : vector<2x32xi1>, vector<2x32xf32>
    %c0_41 = arith.constant 0 : index
    %c0_42 = arith.constant 0 : index
    %62 = vector.load %arg11[%c0_41, %c0_42] : memref<2x32xf32, #tpu.memory_space<vmem>>, vector<2x32xf32>
    tpu.vector_store %arg11[%c0_41, %c0_42], %61 {strides = array<i32>} : memref<2x32xf32, #tpu.memory_space<vmem>>, vector<2x32xf32>,
    %cst_43 = arith.constant 0.000000e+00 : f32
    %63 = vector.shape_cast %58 : vector<2x1xi1> to vector<2x1xi1>
    %64 = vector.broadcast %63 : vector<2x1xi1> to vector<2x32xi1>
    %65 = vector.broadcast %cst_43 : f32 to vector<2x32xf32>
    %66 = arith.select %64, %55, %65 : vector<2x32xi1>, vector<2x32xf32>
    %c0_44 = arith.constant 0 : index
    %67 = arith.index_cast %c0_i32_24 : i32 to index
    %c0_45 = arith.constant 0 : index
    %c0_46 = arith.constant 0 : index
    %68 = vector.load %arg9[%c0_44, %67, %c0_45, %c0_46] : memref<1x4x2x32xf32, #tpu.memory_space<vmem>>, vector<1x1x2x32xf32>
    %69 = vector.shape_cast %68 : vector<1x1x2x32xf32> to vector<2x32xf32>
    %70 = vector.shape_cast %66 : vector<2x32xf32> to vector<1x1x2x32xf32>
    tpu.vector_store %arg9[%c0_44, %67, %c0_45, %c0_46], %70 {strides = array<i32>} : memref<1x4x2x32xf32, #tpu.memory_space<vmem>>, vector<1x1x2x32xf32>,
    %c1_i32 = arith.constant 1 : i32
    %c0_47 = arith.constant 0 : index
    %c0_48 = arith.constant 0 : index
    %71 = vector.load %arg11[%c0_47, %c0_48] : memref<2x32xf32, #tpu.memory_space<vmem>>, vector<2x32xf32>
    %cst_49 = arith.constant dense<0.000000e+00> : vector<2x32xf32>
    %72 = tpu.matmul %71, %6, %cst_49 {dimension_numbers = #tpu.dot_dimension_numbers<[1], [0], [0], [1], [0, 0, 1, 1], [], []>} : vector<2x32xf32>, vector<32x32xf32>, vector<2x32xf32> -> vector<2x32xf32>
    %73 = vector.broadcast %12 : vector<1x32xf32> to vector<2x32xf32>
    %74 = arith.addf %72, %73 : vector<2x32xf32>
    %cst_50 = arith.constant dense<0.000000e+00> : vector<2x32xf32>
    %75 = tpu.matmul %71, %8, %cst_50 {dimension_numbers = #tpu.dot_dimension_numbers<[1], [0], [0], [1], [0, 0, 1, 1], [], []>} : vector<2x32xf32>, vector<32x32xf32>, vector<2x32xf32> -> vector<2x32xf32>
    %76 = vector.broadcast %14 : vector<1x32xf32> to vector<2x32xf32>
    %77 = arith.addf %75, %76 : vector<2x32xf32>
    %cst_51 = arith.constant dense<0.000000e+00> : vector<2x32xf32>
    %78 = tpu.matmul %71, %10, %cst_51 {dimension_numbers = #tpu.dot_dimension_numbers<[1], [0], [0], [1], [0, 0, 1, 1], [], []>} : vector<2x32xf32>, vector<32x32xf32>, vector<2x32xf32> -> vector<2x32xf32>
    %79 = vector.broadcast %16 : vector<1x32xf32> to vector<2x32xf32>
    %80 = arith.addf %78, %79 : vector<2x32xf32>
    %c0_52 = arith.constant 0 : index
    %81 = arith.index_cast %c1_i32 : i32 to index
    %c0_53 = arith.constant 0 : index
    %c0_54 = arith.constant 0 : index
    %82 = vector.load %arg2[%c0_52, %81, %c0_53, %c0_54] : memref<1x4x2x32xf32, #tpu.memory_space<vmem>>, vector<1x1x2x32xf32>
    %83 = vector.shape_cast %82 : vector<1x1x2x32xf32> to vector<2x32xf32>
    %84 = arith.addf %83, %74 : vector<2x32xf32>
    %85 = arith.negf %84 : vector<2x32xf32>
    %86 = math.exp %85 : vector<2x32xf32>
    %cst_55 = arith.constant 1.000000e+00 : f32
    %87 = vector.broadcast %cst_55 : f32 to vector<2x32xf32>
    %88 = arith.addf %87, %86 : vector<2x32xf32>
    %89 = arith.divf %87, %88 : vector<2x32xf32>
    %c0_56 = arith.constant 0 : index
    %90 = arith.index_cast %c1_i32 : i32 to index
    %c0_57 = arith.constant 0 : index
    %c0_58 = arith.constant 0 : index
    %91 = vector.load %arg3[%c0_56, %90, %c0_57, %c0_58] : memref<1x4x2x32xf32, #tpu.memory_space<vmem>>, vector<1x1x2x32xf32>
    %92 = vector.shape_cast %91 : vector<1x1x2x32xf32> to vector<2x32xf32>
    %93 = arith.addf %92, %77 : vector<2x32xf32>
    %94 = arith.negf %93 : vector<2x32xf32>
    %95 = math.exp %94 : vector<2x32xf32>
    %cst_59 = arith.constant 1.000000e+00 : f32
    %96 = vector.broadcast %cst_59 : f32 to vector<2x32xf32>
    %97 = arith.addf %96, %95 : vector<2x32xf32>
    %98 = arith.divf %96, %97 : vector<2x32xf32>
    %c0_60 = arith.constant 0 : index
    %99 = arith.index_cast %c1_i32 : i32 to index
    %c0_61 = arith.constant 0 : index
    %c0_62 = arith.constant 0 : index
    %100 = vector.load %arg4[%c0_60, %99, %c0_61, %c0_62] : memref<1x4x2x32xf32, #tpu.memory_space<vmem>>, vector<1x1x2x32xf32>
    %101 = vector.shape_cast %100 : vector<1x1x2x32xf32> to vector<2x32xf32>
    %102 = arith.mulf %89, %80 : vector<2x32xf32>
    %103 = arith.addf %101, %102 : vector<2x32xf32>
    %104 = math.tanh %103 : vector<2x32xf32>
    %cst_63 = arith.constant 1.000000e+00 : f32
    %105 = vector.broadcast %cst_63 : f32 to vector<2x32xf32>
    %106 = arith.subf %105, %98 : vector<2x32xf32>
    %107 = arith.mulf %106, %104 : vector<2x32xf32>
    %108 = arith.mulf %98, %71 : vector<2x32xf32>
    %109 = arith.addf %107, %108 : vector<2x32xf32>
    %110 = arith.addi %4, %c1_i32 : i32
    %111 = vector.broadcast %110 : i32 to vector<2x1xi32>
    %112 = arith.cmpi slt, %111, %3 : vector<2x1xi32>
    %113 = vector.shape_cast %112 : vector<2x1xi1> to vector<2x1xi1>
    %114 = vector.broadcast %113 : vector<2x1xi1> to vector<2x32xi1>
    %115 = arith.select %114, %109, %71 : vector<2x32xi1>, vector<2x32xf32>
    %c0_64 = arith.constant 0 : index
    %c0_65 = arith.constant 0 : index
    %116 = vector.load %arg11[%c0_64, %c0_65] : memref<2x32xf32, #tpu.memory_space<vmem>>, vector<2x32xf32>
    tpu.vector_store %arg11[%c0_64, %c0_65], %115 {strides = array<i32>} : memref<2x32xf32, #tpu.memory_space<vmem>>, vector<2x32xf32>,
    %cst_66 = arith.constant 0.000000e+00 : f32
    %117 = vector.shape_cast %112 : vector<2x1xi1> to vector<2x1xi1>
    %118 = vector.broadcast %117 : vector<2x1xi1> to vector<2x32xi1>
    %119 = vector.broadcast %cst_66 : f32 to vector<2x32xf32>
    %120 = arith.select %118, %109, %119 : vector<2x32xi1>, vector<2x32xf32>
    %c0_67 = arith.constant 0 : index
    %121 = arith.index_cast %c1_i32 : i32 to index
    %c0_68 = arith.constant 0 : index
    %c0_69 = arith.constant 0 : index
    %122 = vector.load %arg9[%c0_67, %121, %c0_68, %c0_69] : memref<1x4x2x32xf32, #tpu.memory_space<vmem>>, vector<1x1x2x32xf32>
    %123 = vector.shape_cast %122 : vector<1x1x2x32xf32> to vector<2x32xf32>
    %124 = vector.shape_cast %120 : vector<2x32xf32> to vector<1x1x2x32xf32>
    tpu.vector_store %arg9[%c0_67, %121, %c0_68, %c0_69], %124 {strides = array<i32>} : memref<1x4x2x32xf32, #tpu.memory_space<vmem>>, vector<1x1x2x32xf32>,
    %c2_i32 = arith.constant 2 : i32
    %c0_70 = arith.constant 0 : index
    %c0_71 = arith.constant 0 : index
    %125 = vector.load %arg11[%c0_70, %c0_71] : memref<2x32xf32, #tpu.memory_space<vmem>>, vector<2x32xf32>
    %cst_72 = arith.constant dense<0.000000e+00> : vector<2x32xf32>
    %126 = tpu.matmul %125, %6, %cst_72 {dimension_numbers = #tpu.dot_dimension_numbers<[1], [0], [0], [1], [0, 0, 1, 1], [], []>} : vector<2x32xf32>, vector<32x32xf32>, vector<2x32xf32> -> vector<2x32xf32>
    %127 = vector.broadcast %12 : vector<1x32xf32> to vector<2x32xf32>
    %128 = arith.addf %126, %127 : vector<2x32xf32>
    %cst_73 = arith.constant dense<0.000000e+00> : vector<2x32xf32>
    %129 = tpu.matmul %125, %8, %cst_73 {dimension_numbers = #tpu.dot_dimension_numbers<[1], [0], [0], [1], [0, 0, 1, 1], [], []>} : vector<2x32xf32>, vector<32x32xf32>, vector<2x32xf32> -> vector<2x32xf32>
    %130 = vector.broadcast %14 : vector<1x32xf32> to vector<2x32xf32>
    %131 = arith.addf %129, %130 : vector<2x32xf32>
    %cst_74 = arith.constant dense<0.000000e+00> : vector<2x32xf32>
    %132 = tpu.matmul %125, %10, %cst_74 {dimension_numbers = #tpu.dot_dimension_numbers<[1], [0], [0], [1], [0, 0, 1, 1], [], []>} : vector<2x32xf32>, vector<32x32xf32>, vector<2x32xf32> -> vector<2x32xf32>
    %133 = vector.broadcast %16 : vector<1x32xf32> to vector<2x32xf32>
    %134 = arith.addf %132, %133 : vector<2x32xf32>
    %c0_75 = arith.constant 0 : index
    %135 = arith.index_cast %c2_i32 : i32 to index
    %c0_76 = arith.constant 0 : index
    %c0_77 = arith.constant 0 : index
    %136 = vector.load %arg2[%c0_75, %135, %c0_76, %c0_77] : memref<1x4x2x32xf32, #tpu.memory_space<vmem>>, vector<1x1x2x32xf32>
    %137 = vector.shape_cast %136 : vector<1x1x2x32xf32> to vector<2x32xf32>
    %138 = arith.addf %137, %128 : vector<2x32xf32>
    %139 = arith.negf %138 : vector<2x32xf32>
    %140 = math.exp %139 : vector<2x32xf32>
    %cst_78 = arith.constant 1.000000e+00 : f32
    %141 = vector.broadcast %cst_78 : f32 to vector<2x32xf32>
    %142 = arith.addf %141, %140 : vector<2x32xf32>
    %143 = arith.divf %141, %142 : vector<2x32xf32>
    %c0_79 = arith.constant 0 : index
    %144 = arith.index_cast %c2_i32 : i32 to index
    %c0_80 = arith.constant 0 : index
    %c0_81 = arith.constant 0 : index
    %145 = vector.load %arg3[%c0_79, %144, %c0_80, %c0_81] : memref<1x4x2x32xf32, #tpu.memory_space<vmem>>, vector<1x1x2x32xf32>
    %146 = vector.shape_cast %145 : vector<1x1x2x32xf32> to vector<2x32xf32>
    %147 = arith.addf %146, %131 : vector<2x32xf32>
    %148 = arith.negf %147 : vector<2x32xf32>
    %149 = math.exp %148 : vector<2x32xf32>
    %cst_82 = arith.constant 1.000000e+00 : f32
    %150 = vector.broadcast %cst_82 : f32 to vector<2x32xf32>
    %151 = arith.addf %150, %149 : vector<2x32xf32>
    %152 = arith.divf %150, %151 : vector<2x32xf32>
    %c0_83 = arith.constant 0 : index
    %153 = arith.index_cast %c2_i32 : i32 to index
    %c0_84 = arith.constant 0 : index
    %c0_85 = arith.constant 0 : index
    %154 = vector.load %arg4[%c0_83, %153, %c0_84, %c0_85] : memref<1x4x2x32xf32, #tpu.memory_space<vmem>>, vector<1x1x2x32xf32>
    %155 = vector.shape_cast %154 : vector<1x1x2x32xf32> to vector<2x32xf32>
    %156 = arith.mulf %143, %134 : vector<2x32xf32>
    %157 = arith.addf %155, %156 : vector<2x32xf32>
    %158 = math.tanh %157 : vector<2x32xf32>
    %cst_86 = arith.constant 1.000000e+00 : f32
    %159 = vector.broadcast %cst_86 : f32 to vector<2x32xf32>
    %160 = arith.subf %159, %152 : vector<2x32xf32>
    %161 = arith.mulf %160, %158 : vector<2x32xf32>
    %162 = arith.mulf %152, %125 : vector<2x32xf32>
    %163 = arith.addf %161, %162 : vector<2x32xf32>
    %164 = arith.addi %4, %c2_i32 : i32
    %165 = vector.broadcast %164 : i32 to vector<2x1xi32>
    %166 = arith.cmpi slt, %165, %3 : vector<2x1xi32>
    %167 = vector.shape_cast %166 : vector<2x1xi1> to vector<2x1xi1>
    %168 = vector.broadcast %167 : vector<2x1xi1> to vector<2x32xi1>
    %169 = arith.select %168, %163, %125 : vector<2x32xi1>, vector<2x32xf32>
    %c0_87 = arith.constant 0 : index
    %c0_88 = arith.constant 0 : index
    %170 = vector.load %arg11[%c0_87, %c0_88] : memref<2x32xf32, #tpu.memory_space<vmem>>, vector<2x32xf32>
    tpu.vector_store %arg11[%c0_87, %c0_88], %169 {strides = array<i32>} : memref<2x32xf32, #tpu.memory_space<vmem>>, vector<2x32xf32>,
    %cst_89 = arith.constant 0.000000e+00 : f32
    %171 = vector.shape_cast %166 : vector<2x1xi1> to vector<2x1xi1>
    %172 = vector.broadcast %171 : vector<2x1xi1> to vector<2x32xi1>
    %173 = vector.broadcast %cst_89 : f32 to vector<2x32xf32>
    %174 = arith.select %172, %163, %173 : vector<2x32xi1>, vector<2x32xf32>
    %c0_90 = arith.constant 0 : index
    %175 = arith.index_cast %c2_i32 : i32 to index
    %c0_91 = arith.constant 0 : index
    %c0_92 = arith.constant 0 : index
    %176 = vector.load %arg9[%c0_90, %175, %c0_91, %c0_92] : memref<1x4x2x32xf32, #tpu.memory_space<vmem>>, vector<1x1x2x32xf32>
    %177 = vector.shape_cast %176 : vector<1x1x2x32xf32> to vector<2x32xf32>
    %178 = vector.shape_cast %174 : vector<2x32xf32> to vector<1x1x2x32xf32>
    tpu.vector_store %arg9[%c0_90, %175, %c0_91, %c0_92], %178 {strides = array<i32>} : memref<1x4x2x32xf32, #tpu.memory_space<vmem>>, vector<1x1x2x32xf32>,
    %c3_i32 = arith.constant 3 : i32
    %c0_93 = arith.constant 0 : index
    %c0_94 = arith.constant 0 : index
    %179 = vector.load %arg11[%c0_93, %c0_94] : memref<2x32xf32, #tpu.memory_space<vmem>>, vector<2x32xf32>
    %cst_95 = arith.constant dense<0.000000e+00> : vector<2x32xf32>
    %180 = tpu.matmul %179, %6, %cst_95 {dimension_numbers = #tpu.dot_dimension_numbers<[1], [0], [0], [1], [0, 0, 1, 1], [], []>} : vector<2x32xf32>, vector<32x32xf32>, vector<2x32xf32> -> vector<2x32xf32>
    %181 = vector.broadcast %12 : vector<1x32xf32> to vector<2x32xf32>
    %182 = arith.addf %180, %181 : vector<2x32xf32>
    %cst_96 = arith.constant dense<0.000000e+00> : vector<2x32xf32>
    %183 = tpu.matmul %179, %8, %cst_96 {dimension_numbers = #tpu.dot_dimension_numbers<[1], [0], [0], [1], [0, 0, 1, 1], [], []>} : vector<2x32xf32>, vector<32x32xf32>, vector<2x32xf32> -> vector<2x32xf32>
    %184 = vector.broadcast %14 : vector<1x32xf32> to vector<2x32xf32>
    %185 = arith.addf %183, %184 : vector<2x32xf32>
    %cst_97 = arith.constant dense<0.000000e+00> : vector<2x32xf32>
    %186 = tpu.matmul %179, %10, %cst_97 {dimension_numbers = #tpu.dot_dimension_numbers<[1], [0], [0], [1], [0, 0, 1, 1], [], []>} : vector<2x32xf32>, vector<32x32xf32>, vector<2x32xf32> -> vector<2x32xf32>
    %187 = vector.broadcast %16 : vector<1x32xf32> to vector<2x32xf32>
    %188 = arith.addf %186, %187 : vector<2x32xf32>
    %c0_98 = arith.constant 0 : index
    %189 = arith.index_cast %c3_i32 : i32 to index
    %c0_99 = arith.constant 0 : index
    %c0_100 = arith.constant 0 : index
    %190 = vector.load %arg2[%c0_98, %189, %c0_99, %c0_100] : memref<1x4x2x32xf32, #tpu.memory_space<vmem>>, vector<1x1x2x32xf32>
    %191 = vector.shape_cast %190 : vector<1x1x2x32xf32> to vector<2x32xf32>
    %192 = arith.addf %191, %182 : vector<2x32xf32>
    %193 = arith.negf %192 : vector<2x32xf32>
    %194 = math.exp %193 : vector<2x32xf32>
    %cst_101 = arith.constant 1.000000e+00 : f32
    %195 = vector.broadcast %cst_101 : f32 to vector<2x32xf32>
    %196 = arith.addf %195, %194 : vector<2x32xf32>
    %197 = arith.divf %195, %196 : vector<2x32xf32>
    %c0_102 = arith.constant 0 : index
    %198 = arith.index_cast %c3_i32 : i32 to index
    %c0_103 = arith.constant 0 : index
    %c0_104 = arith.constant 0 : index
    %199 = vector.load %arg3[%c0_102, %198, %c0_103, %c0_104] : memref<1x4x2x32xf32, #tpu.memory_space<vmem>>, vector<1x1x2x32xf32>
    %200 = vector.shape_cast %199 : vector<1x1x2x32xf32> to vector<2x32xf32>
    %201 = arith.addf %200, %185 : vector<2x32xf32>
    %202 = arith.negf %201 : vector<2x32xf32>
    %203 = math.exp %202 : vector<2x32xf32>
    %cst_105 = arith.constant 1.000000e+00 : f32
    %204 = vector.broadcast %cst_105 : f32 to vector<2x32xf32>
    %205 = arith.addf %204, %203 : vector<2x32xf32>
    %206 = arith.divf %204, %205 : vector<2x32xf32>
    %c0_106 = arith.constant 0 : index
    %207 = arith.index_cast %c3_i32 : i32 to index
    %c0_107 = arith.constant 0 : index
    %c0_108 = arith.constant 0 : index
    %208 = vector.load %arg4[%c0_106, %207, %c0_107, %c0_108] : memref<1x4x2x32xf32, #tpu.memory_space<vmem>>, vector<1x1x2x32xf32>
    %209 = vector.shape_cast %208 : vector<1x1x2x32xf32> to vector<2x32xf32>
    %210 = arith.mulf %197, %188 : vector<2x32xf32>
    %211 = arith.addf %209, %210 : vector<2x32xf32>
    %212 = math.tanh %211 : vector<2x32xf32>
    %cst_109 = arith.constant 1.000000e+00 : f32
    %213 = vector.broadcast %cst_109 : f32 to vector<2x32xf32>
    %214 = arith.subf %213, %206 : vector<2x32xf32>
    %215 = arith.mulf %214, %212 : vector<2x32xf32>
    %216 = arith.mulf %206, %179 : vector<2x32xf32>
    %217 = arith.addf %215, %216 : vector<2x32xf32>
    %218 = arith.addi %4, %c3_i32 : i32
    %219 = vector.broadcast %218 : i32 to vector<2x1xi32>
    %220 = arith.cmpi slt, %219, %3 : vector<2x1xi32>
    %221 = vector.shape_cast %220 : vector<2x1xi1> to vector<2x1xi1>
    %222 = vector.broadcast %221 : vector<2x1xi1> to vector<2x32xi1>
    %223 = arith.select %222, %217, %179 : vector<2x32xi1>, vector<2x32xf32>
    %c0_110 = arith.constant 0 : index
    %c0_111 = arith.constant 0 : index
    %224 = vector.load %arg11[%c0_110, %c0_111] : memref<2x32xf32, #tpu.memory_space<vmem>>, vector<2x32xf32>
    tpu.vector_store %arg11[%c0_110, %c0_111], %223 {strides = array<i32>} : memref<2x32xf32, #tpu.memory_space<vmem>>, vector<2x32xf32>,
    %cst_112 = arith.constant 0.000000e+00 : f32
    %225 = vector.shape_cast %220 : vector<2x1xi1> to vector<2x1xi1>
    %226 = vector.broadcast %225 : vector<2x1xi1> to vector<2x32xi1>
    %227 = vector.broadcast %cst_112 : f32 to vector<2x32xf32>
    %228 = arith.select %226, %217, %227 : vector<2x32xi1>, vector<2x32xf32>
    %c0_113 = arith.constant 0 : index
    %229 = arith.index_cast %c3_i32 : i32 to index
    %c0_114 = arith.constant 0 : index
    %c0_115 = arith.constant 0 : index
    %230 = vector.load %arg9[%c0_113, %229, %c0_114, %c0_115] : memref<1x4x2x32xf32, #tpu.memory_space<vmem>>, vector<1x1x2x32xf32>
    %231 = vector.shape_cast %230 : vector<1x1x2x32xf32> to vector<2x32xf32>
    %232 = vector.shape_cast %228 : vector<2x32xf32> to vector<1x1x2x32xf32>
    tpu.vector_store %arg9[%c0_113, %229, %c0_114, %c0_115], %232 {strides = array<i32>} : memref<1x4x2x32xf32, #tpu.memory_space<vmem>>, vector<1x1x2x32xf32>,
    %c4_i32_116 = arith.constant 4 : i32
    %c0_117 = arith.constant 0 : index
    %c0_118 = arith.constant 0 : index
    %233 = vector.load %arg11[%c0_117, %c0_118] : memref<2x32xf32, #tpu.memory_space<vmem>>, vector<2x32xf32>
    %c0_119 = arith.constant 0 : index
    %c0_120 = arith.constant 0 : index
    %c0_121 = arith.constant 0 : index
    %234 = vector.load %arg10[%c0_119, %c0_120, %c0_121] : memref<1x2x32xf32, #tpu.memory_space<vmem>>, vector<1x2x32xf32>
    %235 = vector.shape_cast %234 : vector<1x2x32xf32> to vector<2x32xf32>
    %236 = vector.shape_cast %233 : vector<2x32xf32> to vector<1x2x32xf32>
    tpu.vector_store %arg10[%c0_119, %c0_120, %c0_121], %236 {strides = array<i32>} : memref<1x2x32xf32, #tpu.memory_space<vmem>>, vector<1x2x32xf32>,
    return
  }
  func.func @transform_0(%arg0: i32, %arg1: i32) -> (i32, i32, i32, i32) {
    %c0_i32 = arith.constant 0 : i32
    %c0_i32_0 = arith.constant 0 : i32
    %c0_i32_1 = arith.constant 0 : i32
    return %arg0, %arg1, %c0_i32, %c0_i32_0 : i32, i32, i32, i32
  }
  func.func @transform_1(%arg0: i32, %arg1: i32) -> (i32, i32, i32, i32) {
    %c0_i32 = arith.constant 0 : i32
    %c0_i32_0 = arith.constant 0 : i32
    %c0_i32_1 = arith.constant 0 : i32
    return %arg0, %arg1, %c0_i32, %c0_i32_0 : i32, i32, i32, i32
  }
  func.func @transform_2(%arg0: i32, %arg1: i32) -> (i32, i32, i32, i32) {
    %c0_i32 = arith.constant 0 : i32
    %c0_i32_0 = arith.constant 0 : i32
    %c0_i32_1 = arith.constant 0 : i32
    return %arg0, %arg1, %c0_i32, %c0_i32_0 : i32, i32, i32, i32
  }
  func.func @transform_3(%arg0: i32, %arg1: i32) -> (i32, i32, i32) {
    %c0_i32 = arith.constant 0 : i32
    %c0_i32_0 = arith.constant 0 : i32
    %c0_i32_1 = arith.constant 0 : i32
    return %arg0, %c0_i32, %c0_i32_0 : i32, i32, i32
  }
  func.func @transform_4(%arg0: i32, %arg1: i32) -> (i32, i32) {
    %c0_i32 = arith.constant 0 : i32
    %c0_i32_0 = arith.constant 0 : i32
    %c0_i32_1 = arith.constant 0 : i32
    return %c0_i32, %c0_i32_0 : i32, i32
  }
  func.func @transform_5(%arg0: i32, %arg1: i32) -> (i32, i32, i32, i32) {
    %c0_i32 = arith.constant 0 : i32
    %c0_i32_0 = arith.constant 0 : i32
    %c0_i32_1 = arith.constant 0 : i32
    %c0_i32_2 = arith.constant 0 : i32
    return %arg0, %c0_i32, %c0_i32_0, %c0_i32_1 : i32, i32, i32, i32
  }
  func.func @transform_6(%arg0: i32, %arg1: i32) -> (i32, i32, i32, i32) {
    %c0_i32 = arith.constant 0 : i32
    %c0_i32_0 = arith.constant 0 : i32
    %c0_i32_1 = arith.constant 0 : i32
    %c0_i32_2 = arith.constant 0 : i32
    return %arg0, %c0_i32, %c0_i32_0, %c0_i32_1 : i32, i32, i32, i32
  }
  func.func @transform_7(%arg0: i32, %arg1: i32) -> (i32, i32, i32, i32) {
    %c0_i32 = arith.constant 0 : i32
    %c0_i32_0 = arith.constant 0 : i32
    %c0_i32_1 = arith.constant 0 : i32
    return %arg0, %arg1, %c0_i32, %c0_i32_0 : i32, i32, i32, i32
  }
  func.func @transform_8(%arg0: i32, %arg1: i32) -> (i32, i32, i32) {
    %c0_i32 = arith.constant 0 : i32
    %c0_i32_0 = arith.constant 0 : i32
    %c0_i32_1 = arith.constant 0 : i32
    return %arg0, %c0_i32, %c0_i32_0 : i32, i32, i32
  }
}

module attributes {stable_mosaic.version = 11 : i64} {
  func.func @gru_kernel(%arg0: i32, %arg1: i32, %arg2: memref<1x4x2x32xf32, #tpu.memory_space<vmem>>, %arg3: memref<1x4x2x32xf32, #tpu.memory_space<vmem>>, %arg4: memref<1x4x2x32xf32, #tpu.memory_space<vmem>>, %arg5: memref<1x2x32xf32, #tpu.memory_space<vmem>>, %arg6: memref<2x1xi32, #tpu.memory_space<vmem>>, %arg7: memref<1x3x32x32xf32, #tpu.memory_space<vmem>>, %arg8: memref<1x3x1x32xf32, #tpu.memory_space<vmem>>, %arg9: memref<1x4x2x32xf32, #tpu.memory_space<vmem>>, %arg10: memref<1x2x32xf32, #tpu.memory_space<vmem>>, %arg11: memref<2x32xf32, #tpu.memory_space<vmem>>) attributes {dimension_semantics = [#tpu.dimension_semantics<parallel>, #tpu.dimension_semantics<arbitrary>], iteration_bounds = array<i64: 1, 2>, scalar_prefetch = 0 : i64, scratch_operands = 1 : i64, tpu.core_type = #tpu.core_type<tc>, window_params = [{transform_indices = @transform_0, window_bounds = array<i64: 1, 4, 2, 32>}, {transform_indices = @transform_1, window_bounds = array<i64: 1, 4, 2, 32>}, {transform_indices = @transform_2, window_bounds = array<i64: 1, 4, 2, 32>}, {transform_indices = @transform_3, window_bounds = array<i64: 1, 2, 32>}, {pipeline_mode = #tpu.pipeline_mode<synchronous>, transform_indices = @transform_4, window_bounds = array<i64: 2, 1>}, {transform_indices = @transform_5, window_bounds = array<i64: 1, 3, 32, 32>}, {transform_indices = @transform_6, window_bounds = array<i64: 1, 3, 1, 32>}, {transform_indices = @transform_7, window_bounds = array<i64: 1, 4, 2, 32>}, {transform_indices = @transform_8, window_bounds = array<i64: 1, 2, 32>}]} {
    %c0_i32 = arith.constant 0 : i32
    %0 = arith.cmpi eq, %arg1, %c0_i32 : i32
    %1 = arith.extui %0 : i1 to i32
    %c0_i32_0 = arith.constant 0 : i32
    %2 = arith.cmpi ne, %1, %c0_i32_0 : i32
    scf.if %2 {
      %c0_122 = arith.constant 0 : index
      %c0_123 = arith.constant 0 : index
      %c0_124 = arith.constant 0 : index
      %237 = vector.load %arg5[%c0_122, %c0_123, %c0_124] : memref<1x2x32xf32, #tpu.memory_space<vmem>>, vector<1x2x32xf32>
      %238 = vector.shape_cast %237 : vector<1x2x32xf32> to vector<2x32xf32>
      %c0_125 = arith.constant 0 : index
      %c0_126 = arith.constant 0 : index
      %239 = vector.load %arg11[%c0_125, %c0_126] : memref<2x32xf32, #tpu.memory_space<vmem>>, vector<2x32xf32>
      tpu.vector_store %arg11[%c0_125, %c0_126], %238 {strides = array<i32>} : memref<2x32xf32, #tpu.memory_space<vmem>>, vector<2x32xf32>,
    } else {
    }
    %c0 = arith.constant 0 : index
    %c0_1 = arith.constant 0 : index
    %3 = vector.load %arg6[%c0, %c0_1] : memref<2x1xi32, #tpu.memory_space<vmem>>, vector<2x1xi32>
    %c4_i32 = arith.constant 4 : i32
    %4 = arith.muli %arg1, %c4_i32 : i32
    %c0_2 = arith.constant 0 : index
    %c0_3 = arith.constant 0 : index
    %c0_4 = arith.constant 0 : index
    %c0_5 = arith.constant 0 : index
    %5 = vector.load %arg7[%c0_2, %c0_3, %c0_4, %c0_5] : memref<1x3x32x32xf32, #tpu.memory_space<vmem>>, vector<1x1x32x32xf32>
    %6 = vector.shape_cast %5 : vector<1x1x32x32xf32> to vector<32x32xf32>
    %c0_6 = arith.constant 0 : index
    %c1 = arith.constant 1 : index
    %c0_7 = arith.constant 0 : index
    %c0_8 = arith.constant 0 : index
    %7 = vector.load %arg7[%c0_6, %c1, %c0_7, %c0_8] : memref<1x3x32x32xf32, #tpu.memory_space<vmem>>, vector<1x1x32x32xf32>
    %8 = vector.shape_cast %7 : vector<1x1x32x32xf32> to vector<32x32xf32>
    %c0_9 = arith.constant 0 : index
    %c2 = arith.constant 2 : index
    %c0_10 = arith.constant 0 : index
    %c0_11 = arith.constant 0 : index
    %9 = vector.load %arg7[%c0_9, %c2, %c0_10, %c0_11] : memref<1x3x32x32xf32, #tpu.memory_space<vmem>>, vector<1x1x32x32xf32>
    %10 = vector.shape_cast %9 : vector<1x1x32x32xf32> to vector<32x32xf32>
    %c0_12 = arith.constant 0 : index
    %c0_13 = arith.constant 0 : index
    %c0_14 = arith.constant 0 : index
    %c0_15 = arith.constant 0 : index
    %11 = vector.load %arg8[%c0_12, %c0_13, %c0_14, %c0_15] : memref<1x3x1x32xf32, #tpu.memory_space<vmem>>, vector<1x1x1x32xf32>
    %12 = vector.shape_cast %11 : vector<1x1x1x32xf32> to vector<1x32xf32>
    %c0_16 = arith.constant 0 : index
    %c1_17 = arith.constant 1 : index
    %c0_18 = arith.constant 0 : index
    %c0_19 = arith.constant 0 : index
    %13 = vector.load %arg8[%c0_16, %c1_17, %c0_18, %c0_19] : memref<1x3x1x32xf32, #tpu.memory_space<vmem>>, vector<1x1x1x32xf32>
    %14 = vector.shape_cast %13 : vector<1x1x1x32xf32> to vector<1x32xf32>
    %c0_20 = arith.constant 0 : index
    %c2_21 = arith.constant 2 : index
    %c0_22 = arith.constant 0 : index
    %c0_23 = arith.constant 0 : index
    %15 = vector.load %arg8[%c0_20, %c2_21, %c0_22, %c0_23] : memref<1x3x1x32xf32, #tpu.memory_space<vmem>>, vector<1x1x1x32xf32>
    %16 = vector.shape_cast %15 : vector<1x1x1x32xf32> to vector<1x32xf32>
    %c0_i32_24 = arith.constant 0 : i32
    %c0_25 = arith.constant 0 : index
    %c0_26 = arith.constant 0 : index
    %17 = vector.load %arg11[%c0_25, %c0_26] : memref<2x32xf32, #tpu.memory_space<vmem>>, vector<2x32xf32>
    %cst = arith.constant dense<0.000000e+00> : vector<2x32xf32>
    %18 = tpu.matmul %17, %6, %cst {dimension_numbers = #tpu.dot_dimension_numbers<[1], [0], [0], [1], [0, 0, 1, 1], [], []>} : vector<2x32xf32>, vector<32x32xf32>, vector<2x32xf32> -> vector<2x32xf32>
    %19 = vector.broadcast %12 : vector<1x32xf32> to vector<2x32xf32>
    %20 = arith.addf %18, %19 : vector<2x32xf32>
    %cst_27 = arith.constant dense<0.000000e+00> : vector<2x32xf32>
    %21 = tpu.matmul %17, %8, %cst_27 {dimension_numbers = #tpu.dot_dimension_numbers<[1], [0], [0], [1], [0, 0, 1, 1], [], []>} : vector<2x32xf32>, vector<32x32xf32>, vector<2x32xf32> -> vector<2x32xf32>
    %22 = vector.broadcast %14 : vector<1x32xf32> to vector<2x32xf32>
    %23 = arith.addf %21, %22 : vector<2x32xf32>
    %cst_28 = arith.constant dense<0.000000e+00> : vector<2x32xf32>
    %24 = tpu.matmul %17, %10, %cst_28 {dimension_numbers = #tpu.dot_dimension_numbers<[1], [0], [0], [1], [0, 0, 1, 1], [], []>} : vector<2x32xf32>, vector<32x32xf32>, vector<2x32xf32> -> vector<2x32xf32>
    %25 = vector.broadcast %16 : vector<1x32xf32> to vector<2x32xf32>
    %26 = arith.addf %24, %25 : vector<2x32xf32>
    %c0_29 = arith.constant 0 : index
    %27 = arith.index_cast %c0_i32_24 : i32 to index
    %c0_30 = arith.constant 0 : index
    %c0_31 = arith.constant 0 : index
    %28 = vector.load %arg2[%c0_29, %27, %c0_30, %c0_31] : memref<1x4x2x32xf32, #tpu.memory_space<vmem>>, vector<1x1x2x32xf32>
    %29 = vector.shape_cast %28 : vector<1x1x2x32xf32> to vector<2x32xf32>
    %30 = arith.addf %29, %20 : vector<2x32xf32>
    %31 = arith.negf %30 : vector<2x32xf32>
    %32 = math.exp %31 : vector<2x32xf32>
    %cst_32 = arith.constant 1.000000e+00 : f32
    %33 = vector.broadcast %cst_32 : f32 to vector<2x32xf32>
    %34 = arith.addf %33, %32 : vector<2x32xf32>
    %35 = arith.divf %33, %34 : vector<2x32xf32>
    %c0_33 = arith.constant 0 : index
    %36 = arith.index_cast %c0_i32_24 : i32 to index
    %c0_34 = arith.constant 0 : index
    %c0_35 = arith.constant 0 : index
    %37 = vector.load %arg3[%c0_33, %36, %c0_34, %c0_35] : memref<1x4x2x32xf32, #tpu.memory_space<vmem>>, vector<1x1x2x32xf32>
    %38 = vector.shape_cast %37 : vector<1x1x2x32xf32> to vector<2x32xf32>
    %39 = arith.addf %38, %23 : vector<2x32xf32>
    %40 = arith.negf %39 : vector<2x32xf32>
    %41 = math.exp %40 : vector<2x32xf32>
    %cst_36 = arith.constant 1.000000e+00 : f32
    %42 = vector.broadcast %cst_36 : f32 to vector<2x32xf32>
    %43 = arith.addf %42, %41 : vector<2x32xf32>
    %44 = arith.divf %42, %43 : vector<2x32xf32>
    %c0_37 = arith.constant 0 : index
    %45 = arith.index_cast %c0_i32_24 : i32 to index
    %c0_38 = arith.constant 0 : index
    %c0_39 = arith.constant 0 : index
    %46 = vector.load %arg4[%c0_37, %45, %c0_38, %c0_39] : memref<1x4x2x32xf32, #tpu.memory_space<vmem>>, vector<1x1x2x32xf32>
    %47 = vector.shape_cast %46 : vector<1x1x2x32xf32> to vector<2x32xf32>
    %48 = arith.mulf %35, %26 : vector<2x32xf32>
    %49 = arith.addf %47, %48 : vector<2x32xf32>
    %50 = math.tanh %49 : vector<2x32xf32>
    %cst_40 = arith.constant 1.000000e+00 : f32
    %51 = vector.broadcast %cst_40 : f32 to vector<2x32xf32>
    %52 = arith.subf %51, %44 : vector<2x32xf32>
    %53 = arith.mulf %52, %50 : vector<2x32xf32>
    %54 = arith.mulf %44, %17 : vector<2x32xf32>
    %55 = arith.addf %53, %54 : vector<2x32xf32>
    %56 = arith.addi %4, %c0_i32_24 : i32
    %57 = vector.broadcast %56 : i32 to vector<2x1xi32>
    %58 = arith.cmpi slt, %57, %3 : vector<2x1xi32>
    %59 = vector.shape_cast %58 : vector<2x1xi1> to vector<2x1xi1>
    %60 = vector.broadcast %59 : vector<2x1xi1> to vector<2x32xi1>
    %61 = arith.select %60, %55, %17 : vector<2x32xi1>, vector<2x32xf32>
    %c0_41 = arith.constant 0 : index
    %c0_42 = arith.constant 0 : index
    %62 = vector.load %arg11[%c0_41, %c0_42] : memref<2x32xf32, #tpu.memory_space<vmem>>, vector<2x32xf32>
    tpu.vector_store %arg11[%c0_41, %c0_42], %61 {strides = array<i32>} : memref<2x32xf32, #tpu.memory_space<vmem>>, vector<2x32xf32>,
    %cst_43 = arith.constant 0.000000e+00 : f32
    %63 = vector.shape_cast %58 : vector<2x1xi1> to vector<2x1xi1>
    %64 = vector.broadcast %63 : vector<2x1xi1> to vector<2x32xi1>
    %65 = vector.broadcast %cst_43 : f32 to vector<2x32xf32>
    %66 = arith.select %64, %55, %65 : vector<2x32xi1>, vector<2x32xf32>
    %c0_44 = arith.constant 0 : index
    %67 = arith.index_cast %c0_i32_24 : i32 to index
    %c0_45 = arith.constant 0 : index
    %c0_46 = arith.constant 0 : index
    %68 = vector.load %arg9[%c0_44, %67, %c0_45, %c0_46] : memref<1x4x2x32xf32, #tpu.memory_space<vmem>>, vector<1x1x2x32xf32>
    %69 = vector.shape_cast %68 : vector<1x1x2x32xf32> to vector<2x32xf32>
    %70 = vector.shape_cast %66 : vector<2x32xf32> to vector<1x1x2x32xf32>
    tpu.vector_store %arg9[%c0_44, %67, %c0_45, %c0_46], %70 {strides = array<i32>} : memref<1x4x2x32xf32, #tpu.memory_space<vmem>>, vector<1x1x2x32xf32>,
    %c1_i32 = arith.constant 1 : i32
    %c0_47 = arith.constant 0 : index
    %c0_48 = arith.constant 0 : index
    %71 = vector.load %arg11[%c0_47, %c0_48] : memref<2x32xf32, #tpu.memory_space<vmem>>, vector<2x32xf32>
    %cst_49 = arith.constant dense<0.000000e+00> : vector<2x32xf32>
    %72 = tpu.matmul %71, %6, %cst_49 {dimension_numbers = #tpu.dot_dimension_numbers<[1], [0], [0], [1], [0, 0, 1, 1], [], []>} : vector<2x32xf32>, vector<32x32xf32>, vector<2x32xf32> -> vector<2x32xf32>
    %73 = vector.broadcast %12 : vector<1x32xf32> to vector<2x32xf32>
    %74 = arith.addf %72, %73 : vector<2x32xf32>
    %cst_50 = arith.constant dense<0.000000e+00> : vector<2x32xf32>
    %75 = tpu.matmul %71, %8, %cst_50 {dimension_numbers = #tpu.dot_dimension_numbers<[1], [0], [0], [1], [0, 0, 1, 1], [], []>} : vector<2x32xf32>, vector<32x32xf32>, vector<2x32xf32> -> vector<2x32xf32>
    %76 = vector.broadcast %14 : vector<1x32xf32> to vector<2x32xf32>
    %77 = arith.addf %75, %76 : vector<2x32xf32>
    %cst_51 = arith.constant dense<0.000000e+00> : vector<2x32xf32>
    %78 = tpu.matmul %71, %10, %cst_51 {dimension_numbers = #tpu.dot_dimension_numbers<[1], [0], [0], [1], [0, 0, 1, 1], [], []>} : vector<2x32xf32>, vector<32x32xf32>, vector<2x32xf32> -> vector<2x32xf32>
    %79 = vector.broadcast %16 : vector<1x32xf32> to vector<2x32xf32>
    %80 = arith.addf %78, %79 : vector<2x32xf32>
    %c0_52 = arith.constant 0 : index
    %81 = arith.index_cast %c1_i32 : i32 to index
    %c0_53 = arith.constant 0 : index
    %c0_54 = arith.constant 0 : index
    %82 = vector.load %arg2[%c0_52, %81, %c0_53, %c0_54] : memref<1x4x2x32xf32, #tpu.memory_space<vmem>>, vector<1x1x2x32xf32>
    %83 = vector.shape_cast %82 : vector<1x1x2x32xf32> to vector<2x32xf32>
    %84 = arith.addf %83, %74 : vector<2x32xf32>
    %85 = arith.negf %84 : vector<2x32xf32>
    %86 = math.exp %85 : vector<2x32xf32>
    %cst_55 = arith.constant 1.000000e+00 : f32
    %87 = vector.broadcast %cst_55 : f32 to vector<2x32xf32>
    %88 = arith.addf %87, %86 : vector<2x32xf32>
    %89 = arith.divf %87, %88 : vector<2x32xf32>
    %c0_56 = arith.constant 0 : index
    %90 = arith.index_cast %c1_i32 : i32 to index
    %c0_57 = arith.constant 0 : index
    %c0_58 = arith.constant 0 : index
    %91 = vector.load %arg3[%c0_56, %90, %c0_57, %c0_58] : memref<1x4x2x32xf32, #tpu.memory_space<vmem>>, vector<1x1x2x32xf32>
    %92 = vector.shape_cast %91 : vector<1x1x2x32xf32> to vector<2x32xf32>
    %93 = arith.addf %92, %77 : vector<2x32xf32>
    %94 = arith.negf %93 : vector<2x32xf32>
    %95 = math.exp %94 : vector<2x32xf32>
    %cst_59 = arith.constant 1.000000e+00 : f32
    %96 = vector.broadcast %cst_59 : f32 to vector<2x32xf32>
    %97 = arith.addf %96, %95 : vector<2x32xf32>
    %98 = arith.divf %96, %97 : vector<2x32xf32>
    %c0_60 = arith.constant 0 : index
    %99 = arith.index_cast %c1_i32 : i32 to index
    %c0_61 = arith.constant 0 : index
    %c0_62 = arith.constant 0 : index
    %100 = vector.load %arg4[%c0_60, %99, %c0_61, %c0_62] : memref<1x4x2x32xf32, #tpu.memory_space<vmem>>, vector<1x1x2x32xf32>
    %101 = vector.shape_cast %100 : vector<1x1x2x32xf32> to vector<2x32xf32>
    %102 = arith.mulf %89, %80 : vector<2x32xf32>
    %103 = arith.addf %101, %102 : vector<2x32xf32>
    %104 = math.tanh %103 : vector<2x32xf32>
    %cst_63 = arith.constant 1.000000e+00 : f32
    %105 = vector.broadcast %cst_63 : f32 to vector<2x32xf32>
    %106 = arith.subf %105, %98 : vector<2x32xf32>
    %107 = arith.mulf %106, %104 : vector<2x32xf32>
    %108 = arith.mulf %98, %71 : vector<2x32xf32>
    %109 = arith.addf %107, %108 : vector<2x32xf32>
    %110 = arith.addi %4, %c1_i32 : i32
    %111 = vector.broadcast %110 : i32 to vector<2x1xi32>
    %112 = arith.cmpi slt, %111, %3 : vector<2x1xi32>
    %113 = vector.shape_cast %112 : vector<2x1xi1> to vector<2x1xi1>
    %114 = vector.broadcast %113 : vector<2x1xi1> to vector<2x32xi1>
    %115 = arith.select %114, %109, %71 : vector<2x32xi1>, vector<2x32xf32>
    %c0_64 = arith.constant 0 : index
    %c0_65 = arith.constant 0 : index
    %116 = vector.load %arg11[%c0_64, %c0_65] : memref<2x32xf32, #tpu.memory_space<vmem>>, vector<2x32xf32>
    tpu.vector_store %arg11[%c0_64, %c0_65], %115 {strides = array<i32>} : memref<2x32xf32, #tpu.memory_space<vmem>>, vector<2x32xf32>,
    %cst_66 = arith.constant 0.000000e+00 : f32
    %117 = vector.shape_cast %112 : vector<2x1xi1> to vector<2x1xi1>
    %118 = vector.broadcast %117 : vector<2x1xi1> to vector<2x32xi1>
    %119 = vector.broadcast %cst_66 : f32 to vector<2x32xf32>
    %120 = arith.select %118, %109, %119 : vector<2x32xi1>, vector<2x32xf32>
    %c0_67 = arith.constant 0 : index
    %121 = arith.index_cast %c1_i32 : i32 to index
    %c0_68 = arith.constant 0 : index
    %c0_69 = arith.constant 0 : index
    %122 = vector.load %arg9[%c0_67, %121, %c0_68, %c0_69] : memref<1x4x2x32xf32, #tpu.memory_space<vmem>>, vector<1x1x2x32xf32>
    %123 = vector.shape_cast %122 : vector<1x1x2x32xf32> to vector<2x32xf32>
    %124 = vector.shape_cast %120 : vector<2x32xf32> to vector<1x1x2x32xf32>
    tpu.vector_store %arg9[%c0_67, %121, %c0_68, %c0_69], %124 {strides = array<i32>} : memref<1x4x2x32xf32, #tpu.memory_space<vmem>>, vector<1x1x2x32xf32>,
    %c2_i32 = arith.constant 2 : i32
    %c0_70 = arith.constant 0 : index
    %c0_71 = arith.constant 0 : index
    %125 = vector.load %arg11[%c0_70, %c0_71] : memref<2x32xf32, #tpu.memory_space<vmem>>, vector<2x32xf32>
    %cst_72 = arith.constant dense<0.000000e+00> : vector<2x32xf32>
    %126 = tpu.matmul %125, %6, %cst_72 {dimension_numbers = #tpu.dot_dimension_numbers<[1], [0], [0], [1], [0, 0, 1, 1], [], []>} : vector<2x32xf32>, vector<32x32xf32>, vector<2x32xf32> -> vector<2x32xf32>
    %127 = vector.broadcast %12 : vector<1x32xf32> to vector<2x32xf32>
    %128 = arith.addf %126, %127 : vector<2x32xf32>
    %cst_73 = arith.constant dense<0.000000e+00> : vector<2x32xf32>
    %129 = tpu.matmul %125, %8, %cst_73 {dimension_numbers = #tpu.dot_dimension_numbers<[1], [0], [0], [1], [0, 0, 1, 1], [], []>} : vector<2x32xf32>, vector<32x32xf32>, vector<2x32xf32> -> vector<2x32xf32>
    %130 = vector.broadcast %14 : vector<1x32xf32> to vector<2x32xf32>
    %131 = arith.addf %129, %130 : vector<2x32xf32>
    %cst_74 = arith.constant dense<0.000000e+00> : vector<2x32xf32>
    %132 = tpu.matmul %125, %10, %cst_74 {dimension_numbers = #tpu.dot_dimension_numbers<[1], [0], [0], [1], [0, 0, 1, 1], [], []>} : vector<2x32xf32>, vector<32x32xf32>, vector<2x32xf32> -> vector<2x32xf32>
    %133 = vector.broadcast %16 : vector<1x32xf32> to vector<2x32xf32>
    %134 = arith.addf %132, %133 : vector<2x32xf32>
    %c0_75 = arith.constant 0 : index
    %135 = arith.index_cast %c2_i32 : i32 to index
    %c0_76 = arith.constant 0 : index
    %c0_77 = arith.constant 0 : index
    %136 = vector.load %arg2[%c0_75, %135, %c0_76, %c0_77] : memref<1x4x2x32xf32, #tpu.memory_space<vmem>>, vector<1x1x2x32xf32>
    %137 = vector.shape_cast %136 : vector<1x1x2x32xf32> to vector<2x32xf32>
    %138 = arith.addf %137, %128 : vector<2x32xf32>
    %139 = arith.negf %138 : vector<2x32xf32>
    %140 = math.exp %139 : vector<2x32xf32>
    %cst_78 = arith.constant 1.000000e+00 : f32
    %141 = vector.broadcast %cst_78 : f32 to vector<2x32xf32>
    %142 = arith.addf %141, %140 : vector<2x32xf32>
    %143 = arith.divf %141, %142 : vector<2x32xf32>
    %c0_79 = arith.constant 0 : index
    %144 = arith.index_cast %c2_i32 : i32 to index
    %c0_80 = arith.constant 0 : index
    %c0_81 = arith.constant 0 : index
    %145 = vector.load %arg3[%c0_79, %144, %c0_80, %c0_81] : memref<1x4x2x32xf32, #tpu.memory_space<vmem>>, vector<1x1x2x32xf32>
    %146 = vector.shape_cast %145 : vector<1x1x2x32xf32> to vector<2x32xf32>
    %147 = arith.addf %146, %131 : vector<2x32xf32>
    %148 = arith.negf %147 : vector<2x32xf32>
    %149 = math.exp %148 : vector<2x32xf32>
    %cst_82 = arith.constant 1.000000e+00 : f32
    %150 = vector.broadcast %cst_82 : f32 to vector<2x32xf32>
    %151 = arith.addf %150, %149 : vector<2x32xf32>
    %152 = arith.divf %150, %151 : vector<2x32xf32>
    %c0_83 = arith.constant 0 : index
    %153 = arith.index_cast %c2_i32 : i32 to index
    %c0_84 = arith.constant 0 : index
    %c0_85 = arith.constant 0 : index
    %154 = vector.load %arg4[%c0_83, %153, %c0_84, %c0_85] : memref<1x4x2x32xf32, #tpu.memory_space<vmem>>, vector<1x1x2x32xf32>
    %155 = vector.shape_cast %154 : vector<1x1x2x32xf32> to vector<2x32xf32>
    %156 = arith.mulf %143, %134 : vector<2x32xf32>
    %157 = arith.addf %155, %156 : vector<2x32xf32>
    %158 = math.tanh %157 : vector<2x32xf32>
    %cst_86 = arith.constant 1.000000e+00 : f32
    %159 = vector.broadcast %cst_86 : f32 to vector<2x32xf32>
    %160 = arith.subf %159, %152 : vector<2x32xf32>
    %161 = arith.mulf %160, %158 : vector<2x32xf32>
    %162 = arith.mulf %152, %125 : vector<2x32xf32>
    %163 = arith.addf %161, %162 : vector<2x32xf32>
    %164 = arith.addi %4, %c2_i32 : i32
    %165 = vector.broadcast %164 : i32 to vector<2x1xi32>
    %166 = arith.cmpi slt, %165, %3 : vector<2x1xi32>
    %167 = vector.shape_cast %166 : vector<2x1xi1> to vector<2x1xi1>
    %168 = vector.broadcast %167 : vector<2x1xi1> to vector<2x32xi1>
    %169 = arith.select %168, %163, %125 : vector<2x32xi1>, vector<2x32xf32>
    %c0_87 = arith.constant 0 : index
    %c0_88 = arith.constant 0 : index
    %170 = vector.load %arg11[%c0_87, %c0_88] : memref<2x32xf32, #tpu.memory_space<vmem>>, vector<2x32xf32>
    tpu.vector_store %arg11[%c0_87, %c0_88], %169 {strides = array<i32>} : memref<2x32xf32, #tpu.memory_space<vmem>>, vector<2x32xf32>,
    %cst_89 = arith.constant 0.000000e+00 : f32
    %171 = vector.shape_cast %166 : vector<2x1xi1> to vector<2x1xi1>
    %172 = vector.broadcast %171 : vector<2x1xi1> to vector<2x32xi1>
    %173 = vector.broadcast %cst_89 : f32 to vector<2x32xf32>
    %174 = arith.select %172, %163, %173 : vector<2x32xi1>, vector<2x32xf32>
    %c0_90 = arith.constant 0 : index
    %175 = arith.index_cast %c2_i32 : i32 to index
    %c0_91 = arith.constant 0 : index
    %c0_92 = arith.constant 0 : index
    %176 = vector.load %arg9[%c0_90, %175, %c0_91, %c0_92] : memref<1x4x2x32xf32, #tpu.memory_space<vmem>>, vector<1x1x2x32xf32>
    %177 = vector.shape_cast %176 : vector<1x1x2x32xf32> to vector<2x32xf32>
    %178 = vector.shape_cast %174 : vector<2x32xf32> to vector<1x1x2x32xf32>
    tpu.vector_store %arg9[%c0_90, %175, %c0_91, %c0_92], %178 {strides = array<i32>} : memref<1x4x2x32xf32, #tpu.memory_space<vmem>>, vector<1x1x2x32xf32>,
    %c3_i32 = arith.constant 3 : i32
    %c0_93 = arith.constant 0 : index
    %c0_94 = arith.constant 0 : index
    %179 = vector.load %arg11[%c0_93, %c0_94] : memref<2x32xf32, #tpu.memory_space<vmem>>, vector<2x32xf32>
    %cst_95 = arith.constant dense<0.000000e+00> : vector<2x32xf32>
    %180 = tpu.matmul %179, %6, %cst_95 {dimension_numbers = #tpu.dot_dimension_numbers<[1], [0], [0], [1], [0, 0, 1, 1], [], []>} : vector<2x32xf32>, vector<32x32xf32>, vector<2x32xf32> -> vector<2x32xf32>
    %181 = vector.broadcast %12 : vector<1x32xf32> to vector<2x32xf32>
    %182 = arith.addf %180, %181 : vector<2x32xf32>
    %cst_96 = arith.constant dense<0.000000e+00> : vector<2x32xf32>
    %183 = tpu.matmul %179, %8, %cst_96 {dimension_numbers = #tpu.dot_dimension_numbers<[1], [0], [0], [1], [0, 0, 1, 1], [], []>} : vector<2x32xf32>, vector<32x32xf32>, vector<2x32xf32> -> vector<2x32xf32>
    %184 = vector.broadcast %14 : vector<1x32xf32> to vector<2x32xf32>
    %185 = arith.addf %183, %184 : vector<2x32xf32>
    %cst_97 = arith.constant dense<0.000000e+00> : vector<2x32xf32>
    %186 = tpu.matmul %179, %10, %cst_97 {dimension_numbers = #tpu.dot_dimension_numbers<[1], [0], [0], [1], [0, 0, 1, 1], [], []>} : vector<2x32xf32>, vector<32x32xf32>, vector<2x32xf32> -> vector<2x32xf32>
    %187 = vector.broadcast %16 : vector<1x32xf32> to vector<2x32xf32>
    %188 = arith.addf %186, %187 : vector<2x32xf32>
    %c0_98 = arith.constant 0 : index
    %189 = arith.index_cast %c3_i32 : i32 to index
    %c0_99 = arith.constant 0 : index
    %c0_100 = arith.constant 0 : index
    %190 = vector.load %arg2[%c0_98, %189, %c0_99, %c0_100] : memref<1x4x2x32xf32, #tpu.memory_space<vmem>>, vector<1x1x2x32xf32>
    %191 = vector.shape_cast %190 : vector<1x1x2x32xf32> to vector<2x32xf32>
    %192 = arith.addf %191, %182 : vector<2x32xf32>
    %193 = arith.negf %192 : vector<2x32xf32>
    %194 = math.exp %193 : vector<2x32xf32>
    %cst_101 = arith.constant 1.000000e+00 : f32
    %195 = vector.broadcast %cst_101 : f32 to vector<2x32xf32>
    %196 = arith.addf %195, %194 : vector<2x32xf32>
    %197 = arith.divf %195, %196 : vector<2x32xf32>
    %c0_102 = arith.constant 0 : index
    %198 = arith.index_cast %c3_i32 : i32 to index
    %c0_103 = arith.constant 0 : index
    %c0_104 = arith.constant 0 : index
    %199 = vector.load %arg3[%c0_102, %198, %c0_103, %c0_104] : memref<1x4x2x32xf32, #tpu.memory_space<vmem>>, vector<1x1x2x32xf32>
    %200 = vector.shape_cast %199 : vector<1x1x2x32xf32> to vector<2x32xf32>
    %201 = arith.addf %200, %185 : vector<2x32xf32>
    %202 = arith.negf %201 : vector<2x32xf32>
    %203 = math.exp %202 : vector<2x32xf32>
    %cst_105 = arith.constant 1.000000e+00 : f32
    %204 = vector.broadcast %cst_105 : f32 to vector<2x32xf32>
    %205 = arith.addf %204, %203 : vector<2x32xf32>
    %206 = arith.divf %204, %205 : vector<2x32xf32>
    %c0_106 = arith.constant 0 : index
    %207 = arith.index_cast %c3_i32 : i32 to index
    %c0_107 = arith.constant 0 : index
    %c0_108 = arith.constant 0 : index
    %208 = vector.load %arg4[%c0_106, %207, %c0_107, %c0_108] : memref<1x4x2x32xf32, #tpu.memory_space<vmem>>, vector<1x1x2x32xf32>
    %209 = vector.shape_cast %208 : vector<1x1x2x32xf32> to vector<2x32xf32>
    %210 = arith.mulf %197, %188 : vector<2x32xf32>
    %211 = arith.addf %209, %210 : vector<2x32xf32>
    %212 = math.tanh %211 : vector<2x32xf32>
    %cst_109 = arith.constant 1.000000e+00 : f32
    %213 = vector.broadcast %cst_109 : f32 to vector<2x32xf32>
    %214 = arith.subf %213, %206 : vector<2x32xf32>
    %215 = arith.mulf %214, %212 : vector<2x32xf32>
    %216 = arith.mulf %206, %179 : vector<2x32xf32>
    %217 = arith.addf %215, %216 : vector<2x32xf32>
    %218 = arith.addi %4, %c3_i32 : i32
    %219 = vector.broadcast %218 : i32 to vector<2x1xi32>
    %220 = arith.cmpi slt, %219, %3 : vector<2x1xi32>
    %221 = vector.shape_cast %220 : vector<2x1xi1> to vector<2x1xi1>
    %222 = vector.broadcast %221 : vector<2x1xi1> to vector<2x32xi1>
    %223 = arith.select %222, %217, %179 : vector<2x32xi1>, vector<2x32xf32>
    %c0_110 = arith.constant 0 : index
    %c0_111 = arith.constant 0 : index
    %224 = vector.load %arg11[%c0_110, %c0_111] : memref<2x32xf32, #tpu.memory_space<vmem>>, vector<2x32xf32>
    tpu.vector_store %arg11[%c0_110, %c0_111], %223 {strides = array<i32>} : memref<2x32xf32, #tpu.memory_space<vmem>>, vector<2x32xf32>,
    %cst_112 = arith.constant 0.000000e+00 : f32
    %225 = vector.shape_cast %220 : vector<2x1xi1> to vector<2x1xi1>
    %226 = vector.broadcast %225 : vector<2x1xi1> to vector<2x32xi1>
    %227 = vector.broadcast %cst_112 : f32 to vector<2x32xf32>
    %228 = arith.select %226, %217, %227 : vector<2x32xi1>, vector<2x32xf32>
    %c0_113 = arith.constant 0 : index
    %229 = arith.index_cast %c3_i32 : i32 to index
    %c0_114 = arith.constant 0 : index
    %c0_115 = arith.constant 0 : index
    %230 = vector.load %arg9[%c0_113, %229, %c0_114, %c0_115] : memref<1x4x2x32xf32, #tpu.memory_space<vmem>>, vector<1x1x2x32xf32>
    %231 = vector.shape_cast %230 : vector<1x1x2x32xf32> to vector<2x32xf32>
    %232 = vector.shape_cast %228 : vector<2x32xf32> to vector<1x1x2x32xf32>
    tpu.vector_store %arg9[%c0_113, %229, %c0_114, %c0_115], %232 {strides = array<i32>} : memref<1x4x2x32xf32, #tpu.memory_space<vmem>>, vector<1x1x2x32xf32>,
    %c4_i32_116 = arith.constant 4 : i32
    %c0_117 = arith.constant 0 : index
    %c0_118 = arith.constant 0 : index
    %233 = vector.load %arg11[%c0_117, %c0_118] : memref<2x32xf32, #tpu.memory_space<vmem>>, vector<2x32xf32>
    %c0_119 = arith.constant 0 : index
    %c0_120 = arith.constant 0 : index
    %c0_121 = arith.constant 0 : index
    %234 = vector.load %arg10[%c0_119, %c0_120, %c0_121] : memref<1x2x32xf32, #tpu.memory_space<vmem>>, vector<1x2x32xf32>
    %235 = vector.shape_cast %234 : vector<1x2x32xf32> to vector<2x32xf32>
    %236 = vector.shape_cast %233 : vector<2x32xf32> to vector<1x2x32xf32>
    tpu.vector_store %arg10[%c0_119, %c0_120, %c0_121], %236 {strides = array<i32>} : memref<1x2x32xf32, #tpu.memory_space<vmem>>, vector<1x2x32xf32>,
    return
  }
  func.func @transform_0(%arg0: i32, %arg1: i32) -> (i32, i32, i32, i32) {
    %c0_i32 = arith.constant 0 : i32
    %c0_i32_0 = arith.constant 0 : i32
    %c0_i32_1 = arith.constant 0 : i32
    return %arg0, %arg1, %c0_i32, %c0_i32_0 : i32, i32, i32, i32
  }
  func.func @transform_1(%arg0: i32, %arg1: i32) -> (i32, i32, i32, i32) {
    %c0_i32 = arith.constant 0 : i32
    %c0_i32_0 = arith.constant 0 : i32
    %c0_i32_1 = arith.constant 0 : i32
    return %arg0, %arg1, %c0_i32, %c0_i32_0 : i32, i32, i32, i32
  }
  func.func @transform_2(%arg0: i32, %arg1: i32) -> (i32, i32, i32, i32) {
    %c0_i32 = arith.constant 0 : i32
    %c0_i32_0 = arith.constant 0 : i32
    %c0_i32_1 = arith.constant 0 : i32
    return %arg0, %arg1, %c0_i32, %c0_i32_0 : i32, i32, i32, i32
  }
  func.func @transform_3(%arg0: i32, %arg1: i32) -> (i32, i32, i32) {
    %c0_i32 = arith.constant 0 : i32
    %c0_i32_0 = arith.constant 0 : i32
    %c0_i32_1 = arith.constant 0 : i32
    return %arg0, %c0_i32, %c0_i32_0 : i32, i32, i32
  }
  func.func @transform_4(%arg0: i32, %arg1: i32) -> (i32, i32) {
    %c0_i32 = arith.constant 0 : i32
    %c0_i32_0 = arith.constant 0 : i32
    %c0_i32_1 = arith.constant 0 : i32
    return %c0_i32, %c0_i32_0 : i32, i32
  }
  func.func @transform_5(%arg0: i32, %arg1: i32) -> (i32, i32, i32, i32) {
    %c0_i32 = arith.constant 0 : i32
    %c0_i32_0 = arith.constant 0 : i32
    %c0_i32_1 = arith.constant 0 : i32
    %c0_i32_2 = arith.constant 0 : i32
    return %arg0, %c0_i32, %c0_i32_0, %c0_i32_1 : i32, i32, i32, i32
  }
  func.func @transform_6(%arg0: i32, %arg1: i32) -> (i32, i32, i32, i32) {
    %c0_i32 = arith.constant 0 : i32
    %c0_i32_0 = arith.constant 0 : i32
    %c0_i32_1 = arith.constant 0 : i32
    %c0_i32_2 = arith.constant 0 : i32
    return %arg0, %c0_i32, %c0_i32_0, %c0_i32_1 : i32, i32, i32, i32
  }
  func.func @transform_7(%arg0: i32, %arg1: i32) -> (i32, i32, i32, i32) {
    %c0_i32 = arith.constant 0 : i32
    %c0_i32_0 = arith.constant 0 : i32
    %c0_i32_1 = arith.constant 0 : i32
    return %arg0, %arg1, %c0_i32, %c0_i32_0 : i32, i32, i32, i32
  }
  func.func @transform_8(%arg0: i32, %arg1: i32) -> (i32, i32, i32) {
    %c0_i32 = arith.constant 0 : i32
    %c0_i32_0 = arith.constant 0 : i32
    %c0_i32_1 = arith.constant 0 : i32
    return %arg0, %c0_i32, %c0_i32_0 : i32, i32, i32
  }
}

module attributes {stable_mosaic.version = 11 : i64} {
  func.func @vocab_head_kernel(%arg0: i32, %arg1: memref<16x32xf32, #tpu.memory_space<vmem>>, %arg2: memref<32x60xf32, #tpu.memory_space<vmem>>, %arg3: memref<1x60xf32, #tpu.memory_space<vmem>>, %arg4: memref<16x60xf32, #tpu.memory_space<vmem>>) attributes {dimension_semantics = [#tpu.dimension_semantics<parallel>], iteration_bounds = array<i64: 1>, scalar_prefetch = 0 : i64, scratch_operands = 0 : i64, tpu.core_type = #tpu.core_type<tc>, window_params = [{transform_indices = @transform_0, window_bounds = array<i64: 16, 32>}, {pipeline_mode = #tpu.pipeline_mode<synchronous>, transform_indices = @transform_1, window_bounds = array<i64: 32, 60>}, {pipeline_mode = #tpu.pipeline_mode<synchronous>, transform_indices = @transform_2, window_bounds = array<i64: 1, 60>}, {transform_indices = @transform_3, window_bounds = array<i64: 16, 60>}]} {
    %c0 = arith.constant 0 : index
    %c0_0 = arith.constant 0 : index
    %0 = vector.load %arg1[%c0, %c0_0] : memref<16x32xf32, #tpu.memory_space<vmem>>, vector<16x32xf32>
    %c0_1 = arith.constant 0 : index
    %c0_2 = arith.constant 0 : index
    %1 = vector.load %arg2[%c0_1, %c0_2] : memref<32x60xf32, #tpu.memory_space<vmem>>, vector<32x60xf32>
    %cst = arith.constant dense<0.000000e+00> : vector<16x60xf32>
    %2 = tpu.matmul %0, %1, %cst {dimension_numbers = #tpu.dot_dimension_numbers<[1], [0], [0], [1], [0, 0, 1, 1], [], []>} : vector<16x32xf32>, vector<32x60xf32>, vector<16x60xf32> -> vector<16x60xf32>
    %c0_3 = arith.constant 0 : index
    %c0_4 = arith.constant 0 : index
    %3 = vector.load %arg3[%c0_3, %c0_4] : memref<1x60xf32, #tpu.memory_space<vmem>>, vector<1x60xf32>
    %4 = vector.broadcast %3 : vector<1x60xf32> to vector<16x60xf32>
    %5 = arith.addf %2, %4 : vector<16x60xf32>
    %cst_5 = arith.constant dense<0xFF800000> : vector<16xf32>
    %6 = vector.multi_reduction <maximumf>, %5, %cst_5 [1] : vector<16x60xf32> to vector<16xf32>
    %7 = vector.shape_cast %6 : vector<16xf32> to vector<16x1xf32>
    %8 = vector.broadcast %7 : vector<16x1xf32> to vector<16x60xf32>
    %9 = arith.subf %5, %8 : vector<16x60xf32>
    %10 = math.exp %9 : vector<16x60xf32>
    %cst_6 = arith.constant dense<0.000000e+00> : vector<16xf32>
    %11 = vector.multi_reduction <add>, %10, %cst_6 [1] : vector<16x60xf32> to vector<16xf32>
    %12 = vector.shape_cast %11 : vector<16xf32> to vector<16x1xf32>
    %13 = math.log %12 : vector<16x1xf32>
    %14 = vector.broadcast %13 : vector<16x1xf32> to vector<16x60xf32>
    %15 = arith.subf %9, %14 : vector<16x60xf32>
    %c0_7 = arith.constant 0 : index
    %c0_8 = arith.constant 0 : index
    %16 = vector.load %arg4[%c0_7, %c0_8] : memref<16x60xf32, #tpu.memory_space<vmem>>, vector<16x60xf32>
    tpu.vector_store %arg4[%c0_7, %c0_8], %15 {strides = array<i32>} : memref<16x60xf32, #tpu.memory_space<vmem>>, vector<16x60xf32>,
    return
  }
  func.func @transform_0(%arg0: i32) -> (i32, i32) {
    %c0_i32 = arith.constant 0 : i32
    %c0_i32_0 = arith.constant 0 : i32
    return %arg0, %c0_i32 : i32, i32
  }
  func.func @transform_1(%arg0: i32) -> (i32, i32) {
    %c0_i32 = arith.constant 0 : i32
    %c0_i32_0 = arith.constant 0 : i32
    %c0_i32_1 = arith.constant 0 : i32
    return %c0_i32, %c0_i32_0 : i32, i32
  }
  func.func @transform_2(%arg0: i32) -> (i32, i32) {
    %c0_i32 = arith.constant 0 : i32
    %c0_i32_0 = arith.constant 0 : i32
    %c0_i32_1 = arith.constant 0 : i32
    return %c0_i32, %c0_i32_0 : i32, i32
  }
  func.func @transform_3(%arg0: i32) -> (i32, i32) {
    %c0_i32 = arith.constant 0 : i32
    %c0_i32_0 = arith.constant 0 : i32
    return %arg0, %c0_i32 : i32, i32
  }
}

module attributes {stable_mosaic.version = 11 : i64} {
  func.func @attn_context_kernel(%arg0: i32, %arg1: memref<1x8x32xf32, #tpu.memory_space<vmem>>, %arg2: memref<1x8x64xf32, #tpu.memory_space<vmem>>, %arg3: memref<64x32xf32, #tpu.memory_space<vmem>>, %arg4: memref<64x32xf32, #tpu.memory_space<vmem>>, %arg5: memref<32x32xf32, #tpu.memory_space<vmem>>, %arg6: memref<1x32xf32, #tpu.memory_space<vmem>>, %arg7: memref<8x32xf32, #tpu.memory_space<vmem>>) attributes {dimension_semantics = [#tpu.dimension_semantics<parallel>], iteration_bounds = array<i64: 2>, scalar_prefetch = 0 : i64, scratch_operands = 0 : i64, tpu.core_type = #tpu.core_type<tc>, window_params = [{transform_indices = @transform_0, window_bounds = array<i64: 1, 8, 32>}, {transform_indices = @transform_1, window_bounds = array<i64: 1, 8, 64>}, {pipeline_mode = #tpu.pipeline_mode<synchronous>, transform_indices = @transform_2, window_bounds = array<i64: 64, 32>}, {pipeline_mode = #tpu.pipeline_mode<synchronous>, transform_indices = @transform_3, window_bounds = array<i64: 64, 32>}, {pipeline_mode = #tpu.pipeline_mode<synchronous>, transform_indices = @transform_4, window_bounds = array<i64: 32, 32>}, {pipeline_mode = #tpu.pipeline_mode<synchronous>, transform_indices = @transform_5, window_bounds = array<i64: 1, 32>}, {transform_indices = @transform_6, window_bounds = array<i64: 8, 32>}]} {
    %c0 = arith.constant 0 : index
    %c0_0 = arith.constant 0 : index
    %c0_1 = arith.constant 0 : index
    %0 = vector.load %arg1[%c0, %c0_0, %c0_1] : memref<1x8x32xf32, #tpu.memory_space<vmem>>, vector<1x8x32xf32>
    %1 = vector.shape_cast %0 : vector<1x8x32xf32> to vector<8x32xf32>
    %c0_2 = arith.constant 0 : index
    %c0_3 = arith.constant 0 : index
    %c0_4 = arith.constant 0 : index
    %2 = vector.load %arg2[%c0_2, %c0_3, %c0_4] : memref<1x8x64xf32, #tpu.memory_space<vmem>>, vector<1x8x64xf32>
    %3 = vector.shape_cast %2 : vector<1x8x64xf32> to vector<8x64xf32>
    %c0_5 = arith.constant 0 : index
    %c0_6 = arith.constant 0 : index
    %4 = vector.load %arg3[%c0_5, %c0_6] : memref<64x32xf32, #tpu.memory_space<vmem>>, vector<64x32xf32>
    %cst = arith.constant dense<0.000000e+00> : vector<8x32xf32>
    %5 = tpu.matmul %3, %4, %cst {dimension_numbers = #tpu.dot_dimension_numbers<[1], [0], [0], [1], [0, 0, 1, 1], [], []>} : vector<8x64xf32>, vector<64x32xf32>, vector<8x32xf32> -> vector<8x32xf32>
    %cst_7 = arith.constant dense<0.000000e+00> : vector<8x8xf32>
    %6 = tpu.matmul %1, %5, %cst_7 {dimension_numbers = #tpu.dot_dimension_numbers<[1], [1], [0], [0], [0, 0, 1, 0], [], []>} : vector<8x32xf32>, vector<8x32xf32>, vector<8x8xf32> -> vector<8x8xf32>
    %cst_8 = arith.constant dense<0xFF800000> : vector<8xf32>
    %7 = vector.multi_reduction <maximumf>, %6, %cst_8 [1] : vector<8x8xf32> to vector<8xf32>
    %8 = vector.shape_cast %7 : vector<8xf32> to vector<8x1xf32>
    %9 = vector.broadcast %8 : vector<8x1xf32> to vector<8x8xf32>
    %10 = arith.subf %6, %9 : vector<8x8xf32>
    %11 = math.exp %10 : vector<8x8xf32>
    %cst_9 = arith.constant dense<0.000000e+00> : vector<8xf32>
    %12 = vector.multi_reduction <add>, %11, %cst_9 [1] : vector<8x8xf32> to vector<8xf32>
    %13 = vector.shape_cast %12 : vector<8xf32> to vector<8x1xf32>
    %14 = vector.broadcast %13 : vector<8x1xf32> to vector<8x8xf32>
    %15 = arith.divf %11, %14 : vector<8x8xf32>
    %cst_10 = arith.constant dense<0.000000e+00> : vector<8x64xf32>
    %16 = tpu.matmul %15, %3, %cst_10 {dimension_numbers = #tpu.dot_dimension_numbers<[1], [0], [0], [1], [0, 0, 1, 1], [], []>} : vector<8x8xf32>, vector<8x64xf32>, vector<8x64xf32> -> vector<8x64xf32>
    %c0_11 = arith.constant 0 : index
    %c0_12 = arith.constant 0 : index
    %17 = vector.load %arg4[%c0_11, %c0_12] : memref<64x32xf32, #tpu.memory_space<vmem>>, vector<64x32xf32>
    %cst_13 = arith.constant dense<0.000000e+00> : vector<8x32xf32>
    %18 = tpu.matmul %16, %17, %cst_13 {dimension_numbers = #tpu.dot_dimension_numbers<[1], [0], [0], [1], [0, 0, 1, 1], [], []>} : vector<8x64xf32>, vector<64x32xf32>, vector<8x32xf32> -> vector<8x32xf32>
    %c0_14 = arith.constant 0 : index
    %c0_15 = arith.constant 0 : index
    %19 = vector.load %arg5[%c0_14, %c0_15] : memref<32x32xf32, #tpu.memory_space<vmem>>, vector<32x32xf32>
    %cst_16 = arith.constant dense<0.000000e+00> : vector<8x32xf32>
    %20 = tpu.matmul %1, %19, %cst_16 {dimension_numbers = #tpu.dot_dimension_numbers<[1], [0], [0], [1], [0, 0, 1, 1], [], []>} : vector<8x32xf32>, vector<32x32xf32>, vector<8x32xf32> -> vector<8x32xf32>
    %21 = arith.addf %18, %20 : vector<8x32xf32>
    %c0_17 = arith.constant 0 : index
    %c0_18 = arith.constant 0 : index
    %22 = vector.load %arg6[%c0_17, %c0_18] : memref<1x32xf32, #tpu.memory_space<vmem>>, vector<1x32xf32>
    %23 = vector.broadcast %22 : vector<1x32xf32> to vector<8x32xf32>
    %24 = arith.addf %21, %23 : vector<8x32xf32>
    %25 = math.tanh %24 : vector<8x32xf32>
    %c0_19 = arith.constant 0 : index
    %c0_20 = arith.constant 0 : index
    %26 = vector.load %arg7[%c0_19, %c0_20] : memref<8x32xf32, #tpu.memory_space<vmem>>, vector<8x32xf32>
    tpu.vector_store %arg7[%c0_19, %c0_20], %25 {strides = array<i32>} : memref<8x32xf32, #tpu.memory_space<vmem>>, vector<8x32xf32>,
    return
  }
  func.func @transform_0(%arg0: i32) -> (i32, i32, i32) {
    %c0_i32 = arith.constant 0 : i32
    %c0_i32_0 = arith.constant 0 : i32
    %c0_i32_1 = arith.constant 0 : i32
    return %arg0, %c0_i32, %c0_i32_0 : i32, i32, i32
  }
  func.func @transform_1(%arg0: i32) -> (i32, i32, i32) {
    %c0_i32 = arith.constant 0 : i32
    %c0_i32_0 = arith.constant 0 : i32
    %c0_i32_1 = arith.constant 0 : i32
    return %arg0, %c0_i32, %c0_i32_0 : i32, i32, i32
  }
  func.func @transform_2(%arg0: i32) -> (i32, i32) {
    %c0_i32 = arith.constant 0 : i32
    %c0_i32_0 = arith.constant 0 : i32
    %c0_i32_1 = arith.constant 0 : i32
    return %c0_i32, %c0_i32_0 : i32, i32
  }
  func.func @transform_3(%arg0: i32) -> (i32, i32) {
    %c0_i32 = arith.constant 0 : i32
    %c0_i32_0 = arith.constant 0 : i32
    %c0_i32_1 = arith.constant 0 : i32
    return %c0_i32, %c0_i32_0 : i32, i32
  }
  func.func @transform_4(%arg0: i32) -> (i32, i32) {
    %c0_i32 = arith.constant 0 : i32
    %c0_i32_0 = arith.constant 0 : i32
    %c0_i32_1 = arith.constant 0 : i32
    return %c0_i32, %c0_i32_0 : i32, i32
  }
  func.func @transform_5(%arg0: i32) -> (i32, i32) {
    %c0_i32 = arith.constant 0 : i32
    %c0_i32_0 = arith.constant 0 : i32
    %c0_i32_1 = arith.constant 0 : i32
    return %c0_i32, %c0_i32_0 : i32, i32
  }
  func.func @transform_6(%arg0: i32) -> (i32, i32) {
    %c0_i32 = arith.constant 0 : i32
    %c0_i32_0 = arith.constant 0 : i32
    return %arg0, %c0_i32 : i32, i32
  }
}

</mosaic_0001>

<llo_original>
// kernel: plain_seq2seq_forward.4
$region0: #{plain_seq2seq_forward.4}
  #allocation0 [shape = 'u32[]', space=smem, size = 0x4, offset = 0x4, fixed_abs, tag = 'smem constant byte address 0x4 - core index']
  #allocation1 [shape = 'u32[144,128]{1,0:T(1,128)}', space=vmem, size = 0x12000, scoped, tag = 'internal scratch']
  #allocation2 [shape = 'f32[2,32]{1,0:T(2,128)}', space=vmem, size = 0x400, scoped, tag = 'scratch operand']
  %s0 = inlined_call_operand.vmem [shape: f32[2,8,2,32], index: 0, kind: input, shape index: {}]
  %s1 = inlined_call_operand.vmem [shape: f32[2,8,2,32], index: 1, kind: input, shape index: {}]
  %s2 = inlined_call_operand.vmem [shape: f32[2,8,2,32], index: 2, kind: input, shape index: {}]
  %s3 = inlined_call_operand.vmem [shape: f32[2,2,32], index: 3, kind: input, shape index: {}]
  %s4 = inlined_call_operand.vmem [shape: s32[2,1], index: 4, kind: input, shape index: {}]
  %s5 = inlined_call_operand.vmem [shape: f32[2,3,32,32], index: 5, kind: input, shape index: {}]
  %s6 = inlined_call_operand.vmem [shape: f32[2,3,1,32], index: 6, kind: input, shape index: {}]
  %s7 = inlined_call_operand.vmem [shape: f32[2,8,2,32], index: 7, kind: output, shape index: {0}]
  %s8 = inlined_call_operand.vmem [shape: f32[2,2,32], index: 8, kind: output, shape index: {1}]
  %9 = xla_tuple %s7, %s8
  %s10 = sld [smem:[#allocation0]]
  $region73: #{plain_seq2seq_forward.4} parent=0
    _
  %s12 = ssub.s32 1, %s10
  %s13 = scalar_select 0, %s12, %s10
  loop: start=0, step=1, limit=6
  $region2: #{plain_seq2seq_forward.4} parent=0 // loop_pre_header
    _
  $region3: #{plain_seq2seq_forward.4} parent=0 // loop_header
    %s15 = sphi 0, %s19
    %p16 = scmp.ge.s32.totalorder %s15, 6
    %s22 = sphi 0, %s34
    %s23 = sphi 0, %s30
    %s24 = sphi 0, %s22
    %s25 = sphi 0, %s23
    %s26 = sphi 0, %s24
    %s27 = sphi 0, %s25
    %s39 = sphi 0, %s41
    %s42 = sphi 0, %s39
    %s43 = sphi 0, %s42
    %s59 = sphi 0, %s43
    %s67 = sphi 0, %s69
    %s70 = sphi 0, %s67
    %s71 = sphi 0, %s70
    %s87 = sphi 0, %s71
    %s95 = sphi 0, %s97
    %s98 = sphi 0, %s95
    %s99 = sphi 0, %s98
    %s115 = sphi 0, %s99
    %s121 = sphi 0, %s123
    %s124 = sphi 0, %s121
    %s125 = sphi 0, %s124
    %s141 = sphi 0, %s125
    %s145 = sphi 0, %s145
    %s147 = sphi 0, %s145
    %s148 = sphi 0, %s147
    %s162 = sphi 0, %s148
    %s168 = sphi 0, %s170
    %s171 = sphi 0, %s168
    %s172 = sphi 0, %s171
    %s188 = sphi 0, %s172
    %s194 = sphi 0, %s196
    %s197 = sphi 0, %s194
    %s198 = sphi 0, %s197
    %s214 = sphi 0, %s198
    %s222 = sphi 0, %s224
    %s225 = sphi 0, %s222
    %s226 = sphi 0, %s225
    %s242 = sphi 0, %s226
    %s248 = sphi 0, %s250
    %s251 = sphi 0, %s248
    %s252 = sphi 0, %s251
    %s268 = sphi 0, %s252
  $region4: #{plain_seq2seq_forward.4} parent=0 // loop_header_branch
    %18 = sbr.rel (%p16) target = $region8
  $region5: #{plain_seq2seq_forward.4} parent=0 // loop_body
    %s20 = ssub.s32 %s15, 1
    %s21 = ssub.s32 %s15, 2
    %s28 = sadd.s32 1, %s23
    %p29 = scmp.ge.s32.totalorder %s28, 2
    %s30 = scalar_select %p29, 0, %s28
    %s31 = sadd.s32 1, %s22
    %s32 = scalar_select %p29, %s31, %s22
    %p33 = scmp.ge.s32.totalorder %s32, 2
    %s34 = scalar_select %p33, 0, %s32
    %s35 = ssub.s32 %s22, %s34
    %s36 = ssub.s32 %s23, %s30
    %s37 = sor.u32 %s35, %s36
    %p38 = scmp.eq.s32.totalorder %s37, 0
    %s40 = sadd.s32 %s39, 1
    %s41 = scalar_select %p38, %s39, %s40
    %p44 = pneg %p38
    %p45 = scmp.eq.s32.totalorder %s15, 3
    %p46 = por %p44, %p45
    %p47 = scmp.ne.s32.totalorder %s39, %s42
    %p48 = scmp.eq.s32.totalorder %s15, 0
    %p49 = por %p47, %p48
    %p50 = scmp.ne.s32.totalorder %s39, %s42
    %p51 = scmp.eq.s32.totalorder %s20, 3
    %p52 = por %p50, %p51
    %p53 = scmp.ne.s32.totalorder %s42, %s43
    %p54 = scmp.eq.s32.totalorder %s20, 0
    %p55 = por %p53, %p54
    %p56 = scmp.ne.s32.totalorder %s42, %s43
    %p57 = scmp.eq.s32.totalorder %s21, 3
    %p58 = por %p56, %p57
    %p60 = scmp.ne.s32.totalorder %s43, %s59
    %p61 = scmp.eq.s32.totalorder %s21, 0
    %p62 = por %p60, %p61
    %s63 = ssub.s32 %s22, %s34
    %s64 = ssub.s32 %s23, %s30
    %s65 = sor.u32 %s63, %s64
    %p66 = scmp.eq.s32.totalorder %s65, 0
    %s68 = sadd.s32 %s67, 1
    %s69 = scalar_select %p66, %s67, %s68
    %p72 = pneg %p66
    %p73 = scmp.eq.s32.totalorder %s15, 3
    %p74 = por %p72, %p73
    %p75 = scmp.ne.s32.totalorder %s67, %s70
    %p76 = scmp.eq.s32.totalorder %s15, 0
    %p77 = por %p75, %p76
    %p78 = scmp.ne.s32.totalorder %s67, %s70
    %p79 = scmp.eq.s32.totalorder %s20, 3
    %p80 = por %p78, %p79
    %p81 = scmp.ne.s32.totalorder %s70, %s71
    %p82 = scmp.eq.s32.totalorder %s20, 0
    %p83 = por %p81, %p82
    %p84 = scmp.ne.s32.totalorder %s70, %s71
    %p85 = scmp.eq.s32.totalorder %s21, 3
    %p86 = por %p84, %p85
    %p88 = scmp.ne.s32.totalorder %s71, %s87
    %p89 = scmp.eq.s32.totalorder %s21, 0
    %p90 = por %p88, %p89
    %s91 = ssub.s32 %s22, %s34
    %s92 = ssub.s32 %s23, %s30
    %s93 = sor.u32 %s91, %s92
    %p94 = scmp.eq.s32.totalorder %s93, 0
    %s96 = sadd.s32 %s95, 1
    %s97 = scalar_select %p94, %s95, %s96
    %p100 = pneg %p94
    %p101 = scmp.eq.s32.totalorder %s15, 3
    %p102 = por %p100, %p101
    %p103 = scmp.ne.s32.totalorder %s95, %s98
    %p104 = scmp.eq.s32.totalorder %s15, 0
    %p105 = por %p103, %p104
    %p106 = scmp.ne.s32.totalorder %s95, %s98
    %p107 = scmp.eq.s32.totalorder %s20, 3
    %p108 = por %p106, %p107
    %p109 = scmp.ne.s32.totalorder %s98, %s99
    %p110 = scmp.eq.s32.totalorder %s20, 0
    %p111 = por %p109, %p110
    %p112 = scmp.ne.s32.totalorder %s98, %s99
    %p113 = scmp.eq.s32.totalorder %s21, 3
    %p114 = por %p112, %p113
    %p116 = scmp.ne.s32.totalorder %s99, %s115
    %p117 = scmp.eq.s32.totalorder %s21, 0
    %p118 = por %p116, %p117
    %s119 = ssub.s32 %s22, %s34
    %p120 = scmp.eq.s32.totalorder %s119, 0
    %s122 = sadd.s32 %s121, 1
    %s123 = scalar_select %p120, %s121, %s122
    %p126 = pneg %p120
    %p127 = scmp.eq.s32.totalorder %s15, 3
    %p128 = por %p126, %p127
    %p129 = scmp.ne.s32.totalorder %s121, %s124
    %p130 = scmp.eq.s32.totalorder %s15, 0
    %p131 = por %p129, %p130
    %p132 = scmp.ne.s32.totalorder %s121, %s124
    %p133 = scmp.eq.s32.totalorder %s20, 3
    %p134 = por %p132, %p133
    %p135 = scmp.ne.s32.totalorder %s124, %s125
    %p136 = scmp.eq.s32.totalorder %s20, 0
    %p137 = por %p135, %p136
    %p138 = scmp.ne.s32.totalorder %s124, %s125
    %p139 = scmp.eq.s32.totalorder %s21, 3
    %p140 = por %p138, %p139
    %p142 = scmp.ne.s32.totalorder %s125, %s141
    %p143 = scmp.eq.s32.totalorder %s21, 0
    %p144 = por %p142, %p143
    %s146 = sadd.s32 %s145, 1
    %p149 = scmp.eq.s32.totalorder %s15, 3
    %p150 = scmp.ne.s32.totalorder %s145, %s147
    %p151 = scmp.eq.s32.totalorder %s15, 0
    %p152 = por %p150, %p151
    %p153 = scmp.ne.s32.totalorder %s145, %s147
    %p154 = scmp.eq.s32.totalorder %s20, 3
    %p155 = por %p153, %p154
    %p156 = scmp.ne.s32.totalorder %s147, %s148
    %p157 = scmp.eq.s32.totalorder %s20, 0
    %p158 = por %p156, %p157
    %p159 = scmp.ne.s32.totalorder %s147, %s148
    %p160 = scmp.eq.s32.totalorder %s21, 3
    %p161 = por %p159, %p160
    %p163 = scmp.ne.s32.totalorder %s148, %s162
    %p164 = scmp.eq.s32.totalorder %s21, 0
    %p165 = por %p163, %p164
    %s166 = ssub.s32 %s22, %s34
    %p167 = scmp.eq.s32.totalorder %s166, 0
    %s169 = sadd.s32 %s168, 1
    %s170 = scalar_select %p167, %s168, %s169
    %p173 = pneg %p167
    %p174 = scmp.eq.s32.totalorder %s15, 3
    %p175 = por %p173, %p174
    %p176 = scmp.ne.s32.totalorder %s168, %s171
    %p177 = scmp.eq.s32.totalorder %s15, 0
    %p178 = por %p176, %p177
    %p179 = scmp.ne.s32.totalorder %s168, %s171
    %p180 = scmp.eq.s32.totalorder %s20, 3
    %p181 = por %p179, %p180
    %p182 = scmp.ne.s32.totalorder %s171, %s172
    %p183 = scmp.eq.s32.totalorder %s20, 0
    %p184 = por %p182, %p183
    %p185 = scmp.ne.s32.totalorder %s171, %s172
    %p186 = scmp.eq.s32.totalorder %s21, 3
    %p187 = por %p185, %p186
    %p189 = scmp.ne.s32.totalorder %s172, %s188
    %p190 = scmp.eq.s32.totalorder %s21, 0
    %p191 = por %p189, %p190
    %s192 = ssub.s32 %s22, %s34
    %p193 = scmp.eq.s32.totalorder %s192, 0
    %s195 = sadd.s32 %s194, 1
    %s196 = scalar_select %p193, %s194, %s195
    %p199 = pneg %p193
    %p200 = scmp.eq.s32.totalorder %s15, 3
    %p201 = por %p199, %p200
    %p202 = scmp.ne.s32.totalorder %s194, %s197
    %p203 = scmp.eq.s32.totalorder %s15, 0
    %p204 = por %p202, %p203
    %p205 = scmp.ne.s32.totalorder %s194, %s197
    %p206 = scmp.eq.s32.totalorder %s20, 3
    %p207 = por %p205, %p206
    %p208 = scmp.ne.s32.totalorder %s197, %s198
    %p209 = scmp.eq.s32.totalorder %s20, 0
    %p210 = por %p208, %p209
    %p211 = scmp.ne.s32.totalorder %s197, %s198
    %p212 = scmp.eq.s32.totalorder %s21, 3
    %p213 = por %p211, %p212
    %p215 = scmp.ne.s32.totalorder %s198, %s214
    %p216 = scmp.eq.s32.totalorder %s21, 0
    %p217 = por %p215, %p216
    %s218 = ssub.s32 %s22, %s34
    %s219 = ssub.s32 %s23, %s30
    %s220 = sor.u32 %s218, %s219
    %p221 = scmp.eq.s32.totalorder %s220, 0
    %s223 = sadd.s32 %s222, 1
    %s224 = scalar_select %p221, %s222, %s223
    %p227 = pneg %p221
    %p228 = scmp.eq.s32.totalorder %s15, 3
    %p229 = por %p227, %p228
    %p230 = scmp.ne.s32.totalorder %s222, %s225
    %p231 = scmp.eq.s32.totalorder %s15, 0
    %p232 = por %p230, %p231
    %p233 = scmp.ne.s32.totalorder %s222, %s225
    %p234 = scmp.eq.s32.totalorder %s20, 3
    %p235 = por %p233, %p234
    %p236 = scmp.ne.s32.totalorder %s225, %s226
    %p237 = scmp.eq.s32.totalorder %s20, 0
    %p238 = por %p236, %p237
    %p239 = scmp.ne.s32.totalorder %s225, %s226
    %p240 = scmp.eq.s32.totalorder %s21, 3
    %p241 = por %p239, %p240
    %p243 = scmp.ne.s32.totalorder %s226, %s242
    %p244 = scmp.eq.s32.totalorder %s21, 0
    %p245 = por %p243, %p244
    %s246 = ssub.s32 %s22, %s34
    %p247 = scmp.eq.s32.totalorder %s246, 0
    %s249 = sadd.s32 %s248, 1
    %s250 = scalar_select %p247, %s248, %s249
    %p253 = pneg %p247
    %p254 = scmp.eq.s32.totalorder %s15, 3
    %p255 = por %p253, %p254
    %p256 = scmp.ne.s32.totalorder %s248, %s251
    %p257 = scmp.eq.s32.totalorder %s15, 0
    %p258 = por %p256, %p257
    %p259 = scmp.ne.s32.totalorder %s248, %s251
    %p260 = scmp.eq.s32.totalorder %s20, 3
    %p261 = por %p259, %p260
    %p262 = scmp.ne.s32.totalorder %s251, %s252
    %p263 = scmp.eq.s32.totalorder %s20, 0
    %p264 = por %p262, %p263
    %p265 = scmp.ne.s32.totalorder %s251, %s252
    %p266 = scmp.eq.s32.totalorder %s21, 3
    %p267 = por %p265, %p266
    %p269 = scmp.ne.s32.totalorder %s252, %s268
    %p270 = scmp.eq.s32.totalorder %s21, 0
    %p271 = por %p269, %p270
    %p272 = scmp.le.s32.totalorder 1, %s15
    %p273 = scmp.lt.s32.totalorder %s15, 5
    %p274 = pnand %p272, %p273
    %p275 = pneg %p274
    // Predicated region
    $region9: #{plain_seq2seq_forward.4} parent=5 // pred_check
      _
    $region10: #{plain_seq2seq_forward.4} parent=5 // pred_check_branch
      %277 = sbr.rel (%p274) target = $region12
    $region11: #{plain_seq2seq_forward.4} parent=5 // pred_region
      %s278 = ssub.s32 %s15, 1
      // Predicated region
      $region13: #{plain_seq2seq_forward.4} parent=11 // pred_check
        %p279 = pneg %p158
      $region14: #{plain_seq2seq_forward.4} parent=11 // pred_check_branch
        %281 = sbr.rel (%p279) target = $region16
      $region15: #{plain_seq2seq_forward.4} parent=11 // pred_region
        _
      $region16: #{plain_seq2seq_forward.4} parent=11 // pred_fallthru
        _
    $region12: #{plain_seq2seq_forward.4} parent=5 // pred_fallthru
      _
    %p282 = scmp.lt.s32.totalorder %s15, 4
    // Predicated region
    $region17: #{plain_seq2seq_forward.4} parent=5 // pred_check
      %p283 = pneg %p282
    $region18: #{plain_seq2seq_forward.4} parent=5 // pred_check_branch
      %285 = sbr.rel (%p283) target = $region20
    $region19: #{plain_seq2seq_forward.4} parent=5 // pred_region
      // Predicated region
      $region21: #{plain_seq2seq_forward.4} parent=19 // pred_check
        %p286 = pneg %p49
      $region22: #{plain_seq2seq_forward.4} parent=19 // pred_check_branch
        %288 = sbr.rel (%p286) target = $region24
      $region23: #{plain_seq2seq_forward.4} parent=19 // pred_region
        %s289 = smul.u32 4, %s23
        %p290 = scmp.lt.s32.totalorder %s22, 1
        %s291 = scalar_select %p290, %s22, 1
        %p292 = scmp.lt.s32.totalorder %s289, 7
        %s293 = scalar_select %p292, %s289, 7
        %s294 = smul.addr %s291, 8
        %s295 = sadd.s32 %s293, %s294
        %s296 = smul.addr %s295, 2
        %s297 = scalar_lea.vmem %s0, %s296
        %s298 = smul.u32 4, %s23
      $region24: #{plain_seq2seq_forward.4} parent=19 // pred_fallthru
        _
      // Predicated region
      $region25: #{plain_seq2seq_forward.4} parent=19 // pred_check
        %p299 = pneg %p77
      $region26: #{plain_seq2seq_forward.4} parent=19 // pred_check_branch
        %301 = sbr.rel (%p299) target = $region28
      $region27: #{plain_seq2seq_forward.4} parent=19 // pred_region
        %s302 = smul.u32 4, %s23
        %p303 = scmp.lt.s32.totalorder %s22, 1
        %s304 = scalar_select %p303, %s22, 1
        %p305 = scmp.lt.s32.totalorder %s302, 7
        %s306 = scalar_select %p305, %s302, 7
        %s307 = smul.addr %s304, 8
        %s308 = sadd.s32 %s306, %s307
        %s309 = smul.addr %s308, 2
        %s310 = scalar_lea.vmem %s1, %s309
        %s311 = smul.u32 4, %s23
      $region28: #{plain_seq2seq_forward.4} parent=19 // pred_fallthru
        _
      // Predicated region
      $region29: #{plain_seq2seq_forward.4} parent=19 // pred_check
        %p312 = pneg %p105
      $region30: #{plain_seq2seq_forward.4} parent=19 // pred_check_branch
        %314 = sbr.rel (%p312) target = $region32
      $region31: #{plain_seq2seq_forward.4} parent=19 // pred_region
        %s315 = smul.u32 4, %s23
        %p316 = scmp.lt.s32.totalorder %s22, 1
        %s317 = scalar_select %p316, %s22, 1
        %p318 = scmp.lt.s32.totalorder %s315, 7
        %s319 = scalar_select %p318, %s315, 7
        %s320 = smul.addr %s317, 8
        %s321 = sadd.s32 %s319, %s320
        %s322 = smul.addr %s321, 2
        %s323 = scalar_lea.vmem %s2, %s322
        %s324 = smul.u32 4, %s23
      $region32: #{plain_seq2seq_forward.4} parent=19 // pred_fallthru
        _
      // Predicated region
      $region33: #{plain_seq2seq_forward.4} parent=19 // pred_check
        %p325 = pneg %p131
      $region34: #{plain_seq2seq_forward.4} parent=19 // pred_check_branch
        %327 = sbr.rel (%p325) target = $region36
      $region35: #{plain_seq2seq_forward.4} parent=19 // pred_region
        %p328 = scmp.lt.s32.totalorder %s22, 1
        %s329 = scalar_select %p328, %s22, 1
        %s330 = smul.addr %s329, 2
        %s331 = scalar_lea.vmem %s3, %s330
      $region36: #{plain_seq2seq_forward.4} parent=19 // pred_fallthru
        _
      // Predicated region
      $region37: #{plain_seq2seq_forward.4} parent=19 // pred_check
        %p332 = pneg %p178
      $region38: #{plain_seq2seq_forward.4} parent=19 // pred_check_branch
        %334 = sbr.rel (%p332) target = $region40
      $region39: #{plain_seq2seq_forward.4} parent=19 // pred_region
        %p335 = scmp.lt.s32.totalorder %s22, 1
        %s336 = scalar_select %p335, %s22, 1
        %s337 = smul.addr %s336, 12
        %s338 = smul.addr %s337, 8
        %s339 = scalar_lea.vmem %s5, %s338
      $region40: #{plain_seq2seq_forward.4} parent=19 // pred_fallthru
        _
      // Predicated region
      $region41: #{plain_seq2seq_forward.4} parent=19 // pred_check
        %p340 = pneg %p204
      $region42: #{plain_seq2seq_forward.4} parent=19 // pred_check_branch
        %342 = sbr.rel (%p340) target = $region44
      $region43: #{plain_seq2seq_forward.4} parent=19 // pred_region
        %p343 = scmp.lt.s32.totalorder %s22, 1
        %s344 = scalar_select %p343, %s22, 1
        %s345 = smul.addr %s344, 3
        %s346 = scalar_lea.vmem %s6, %s345
      $region44: #{plain_seq2seq_forward.4} parent=19 // pred_fallthru
        _
    $region20: #{plain_seq2seq_forward.4} parent=5 // pred_fallthru
      _
    %p347 = scmp.le.s32.totalorder 1, %s15
    %p348 = scmp.lt.s32.totalorder %s15, 5
    %p349 = pnand %p347, %p348
    %p350 = pneg %p349
    // Predicated region
    $region45: #{plain_seq2seq_forward.4} parent=5 // pred_check
      _
    $region46: #{plain_seq2seq_forward.4} parent=5 // pred_check_branch
      %352 = sbr.rel (%p349) target = $region48
    $region47: #{plain_seq2seq_forward.4} parent=5 // pred_region
      %s353 = ssub.s32 %s15, 1
      %s354 = smul.u32 4, %s25
      %p355 = scmp.lt.s32.totalorder %s24, 1
      %s356 = scalar_select %p355, %s24, 1
      %p357 = scmp.lt.s32.totalorder %s354, 7
      %s358 = scalar_select %p357, %s354, 7
      %s359 = smul.addr %s356, 8
      %s360 = sadd.s32 %s358, %s359
      %s361 = smul.addr %s360, 2
      %s362 = scalar_lea.vmem %s0, %s361
      %p363 = pneg %p55
      %p364 = pneg %p52
      %s365 = smul.u32 4, %s25
      %p366 = scmp.lt.s32.totalorder %s24, 1
      %s367 = scalar_select %p366, %s24, 1
      %p368 = scmp.lt.s32.totalorder %s365, 7
      %s369 = scalar_select %p368, %s365, 7
      %s370 = smul.addr %s367, 8
      %s371 = sadd.s32 %s369, %s370
      %s372 = smul.addr %s371, 2
      %s373 = scalar_lea.vmem %s1, %s372
      %p374 = pneg %p83
      %p375 = pneg %p80
      %s376 = smul.u32 4, %s25
      %p377 = scmp.lt.s32.totalorder %s24, 1
      %s378 = scalar_select %p377, %s24, 1
      %p379 = scmp.lt.s32.totalorder %s376, 7
      %s380 = scalar_select %p379, %s376, 7
      %s381 = smul.addr %s378, 8
      %s382 = sadd.s32 %s380, %s381
      %s383 = smul.addr %s382, 2
      %s384 = scalar_lea.vmem %s2, %s383
      %p385 = pneg %p111
      %p386 = pneg %p108
      %p387 = scmp.lt.s32.totalorder %s24, 1
      %s388 = scalar_select %p387, %s24, 1
      %s389 = smul.addr %s388, 2
      %s390 = scalar_lea.vmem %s3, %s389
      %p391 = pneg %p137
      %p392 = pneg %p134
      %p393 = pneg %p158
      %p394 = pneg %p155
      %p395 = scmp.lt.s32.totalorder %s24, 1
      %s396 = scalar_select %p395, %s24, 1
      %s397 = smul.addr %s396, 12
      %s398 = smul.addr %s397, 8
      %s399 = scalar_lea.vmem %s5, %s398
      %p400 = pneg %p184
      %p401 = pneg %p181
      %p402 = scmp.lt.s32.totalorder %s24, 1
      %s403 = scalar_select %p402, %s24, 1
      %s404 = smul.addr %s403, 3
      %s405 = scalar_lea.vmem %s6, %s404
      %p406 = pneg %p210
      %p407 = pneg %p207
      %p408 = pneg %p238
      %p409 = pneg %p235
      %s410 = smul.u32 4, %s25
      %p411 = scmp.lt.s32.totalorder %s24, 1
      %s412 = scalar_select %p411, %s24, 1
      %p413 = scmp.lt.s32.totalorder %s410, 7
      %s414 = scalar_select %p413, %s410, 7
      %s415 = smul.addr %s412, 8
      %s416 = sadd.s32 %s414, %s415
      %s417 = smul.addr %s416, 2
      %s418 = scalar_lea.vmem %s7, %s417
      %p419 = pneg %p264
      %p420 = pneg %p261
      %p421 = scmp.lt.s32.totalorder %s24, 1
      %s422 = scalar_select %p421, %s24, 1
      %s423 = smul.addr %s422, 2
      %s424 = scalar_lea.vmem %s8, %s423
      %s425 = smul.u32 4, %s25
      %p426 = scmp.lt.s32.totalorder %s24, 1
      %s427 = scalar_select %p426, %s24, 1
      %p428 = scmp.lt.s32.totalorder %s425, 7
      %s429 = scalar_select %p428, %s425, 7
      %s430 = smul.addr %s427, 8
      %s431 = sadd.s32 %s429, %s430
      %s432 = smul.addr %s431, 2
      %s433 = scalar_lea.vmem %s0, %s432
      %s434 = smul.u32 4, %s25
      %s435 = smul.u32 4, %s25
      %p436 = scmp.lt.s32.totalorder %s24, 1
      %s437 = scalar_select %p436, %s24, 1
      %p438 = scmp.lt.s32.totalorder %s435, 7
      %s439 = scalar_select %p438, %s435, 7
      %s440 = smul.addr %s437, 8
      %s441 = sadd.s32 %s439, %s440
      %s442 = smul.addr %s441, 2
      %s443 = scalar_lea.vmem %s1, %s442
      %s444 = smul.u32 4, %s25
      %s445 = smul.u32 4, %s25
      %p446 = scmp.lt.s32.totalorder %s24, 1
      %s447 = scalar_select %p446, %s24, 1
      %p448 = scmp.lt.s32.totalorder %s445, 7
      %s449 = scalar_select %p448, %s445, 7
      %s450 = smul.addr %s447, 8
      %s451 = sadd.s32 %s449, %s450
      %s452 = smul.addr %s451, 2
      %s453 = scalar_lea.vmem %s2, %s452
      %s454 = smul.u32 4, %s25
      %p455 = scmp.lt.s32.totalorder %s24, 1
      %s456 = scalar_select %p455, %s24, 1
      %s457 = smul.addr %s456, 2
      %s458 = scalar_lea.vmem %s3, %s457
      %p459 = scmp.lt.s32.totalorder %s24, 1
      %s460 = scalar_select %p459, %s24, 1
      %s461 = smul.addr %s460, 12
      %s462 = smul.addr %s461, 8
      %s463 = scalar_lea.vmem %s5, %s462
      %p464 = scmp.lt.s32.totalorder %s24, 1
      %s465 = scalar_select %p464, %s24, 1
      %s466 = smul.addr %s465, 3
      %s467 = scalar_lea.vmem %s6, %s466
      %s468 = smul.u32 4, %s25
      %p469 = scmp.lt.s32.totalorder %s24, 1
      %s470 = scalar_select %p469, %s24, 1
      %p471 = scmp.lt.s32.totalorder %s468, 7
      %s472 = scalar_select %p471, %s468, 7
      %s473 = smul.addr %s470, 8
      %s474 = sadd.s32 %s472, %s473
      %s475 = smul.addr %s474, 2
      %s476 = scalar_lea.vmem %s7, %s475
      %s477 = smul.u32 4, %s25
      %p478 = scmp.lt.s32.totalorder %s24, 1
      %s479 = scalar_select %p478, %s24, 1
      %s480 = smul.addr %s479, 2
      %s481 = scalar_lea.vmem %s8, %s480
      %p482 = scmp.eq.s32.totalorder %s25, 0
      // Predicated region
      $region49: #{plain_seq2seq_forward.4} parent=47 // pred_check
        %p483 = pneg %p482
      $region50: #{plain_seq2seq_forward.4} parent=47 // pred_check_branch
        %485 = sbr.rel (%p483) target = $region52
      $region51: #{plain_seq2seq_forward.4} parent=47 // pred_region
        %v486 = vld [vmem:[%s458] sm:$0x3]
        %vm487 = vcmask 254976
        %488 = vst.msk [vmem:[#allocation2] sm:$0x3] %vm487, %v486
      $region52: #{plain_seq2seq_forward.4} parent=47 // pred_fallthru
        _
      %v489 = vld [vmem:[%s4] sm:$0x3]
      %s490 = smul.u32 %s25, 4
      %v491 = vld [vmem:[%s463] sm:$0xff]
      %v492 = vld [vmem:[%s463 + $0x8] sm:$0xff]
      %v493 = vld [vmem:[%s463 + $0x10] sm:$0xff]
      %v494 = vld [vmem:[%s463 + $0x18] sm:$0xff]
      %s495 = scalar_lea.vmem %s463, 32
      %v496 = vld [vmem:[%s495] sm:$0xff]
      %v497 = vld [vmem:[%s495 + $0x8] sm:$0xff]
      %v498 = vld [vmem:[%s495 + $0x10] sm:$0xff]
      %v499 = vld [vmem:[%s495 + $0x18] sm:$0xff]
      %s500 = scalar_lea.vmem %s463, 64
      %v501 = vld [vmem:[%s500] sm:$0xff]
      %v502 = vld [vmem:[%s500 + $0x8] sm:$0xff]
      %v503 = vld [vmem:[%s500 + $0x10] sm:$0xff]
      %v504 = vld [vmem:[%s500 + $0x18] sm:$0xff]
      %v505 = vld [vmem:[%s467] sm:$0x1]
      %s506 = scalar_lea.vmem %s467, 1
      %v507 = vld [vmem:[%s506] sm:$0x1]
      %s508 = scalar_lea.vmem %s467, 2
      %v509 = vld [vmem:[%s508] sm:$0x1]
      %v510 = vld [vmem:[#allocation2] sm:$0x3]
      %v512 = vlaneseq
      %v513 = vshrl.u32 %v512, 7
      %v514 = vsub.s32 0, %v513
      %v515 = vrot.slane %v505, %v514
      %vm517 = vcmask 261120
      %v519 = vsel %vm517, %v510, 0
      %521 = vmatprep.subr.mxu0 0.0
      %522 = vmatpush1.msra.mxu0 0.0
      %523 = vmatprep.subr.mxu0 0.0
      %524 = vmatpush1.msra.mxu0 0.0
      %525 = vmatprep.subr.mxu0 0.0
      %526 = vmatpush1.msra.mxu0 0.0
      %527 = vmatprep.subr.mxu0 0.0
      %528 = vmatpush1.msra.mxu0 0.0
      %529 = vmatprep.subr.mxu0 0.0
      %530 = vmatpush1.msra.mxu0 0.0
      %531 = vmatprep.subr.mxu0 0.0
      %532 = vmatpush1.msra.mxu0 0.0
      %533 = vmatprep.subr.mxu0 0.0
      %534 = vmatpush1.msra.mxu0 0.0
      %535 = vmatprep.subr.mxu0 0.0
      %536 = vmatpush1.msra.mxu0 0.0
      %537 = vmatprep.subr.mxu0 0.0
      %538 = vmatpush1.msra.mxu0 0.0
      %539 = vmatprep.subr.mxu0 0.0
      %540 = vmatpush1.msra.mxu0 0.0
      %541 = vmatprep.subr.mxu0 0.0
      %542 = vmatpush1.msra.mxu0 0.0
      %543 = vmatprep.subr.mxu0 0.0
      %544 = vmatpush1.msra.mxu0 0.0
      %545 = vmatprep.subr.mxu0 0.0
      %546 = vmatpush1.msra.mxu0 %v494
      %547 = vmatprep.subr.mxu0 0.0
      %548 = vmatpush1.msra.mxu0 %v493
      %549 = vmatprep.subr.mxu0 0.0
      %550 = vmatpush1.msra.mxu0 %v492
      %551 = vmatprep.subr.mxu0 0.0
      %552 = vmatpush1.msra.mxu0 %v491
      %553 = vmatprep.subr.mxu0 0.0
      %554 = vmatpush2.msra.mxu0 0.0
      %555 = vmatprep.subr.mxu0 0.0
      %556 = vmatpush2.msra.mxu0 0.0
      %557 = vmatprep.subr.mxu0 0.0
      %558 = vmatpush2.msra.mxu0 0.0
      %559 = vmatprep.subr.mxu0 0.0
      %560 = vmatpush2.msra.mxu0 0.0
      %561 = vmatprep.subr.mxu0 0.0
      %562 = vmatpush2.msra.mxu0 0.0
      %563 = vmatprep.subr.mxu0 0.0
      %564 = vmatpush2.msra.mxu0 0.0
      %565 = vmatprep.subr.mxu0 0.0
      %566 = vmatpush2.msra.mxu0 0.0
      %567 = vmatprep.subr.mxu0 0.0
      %568 = vmatpush2.msra.mxu0 0.0
      %569 = vmatprep.subr.mxu0 0.0
      %570 = vmatpush2.msra.mxu0 0.0
      %571 = vmatprep.subr.mxu0 0.0
      %572 = vmatpush2.msra.mxu0 0.0
      %573 = vmatprep.subr.mxu0 0.0
      %574 = vmatpush2.msra.mxu0 0.0
      %575 = vmatprep.subr.mxu0 0.0
      %576 = vmatpush2.msra.mxu0 0.0
      %577 = vmatprep.subr.mxu0 0.0
      %578 = vmatpush2.msra.mxu0 0.0
      %579 = vmatprep.subr.mxu0 0.0
      %580 = vmatpush2.msra.mxu0 0.0
      %581 = vmatprep.subr.mxu0 0.0
      %582 = vmatpush2.msra.mxu0 0.0
      %583 = vmatprep.subr.mxu0 0.0
      %584 = vmatpush2.msra.mxu0 0.0
      %585 = vmatprep.mubr.f32.mxu0 0.0
      %586 = vmatmul.mubr.f32.gmra.mxu0 %v519
      %v587 = vpop.f32.mrf.mxu0
      %v588 = vadd.f32 %v515, %v587
      %v589 = vpop.f32.mrf.mxu0
      %590 = vdwg.mxu0
      %v592 = vlaneseq
      %v593 = vshrl.u32 %v592, 7
      %v594 = vsub.s32 0, %v593
      %v595 = vrot.slane %v507, %v594
      %597 = vmatprep.subr.mxu0 0.0
      %598 = vmatpush1.msra.mxu0 0.0
      %599 = vmatprep.subr.mxu0 0.0
      %600 = vmatpush1.msra.mxu0 0.0
      %601 = vmatprep.subr.mxu0 0.0
      %602 = vmatpush1.msra.mxu0 0.0
      %603 = vmatprep.subr.mxu0 0.0
      %604 = vmatpush1.msra.mxu0 0.0
      %605 = vmatprep.subr.mxu0 0.0
      %606 = vmatpush1.msra.mxu0 0.0
      %607 = vmatprep.subr.mxu0 0.0
      %608 = vmatpush1.msra.mxu0 0.0
      %609 = vmatprep.subr.mxu0 0.0
      %610 = vmatpush1.msra.mxu0 0.0
      %611 = vmatprep.subr.mxu0 0.0
      %612 = vmatpush1.msra.mxu0 0.0
      %613 = vmatprep.subr.mxu0 0.0
      %614 = vmatpush1.msra.mxu0 0.0
      %615 = vmatprep.subr.mxu0 0.0
      %616 = vmatpush1.msra.mxu0 0.0
      %617 = vmatprep.subr.mxu0 0.0
      %618 = vmatpush1.msra.mxu0 0.0
      %619 = vmatprep.subr.mxu0 0.0
      %620 = vmatpush1.msra.mxu0 0.0
      %621 = vmatprep.subr.mxu0 0.0
      %622 = vmatpush1.msra.mxu0 %v499
      %623 = vmatprep.subr.mxu0 0.0
      %624 = vmatpush1.msra.mxu0 %v498
      %625 = vmatprep.subr.mxu0 0.0
      %626 = vmatpush1.msra.mxu0 %v497
      %627 = vmatprep.subr.mxu0 0.0
      %628 = vmatpush1.msra.mxu0 %v496
      %629 = vmatprep.subr.mxu0 0.0
      %630 = vmatpush2.msra.mxu0 0.0
      %631 = vmatprep.subr.mxu0 0.0
      %632 = vmatpush2.msra.mxu0 0.0
      %633 = vmatprep.subr.mxu0 0.0
      %634 = vmatpush2.msra.mxu0 0.0
      %635 = vmatprep.subr.mxu0 0.0
      %636 = vmatpush2.msra.mxu0 0.0
      %637 = vmatprep.subr.mxu0 0.0
      %638 = vmatpush2.msra.mxu0 0.0
      %639 = vmatprep.subr.mxu0 0.0
      %640 = vmatpush2.msra.mxu0 0.0
      %641 = vmatprep.subr.mxu0 0.0
      %642 = vmatpush2.msra.mxu0 0.0
      %643 = vmatprep.subr.mxu0 0.0
      %644 = vmatpush2.msra.mxu0 0.0
      %645 = vmatprep.subr.mxu0 0.0
      %646 = vmatpush2.msra.mxu0 0.0
      %647 = vmatprep.subr.mxu0 0.0
      %648 = vmatpush2.msra.mxu0 0.0
      %649 = vmatprep.subr.mxu0 0.0
      %650 = vmatpush2.msra.mxu0 0.0
      %651 = vmatprep.subr.mxu0 0.0
      %652 = vmatpush2.msra.mxu0 0.0
      %653 = vmatprep.subr.mxu0 0.0
      %654 = vmatpush2.msra.mxu0 0.0
      %655 = vmatprep.subr.mxu0 0.0
      %656 = vmatpush2.msra.mxu0 0.0
      %657 = vmatprep.subr.mxu0 0.0
      %658 = vmatpush2.msra.mxu0 0.0
      %659 = vmatprep.subr.mxu0 0.0
      %660 = vmatpush2.msra.mxu0 0.0
      %661 = vmatprep.mubr.f32.mxu0 0.0
      %662 = vmatmul.mubr.f32.gmra.mxu0 %v519
      %v663 = vpop.f32.mrf.mxu0
      %v664 = vadd.f32 %v595, %v663
      %v665 = vpop.f32.mrf.mxu0
      %666 = vdwg.mxu0
      %v668 = vlaneseq
      %v669 = vshrl.u32 %v668, 7
      %v670 = vsub.s32 0, %v669
      %v671 = vrot.slane %v509, %v670
      %673 = vmatprep.subr.mxu0 0.0
      %674 = vmatpush1.msra.mxu0 0.0
      %675 = vmatprep.subr.mxu0 0.0
      %676 = vmatpush1.msra.mxu0 0.0
      %677 = vmatprep.subr.mxu0 0.0
      %678 = vmatpush1.msra.mxu0 0.0
      %679 = vmatprep.subr.mxu0 0.0
      %680 = vmatpush1.msra.mxu0 0.0
      %681 = vmatprep.subr.mxu0 0.0
      %682 = vmatpush1.msra.mxu0 0.0
      %683 = vmatprep.subr.mxu0 0.0
      %684 = vmatpush1.msra.mxu0 0.0
      %685 = vmatprep.subr.mxu0 0.0
      %686 = vmatpush1.msra.mxu0 0.0
      %687 = vmatprep.subr.mxu0 0.0
      %688 = vmatpush1.msra.mxu0 0.0
      %689 = vmatprep.subr.mxu0 0.0
      %690 = vmatpush1.msra.mxu0 0.0
      %691 = vmatprep.subr.mxu0 0.0
      %692 = vmatpush1.msra.mxu0 0.0
      %693 = vmatprep.subr.mxu0 0.0
      %694 = vmatpush1.msra.mxu0 0.0
      %695 = vmatprep.subr.mxu0 0.0
      %696 = vmatpush1.msra.mxu0 0.0
      %697 = vmatprep.subr.mxu0 0.0
      %698 = vmatpush1.msra.mxu0 %v504
      %699 = vmatprep.subr.mxu0 0.0
      %700 = vmatpush1.msra.mxu0 %v503
      %701 = vmatprep.subr.mxu0 0.0
      %702 = vmatpush1.msra.mxu0 %v502
      %703 = vmatprep.subr.mxu0 0.0
      %704 = vmatpush1.msra.mxu0 %v501
      %705 = vmatprep.subr.mxu0 0.0
      %706 = vmatpush2.msra.mxu0 0.0
      %707 = vmatprep.subr.mxu0 0.0
      %708 = vmatpush2.msra.mxu0 0.0
      %709 = vmatprep.subr.mxu0 0.0
      %710 = vmatpush2.msra.mxu0 0.0
      %711 = vmatprep.subr.mxu0 0.0
      %712 = vmatpush2.msra.mxu0 0.0
      %713 = vmatprep.subr.mxu0 0.0
      %714 = vmatpush2.msra.mxu0 0.0
      %715 = vmatprep.subr.mxu0 0.0
      %716 = vmatpush2.msra.mxu0 0.0
      %717 = vmatprep.subr.mxu0 0.0
      %718 = vmatpush2.msra.mxu0 0.0
      %719 = vmatprep.subr.mxu0 0.0
      %720 = vmatpush2.msra.mxu0 0.0
      %721 = vmatprep.subr.mxu0 0.0
      %722 = vmatpush2.msra.mxu0 0.0
      %723 = vmatprep.subr.mxu0 0.0
      %724 = vmatpush2.msra.mxu0 0.0
      %725 = vmatprep.subr.mxu0 0.0
      %726 = vmatpush2.msra.mxu0 0.0
      %727 = vmatprep.subr.mxu0 0.0
      %728 = vmatpush2.msra.mxu0 0.0
      %729 = vmatprep.subr.mxu0 0.0
      %730 = vmatpush2.msra.mxu0 0.0
      %731 = vmatprep.subr.mxu0 0.0
      %732 = vmatpush2.msra.mxu0 0.0
      %733 = vmatprep.subr.mxu0 0.0
      %734 = vmatpush2.msra.mxu0 0.0
      %735 = vmatprep.subr.mxu0 0.0
      %736 = vmatpush2.msra.mxu0 0.0
      %737 = vmatprep.mubr.f32.mxu0 0.0
      %738 = vmatmul.mubr.f32.gmra.mxu0 %v519
      %v739 = vpop.f32.mrf.mxu0
      %v740 = vadd.f32 %v671, %v739
      %v741 = vpop.f32.mrf.mxu0
      %742 = vdwg.mxu0
      %v743 = vld [vmem:[%s433] sm:$0x3]
      %v744 = vadd.f32 %v743, %v588
      %v745 = vxor.u32 %v744, 2147483648
      %v746 = vmul.f32 %v745, 1.442695
      %v747 = vpow.pop %v746
      %v748 = vadd.f32 %v747, 1.0
      %v749 = vrcp.pop %v748
      %v750 = vmul.f32 1.0, %v749
      %v751 = vld [vmem:[%s443] sm:$0x3]
      %v752 = vadd.f32 %v751, %v664
      %v753 = vxor.u32 %v752, 2147483648
      %v754 = vmul.f32 %v753, 1.442695
      %v755 = vpow.pop %v754
      %v756 = vadd.f32 %v755, 1.0
      %v757 = vrcp.pop %v756
      %v758 = vmul.f32 1.0, %v757
      %v759 = vld [vmem:[%s453] sm:$0x3]
      %v760 = vmul.f32 %v750, %v740
      %v761 = vadd.f32 %v759, %v760
      %v762 = vtanh.pop %v761
      %v763 = vsub.f32 1.0, %v758
      %v764 = vmul.f32 %v763, %v762
      %v765 = vmul.f32 %v758, %v510
      %v766 = vadd.f32 %v764, %v765
      %v767 = vstv %s490
      %vm768 = vcmp.lt.s32.totalorder %v767, %v489
      %v769 = vsel %vm768, 1, 0
      %770 = vset.pattern.permute.xlu0 0
      %771 = vperm.xlu0 %770, %v769
      %v772 = vpop.permute.xlu0 %771
      %vm773 = vcmp.eq.s32.totalorder %v772, 1
      %v774 = vsel %vm773, %v766, %v510
      %vm775 = vcmask 254976
      %776 = vst.msk [vmem:[#allocation2] sm:$0x3] %vm775, %v774
      %v777 = vsel %vm773, %v766, 0.0
      %778 = vst.msk [vmem:[%s476] sm:$0x3] %vm775, %v777
      %v779 = vld [vmem:[#allocation2] sm:$0x3]
      %v781 = vsel %vm517, %v779, 0
      %783 = vmatprep.subr.mxu0 0.0
      %784 = vmatpush1.msra.mxu0 0.0
      %785 = vmatprep.subr.mxu0 0.0
      %786 = vmatpush1.msra.mxu0 0.0
      %787 = vmatprep.subr.mxu0 0.0
      %788 = vmatpush1.msra.mxu0 0.0
      %789 = vmatprep.subr.mxu0 0.0
      %790 = vmatpush1.msra.mxu0 0.0
      %791 = vmatprep.subr.mxu0 0.0
      %792 = vmatpush1.msra.mxu0 0.0
      %793 = vmatprep.subr.mxu0 0.0
      %794 = vmatpush1.msra.mxu0 0.0
      %795 = vmatprep.subr.mxu0 0.0
      %796 = vmatpush1.msra.mxu0 0.0
      %797 = vmatprep.subr.mxu0 0.0
      %798 = vmatpush1.msra.mxu0 0.0
      %799 = vmatprep.subr.mxu0 0.0
      %800 = vmatpush1.msra.mxu0 0.0
      %801 = vmatprep.subr.mxu0 0.0
      %802 = vmatpush1.msra.mxu0 0.0
      %803 = vmatprep.subr.mxu0 0.0
      %804 = vmatpush1.msra.mxu0 0.0
      %805 = vmatprep.subr.mxu0 0.0
      %806 = vmatpush1.msra.mxu0 0.0
      %807 = vmatprep.subr.mxu0 0.0
      %808 = vmatpush1.msra.mxu0 %v494
      %809 = vmatprep.subr.mxu0 0.0
      %810 = vmatpush1.msra.mxu0 %v493
      %811 = vmatprep.subr.mxu0 0.0
      %812 = vmatpush1.msra.mxu0 %v492
      %813 = vmatprep.subr.mxu0 0.0
      %814 = vmatpush1.msra.mxu0 %v491
      %815 = vmatprep.subr.mxu0 0.0
      %816 = vmatpush2.msra.mxu0 0.0
      %817 = vmatprep.subr.mxu0 0.0
      %818 = vmatpush2.msra.mxu0 0.0
      %819 = vmatprep.subr.mxu0 0.0
      %820 = vmatpush2.msra.mxu0 0.0
      %821 = vmatprep.subr.mxu0 0.0
      %822 = vmatpush2.msra.mxu0 0.0
      %823 = vmatprep.subr.mxu0 0.0
      %824 = vmatpush2.msra.mxu0 0.0
      %825 = vmatprep.subr.mxu0 0.0
      %826 = vmatpush2.msra.mxu0 0.0
      %827 = vmatprep.subr.mxu0 0.0
      %828 = vmatpush2.msra.mxu0 0.0
      %829 = vmatprep.subr.mxu0 0.0
      %830 = vmatpush2.msra.mxu0 0.0
      %831 = vmatprep.subr.mxu0 0.0
      %832 = vmatpush2.msra.mxu0 0.0
      %833 = vmatprep.subr.mxu0 0.0
      %834 = vmatpush2.msra.mxu0 0.0
      %835 = vmatprep.subr.mxu0 0.0
      %836 = vmatpush2.msra.mxu0 0.0
      %837 = vmatprep.subr.mxu0 0.0
      %838 = vmatpush2.msra.mxu0 0.0
      %839 = vmatprep.subr.mxu0 0.0
      %840 = vmatpush2.msra.mxu0 0.0
      %841 = vmatprep.subr.mxu0 0.0
      %842 = vmatpush2.msra.mxu0 0.0
      %843 = vmatprep.subr.mxu0 0.0
      %844 = vmatpush2.msra.mxu0 0.0
      %845 = vmatprep.subr.mxu0 0.0
      %846 = vmatpush2.msra.mxu0 0.0
      %847 = vmatprep.mubr.f32.mxu0 0.0
      %848 = vmatmul.mubr.f32.gmra.mxu0 %v781
      %v849 = vpop.f32.mrf.mxu0
      %v850 = vadd.f32 %v515, %v849
      %v851 = vpop.f32.mrf.mxu0
      %852 = vdwg.mxu0
      %853 = vmatprep.subr.mxu0 0.0
      %854 = vmatpush1.msra.mxu0 0.0
      %855 = vmatprep.subr.mxu0 0.0
      %856 = vmatpush1.msra.mxu0 0.0
      %857 = vmatprep.subr.mxu0 0.0
      %858 = vmatpush1.msra.mxu0 0.0
      %859 = vmatprep.subr.mxu0 0.0
      %860 = vmatpush1.msra.mxu0 0.0
      %861 = vmatprep.subr.mxu0 0.0
      %862 = vmatpush1.msra.mxu0 0.0
      %863 = vmatprep.subr.mxu0 0.0
      %864 = vmatpush1.msra.mxu0 0.0
      %865 = vmatprep.subr.mxu0 0.0
      %866 = vmatpush1.msra.mxu0 0.0
      %867 = vmatprep.subr.mxu0 0.0
      %868 = vmatpush1.msra.mxu0 0.0
      %869 = vmatprep.subr.mxu0 0.0
      %870 = vmatpush1.msra.mxu0 0.0
      %871 = vmatprep.subr.mxu0 0.0
      %872 = vmatpush1.msra.mxu0 0.0
      %873 = vmatprep.subr.mxu0 0.0
      %874 = vmatpush1.msra.mxu0 0.0
      %875 = vmatprep.subr.mxu0 0.0
      %876 = vmatpush1.msra.mxu0 0.0
      %877 = vmatprep.subr.mxu0 0.0
      %878 = vmatpush1.msra.mxu0 %v499
      %879 = vmatprep.subr.mxu0 0.0
      %880 = vmatpush1.msra.mxu0 %v498
      %881 = vmatprep.subr.mxu0 0.0
      %882 = vmatpush1.msra.mxu0 %v497
      %883 = vmatprep.subr.mxu0 0.0
      %884 = vmatpush1.msra.mxu0 %v496
      %885 = vmatprep.subr.mxu0 0.0
      %886 = vmatpush2.msra.mxu0 0.0
      %887 = vmatprep.subr.mxu0 0.0
      %888 = vmatpush2.msra.mxu0 0.0
      %889 = vmatprep.subr.mxu0 0.0
      %890 = vmatpush2.msra.mxu0 0.0
      %891 = vmatprep.subr.mxu0 0.0
      %892 = vmatpush2.msra.mxu0 0.0
      %893 = vmatprep.subr.mxu0 0.0
      %894 = vmatpush2.msra.mxu0 0.0
      %895 = vmatprep.subr.mxu0 0.0
      %896 = vmatpush2.msra.mxu0 0.0
      %897 = vmatprep.subr.mxu0 0.0
      %898 = vmatpush2.msra.mxu0 0.0
      %899 = vmatprep.subr.mxu0 0.0
      %900 = vmatpush2.msra.mxu0 0.0
      %901 = vmatprep.subr.mxu0 0.0
      %902 = vmatpush2.msra.mxu0 0.0
      %903 = vmatprep.subr.mxu0 0.0
      %904 = vmatpush2.msra.mxu0 0.0
      %905 = vmatprep.subr.mxu0 0.0
      %906 = vmatpush2.msra.mxu0 0.0
      %907 = vmatprep.subr.mxu0 0.0
      %908 = vmatpush2.msra.mxu0 0.0
      %909 = vmatprep.subr.mxu0 0.0
      %910 = vmatpush2.msra.mxu0 0.0
      %911 = vmatprep.subr.mxu0 0.0
      %912 = vmatpush2.msra.mxu0 0.0
      %913 = vmatprep.subr.mxu0 0.0
      %914 = vmatpush2.msra.mxu0 0.0
      %915 = vmatprep.subr.mxu0 0.0
      %916 = vmatpush2.msra.mxu0 0.0
      %917 = vmatprep.mubr.f32.mxu0 0.0
      %918 = vmatmul.mubr.f32.gmra.mxu0 %v781
      %v919 = vpop.f32.mrf.mxu0
      %v920 = vadd.f32 %v595, %v919
      %v921 = vpop.f32.mrf.mxu0
      %922 = vdwg.mxu0
      %923 = vmatprep.subr.mxu0 0.0
      %924 = vmatpush1.msra.mxu0 0.0
      %925 = vmatprep.subr.mxu0 0.0
      %926 = vmatpush1.msra.mxu0 0.0
      %927 = vmatprep.subr.mxu0 0.0
      %928 = vmatpush1.msra.mxu0 0.0
      %929 = vmatprep.subr.mxu0 0.0
      %930 = vmatpush1.msra.mxu0 0.0
      %931 = vmatprep.subr.mxu0 0.0
      %932 = vmatpush1.msra.mxu0 0.0
      %933 = vmatprep.subr.mxu0 0.0
      %934 = vmatpush1.msra.mxu0 0.0
      %935 = vmatprep.subr.mxu0 0.0
      %936 = vmatpush1.msra.mxu0 0.0
      %937 = vmatprep.subr.mxu0 0.0
      %938 = vmatpush1.msra.mxu0 0.0
      %939 = vmatprep.subr.mxu0 0.0
      %940 = vmatpush1.msra.mxu0 0.0
      %941 = vmatprep.subr.mxu0 0.0
      %942 = vmatpush1.msra.mxu0 0.0
      %943 = vmatprep.subr.mxu0 0.0
      %944 = vmatpush1.msra.mxu0 0.0
      %945 = vmatprep.subr.mxu0 0.0
      %946 = vmatpush1.msra.mxu0 0.0
      %947 = vmatprep.subr.mxu0 0.0
      %948 = vmatpush1.msra.mxu0 %v504
      %949 = vmatprep.subr.mxu0 0.0
      %950 = vmatpush1.msra.mxu0 %v503
      %951 = vmatprep.subr.mxu0 0.0
      %952 = vmatpush1.msra.mxu0 %v502
      %953 = vmatprep.subr.mxu0 0.0
      %954 = vmatpush1.msra.mxu0 %v501
      %955 = vmatprep.subr.mxu0 0.0
      %956 = vmatpush2.msra.mxu0 0.0
      %957 = vmatprep.subr.mxu0 0.0
      %958 = vmatpush2.msra.mxu0 0.0
      %959 = vmatprep.subr.mxu0 0.0
      %960 = vmatpush2.msra.mxu0 0.0
      %961 = vmatprep.subr.mxu0 0.0
      %962 = vmatpush2.msra.mxu0 0.0
      %963 = vmatprep.subr.mxu0 0.0
      %964 = vmatpush2.msra.mxu0 0.0
      %965 = vmatprep.subr.mxu0 0.0
      %966 = vmatpush2.msra.mxu0 0.0
      %967 = vmatprep.subr.mxu0 0.0
      %968 = vmatpush2.msra.mxu0 0.0
      %969 = vmatprep.subr.mxu0 0.0
      %970 = vmatpush2.msra.mxu0 0.0
      %971 = vmatprep.subr.mxu0 0.0
      %972 = vmatpush2.msra.mxu0 0.0
      %973 = vmatprep.subr.mxu0 0.0
      %974 = vmatpush2.msra.mxu0 0.0
      %975 = vmatprep.subr.mxu0 0.0
      %976 = vmatpush2.msra.mxu0 0.0
      %977 = vmatprep.subr.mxu0 0.0
      %978 = vmatpush2.msra.mxu0 0.0
      %979 = vmatprep.subr.mxu0 0.0
      %980 = vmatpush2.msra.mxu0 0.0
      %981 = vmatprep.subr.mxu0 0.0
      %982 = vmatpush2.msra.mxu0 0.0
      %983 = vmatprep.subr.mxu0 0.0
      %984 = vmatpush2.msra.mxu0 0.0
      %985 = vmatprep.subr.mxu0 0.0
      %986 = vmatpush2.msra.mxu0 0.0
      %987 = vmatprep.mubr.f32.mxu0 0.0
      %988 = vmatmul.mubr.f32.gmra.mxu0 %v781
      %v989 = vpop.f32.mrf.mxu0
      %v990 = vadd.f32 %v671, %v989
      %v991 = vpop.f32.mrf.mxu0
      %992 = vdwg.mxu0
      %s993 = scalar_lea.vmem %s433, 2
      %v994 = vld [vmem:[%s993] sm:$0x3]
      %v995 = vadd.f32 %v994, %v850
      %v996 = vxor.u32 %v995, 2147483648
      %v997 = vmul.f32 %v996, 1.442695
      %v998 = vpow.pop %v997
      %v999 = vadd.f32 %v998, 1.0
      %v1000 = vrcp.pop %v999
      %v1001 = vmul.f32 1.0, %v1000
      %s1002 = scalar_lea.vmem %s443, 2
      %v1003 = vld [vmem:[%s1002] sm:$0x3]
      %v1004 = vadd.f32 %v1003, %v920
      %v1005 = vxor.u32 %v1004, 2147483648
      %v1006 = vmul.f32 %v1005, 1.442695
      %v1007 = vpow.pop %v1006
      %v1008 = vadd.f32 %v1007, 1.0
      %v1009 = vrcp.pop %v1008
      %v1010 = vmul.f32 1.0, %v1009
      %s1011 = scalar_lea.vmem %s453, 2
      %v1012 = vld [vmem:[%s1011] sm:$0x3]
      %v1013 = vmul.f32 %v1001, %v990
      %v1014 = vadd.f32 %v1012, %v1013
      %v1015 = vtanh.pop %v1014
      %v1016 = vsub.f32 1.0, %v1010
      %v1017 = vmul.f32 %v1016, %v1015
      %v1018 = vmul.f32 %v1010, %v779
      %v1019 = vadd.f32 %v1017, %v1018
      %s1020 = sadd.s32 %s490, 1
      %v1021 = vstv %s1020
      %vm1022 = vcmp.lt.s32.totalorder %v1021, %v489
      %v1023 = vsel %vm1022, 1, 0
      %1024 = vset.pattern.permute.xlu0 0
      %1025 = vperm.xlu0 %1024, %v1023
      %v1026 = vpop.permute.xlu0 %1025
      %vm1027 = vcmp.eq.s32.totalorder %v1026, 1
      %v1028 = vsel %vm1027, %v1019, %v779
      %1029 = vst.msk [vmem:[#allocation2] sm:$0x3] %vm775, %v1028
      %v1030 = vsel %vm1027, %v1019, 0.0
      %s1031 = scalar_lea.vmem %s476, 2
      %1032 = vst.msk [vmem:[%s1031] sm:$0x3] %vm775, %v1030
      %v1033 = vld [vmem:[#allocation2] sm:$0x3]
      %v1035 = vsel %vm517, %v1033, 0
      %1037 = vmatprep.subr.mxu0 0.0
      %1038 = vmatpush1.msra.mxu0 0.0
      %1039 = vmatprep.subr.mxu0 0.0
      %1040 = vmatpush1.msra.mxu0 0.0
      %1041 = vmatprep.subr.mxu0 0.0
      %1042 = vmatpush1.msra.mxu0 0.0
      %1043 = vmatprep.subr.mxu0 0.0
      %1044 = vmatpush1.msra.mxu0 0.0
      %1045 = vmatprep.subr.mxu0 0.0
      %1046 = vmatpush1.msra.mxu0 0.0
      %1047 = vmatprep.subr.mxu0 0.0
      %1048 = vmatpush1.msra.mxu0 0.0
      %1049 = vmatprep.subr.mxu0 0.0
      %1050 = vmatpush1.msra.mxu0 0.0
      %1051 = vmatprep.subr.mxu0 0.0
      %1052 = vmatpush1.msra.mxu0 0.0
      %1053 = vmatprep.subr.mxu0 0.0
      %1054 = vmatpush1.msra.mxu0 0.0
      %1055 = vmatprep.subr.mxu0 0.0
      %1056 = vmatpush1.msra.mxu0 0.0
      %1057 = vmatprep.subr.mxu0 0.0
      %1058 = vmatpush1.msra.mxu0 0.0
      %1059 = vmatprep.subr.mxu0 0.0
      %1060 = vmatpush1.msra.mxu0 0.0
      %1061 = vmatprep.subr.mxu0 0.0
      %1062 = vmatpush1.msra.mxu0 %v494
      %1063 = vmatprep.subr.mxu0 0.0
      %1064 = vmatpush1.msra.mxu0 %v493
      %1065 = vmatprep.subr.mxu0 0.0
      %1066 = vmatpush1.msra.mxu0 %v492
      %1067 = vmatprep.subr.mxu0 0.0
      %1068 = vmatpush1.msra.mxu0 %v491
      %1069 = vmatprep.subr.mxu0 0.0
      %1070 = vmatpush2.msra.mxu0 0.0
      %1071 = vmatprep.subr.mxu0 0.0
      %1072 = vmatpush2.msra.mxu0 0.0
      %1073 = vmatprep.subr.mxu0 0.0
      %1074 = vmatpush2.msra.mxu0 0.0
      %1075 = vmatprep.subr.mxu0 0.0
      %1076 = vmatpush2.msra.mxu0 0.0
      %1077 = vmatprep.subr.mxu0 0.0
      %1078 = vmatpush2.msra.mxu0 0.0
      %1079 = vmatprep.subr.mxu0 0.0
      %1080 = vmatpush2.msra.mxu0 0.0
      %1081 = vmatprep.subr.mxu0 0.0
      %1082 = vmatpush2.msra.mxu0 0.0
      %1083 = vmatprep.subr.mxu0 0.0
      %1084 = vmatpush2.msra.mxu0 0.0
      %1085 = vmatprep.subr.mxu0 0.0
      %1086 = vmatpush2.msra.mxu0 0.0
      %1087 = vmatprep.subr.mxu0 0.0
      %1088 = vmatpush2.msra.mxu0 0.0
      %1089 = vmatprep.subr.mxu0 0.0
      %1090 = vmatpush2.msra.mxu0 0.0
      %1091 = vmatprep.subr.mxu0 0.0
      %1092 = vmatpush2.msra.mxu0 0.0
      %1093 = vmatprep.subr.mxu0 0.0
      %1094 = vmatpush2.msra.mxu0 0.0
      %1095 = vmatprep.subr.mxu0 0.0
      %1096 = vmatpush2.msra.mxu0 0.0
      %1097 = vmatprep.subr.mxu0 0.0
      %1098 = vmatpush2.msra.mxu0 0.0
      %1099 = vmatprep.subr.mxu0 0.0
      %1100 = vmatpush2.msra.mxu0 0.0
      %1101 = vmatprep.mubr.f32.mxu0 0.0
      %1102 = vmatmul.mubr.f32.gmra.mxu0 %v1035
      %v1103 = vpop.f32.mrf.mxu0
      %v1104 = vadd.f32 %v515, %v1103
      %v1105 = vpop.f32.mrf.mxu0
      %1106 = vdwg.mxu0
      %1107 = vmatprep.subr.mxu0 0.0
      %1108 = vmatpush1.msra.mxu0 0.0
      %1109 = vmatprep.subr.mxu0 0.0
      %1110 = vmatpush1.msra.mxu0 0.0
      %1111 = vmatprep.subr.mxu0 0.0
      %1112 = vmatpush1.msra.mxu0 0.0
      %1113 = vmatprep.subr.mxu0 0.0
      %1114 = vmatpush1.msra.mxu0 0.0
      %1115 = vmatprep.subr.mxu0 0.0
      %1116 = vmatpush1.msra.mxu0 0.0
      %1117 = vmatprep.subr.mxu0 0.0
      %1118 = vmatpush1.msra.mxu0 0.0
      %1119 = vmatprep.subr.mxu0 0.0
      %1120 = vmatpush1.msra.mxu0 0.0
      %1121 = vmatprep.subr.mxu0 0.0
      %1122 = vmatpush1.msra.mxu0 0.0
      %1123 = vmatprep.subr.mxu0 0.0
      %1124 = vmatpush1.msra.mxu0 0.0
      %1125 = vmatprep.subr.mxu0 0.0
      %1126 = vmatpush1.msra.mxu0 0.0
      %1127 = vmatprep.subr.mxu0 0.0
      %1128 = vmatpush1.msra.mxu0 0.0
      %1129 = vmatprep.subr.mxu0 0.0
      %1130 = vmatpush1.msra.mxu0 0.0
      %1131 = vmatprep.subr.mxu0 0.0
      %1132 = vmatpush1.msra.mxu0 %v499
      %1133 = vmatprep.subr.mxu0 0.0
      %1134 = vmatpush1.msra.mxu0 %v498
      %1135 = vmatprep.subr.mxu0 0.0
      %1136 = vmatpush1.msra.mxu0 %v497
      %1137 = vmatprep.subr.mxu0 0.0
      %1138 = vmatpush1.msra.mxu0 %v496
      %1139 = vmatprep.subr.mxu0 0.0
      %1140 = vmatpush2.msra.mxu0 0.0
      %1141 = vmatprep.subr.mxu0 0.0
      %1142 = vmatpush2.msra.mxu0 0.0
      %1143 = vmatprep.subr.mxu0 0.0
      %1144 = vmatpush2.msra.mxu0 0.0
      %1145 = vmatprep.subr.mxu0 0.0
      %1146 = vmatpush2.msra.mxu0 0.0
      %1147 = vmatprep.subr.mxu0 0.0
      %1148 = vmatpush2.msra.mxu0 0.0
      %1149 = vmatprep.subr.mxu0 0.0
      %1150 = vmatpush2.msra.mxu0 0.0
      %1151 = vmatprep.subr.mxu0 0.0
      %1152 = vmatpush2.msra.mxu0 0.0
      %1153 = vmatprep.subr.mxu0 0.0
      %1154 = vmatpush2.msra.mxu0 0.0
      %1155 = vmatprep.subr.mxu0 0.0
      %1156 = vmatpush2.msra.mxu0 0.0
      %1157 = vmatprep.subr.mxu0 0.0
      %1158 = vmatpush2.msra.mxu0 0.0
      %1159 = vmatprep.subr.mxu0 0.0
      %1160 = vmatpush2.msra.mxu0 0.0
      %1161 = vmatprep.subr.mxu0 0.0
      %1162 = vmatpush2.msra.mxu0 0.0
      %1163 = vmatprep.subr.mxu0 0.0
      %1164 = vmatpush2.msra.mxu0 0.0
      %1165 = vmatprep.subr.mxu0 0.0
      %1166 = vmatpush2.msra.mxu0 0.0
      %1167 = vmatprep.subr.mxu0 0.0
      %1168 = vmatpush2.msra.mxu0 0.0
      %1169 = vmatprep.subr.mxu0 0.0
      %1170 = vmatpush2.msra.mxu0 0.0
      %1171 = vmatprep.mubr.f32.mxu0 0.0
      %1172 = vmatmul.mubr.f32.gmra.mxu0 %v1035
      %v1173 = vpop.f32.mrf.mxu0
      %v1174 = vadd.f32 %v595, %v1173
      %v1175 = vpop.f32.mrf.mxu0
      %1176 = vdwg.mxu0
      %1177 = vmatprep.subr.mxu0 0.0
      %1178 = vmatpush1.msra.mxu0 0.0
      %1179 = vmatprep.subr.mxu0 0.0
      %1180 = vmatpush1.msra.mxu0 0.0
      %1181 = vmatprep.subr.mxu0 0.0
      %1182 = vmatpush1.msra.mxu0 0.0
      %1183 = vmatprep.subr.mxu0 0.0
      %1184 = vmatpush1.msra.mxu0 0.0
      %1185 = vmatprep.subr.mxu0 0.0
      %1186 = vmatpush1.msra.mxu0 0.0
      %1187 = vmatprep.subr.mxu0 0.0
      %1188 = vmatpush1.msra.mxu0 0.0
      %1189 = vmatprep.subr.mxu0 0.0
      %1190 = vmatpush1.msra.mxu0 0.0
      %1191 = vmatprep.subr.mxu0 0.0
      %1192 = vmatpush1.msra.mxu0 0.0
      %1193 = vmatprep.subr.mxu0 0.0
      %1194 = vmatpush1.msra.mxu0 0.0
      %1195 = vmatprep.subr.mxu0 0.0
      %1196 = vmatpush1.msra.mxu0 0.0
      %1197 = vmatprep.subr.mxu0 0.0
      %1198 = vmatpush1.msra.mxu0 0.0
      %1199 = vmatprep.subr.mxu0 0.0
      %1200 = vmatpush1.msra.mxu0 0.0
      %1201 = vmatprep.subr.mxu0 0.0
      %1202 = vmatpush1.msra.mxu0 %v504
      %1203 = vmatprep.subr.mxu0 0.0
      %1204 = vmatpush1.msra.mxu0 %v503
      %1205 = vmatprep.subr.mxu0 0.0
      %1206 = vmatpush1.msra.mxu0 %v502
      %1207 = vmatprep.subr.mxu0 0.0
      %1208 = vmatpush1.msra.mxu0 %v501
      %1209 = vmatprep.subr.mxu0 0.0
      %1210 = vmatpush2.msra.mxu0 0.0
      %1211 = vmatprep.subr.mxu0 0.0
      %1212 = vmatpush2.msra.mxu0 0.0
      %1213 = vmatprep.subr.mxu0 0.0
      %1214 = vmatpush2.msra.mxu0 0.0
      %1215 = vmatprep.subr.mxu0 0.0
      %1216 = vmatpush2.msra.mxu0 0.0
      %1217 = vmatprep.subr.mxu0 0.0
      %1218 = vmatpush2.msra.mxu0 0.0
      %1219 = vmatprep.subr.mxu0 0.0
      %1220 = vmatpush2.msra.mxu0 0.0
      %1221 = vmatprep.subr.mxu0 0.0
      %1222 = vmatpush2.msra.mxu0 0.0
      %1223 = vmatprep.subr.mxu0 0.0
      %1224 = vmatpush2.msra.mxu0 0.0
      %1225 = vmatprep.subr.mxu0 0.0
      %1226 = vmatpush2.msra.mxu0 0.0
      %1227 = vmatprep.subr.mxu0 0.0
      %1228 = vmatpush2.msra.mxu0 0.0
      %1229 = vmatprep.subr.mxu0 0.0
      %1230 = vmatpush2.msra.mxu0 0.0
      %1231 = vmatprep.subr.mxu0 0.0
      %1232 = vmatpush2.msra.mxu0 0.0
      %1233 = vmatprep.subr.mxu0 0.0
      %1234 = vmatpush2.msra.mxu0 0.0
      %1235 = vmatprep.subr.mxu0 0.0
      %1236 = vmatpush2.msra.mxu0 0.0
      %1237 = vmatprep.subr.mxu0 0.0
      %1238 = vmatpush2.msra.mxu0 0.0
      %1239 = vmatprep.subr.mxu0 0.0
      %1240 = vmatpush2.msra.mxu0 0.0
      %1241 = vmatprep.mubr.f32.mxu0 0.0
      %1242 = vmatmul.mubr.f32.gmra.mxu0 %v1035
      %v1243 = vpop.f32.mrf.mxu0
      %v1244 = vadd.f32 %v671, %v1243
      %v1245 = vpop.f32.mrf.mxu0
      %1246 = vdwg.mxu0
      %s1247 = scalar_lea.vmem %s433, 4
      %v1248 = vld [vmem:[%s1247] sm:$0x3]
      %v1249 = vadd.f32 %v1248, %v1104
      %v1250 = vxor.u32 %v1249, 2147483648
      %v1251 = vmul.f32 %v1250, 1.442695
      %v1252 = vpow.pop %v1251
      %v1253 = vadd.f32 %v1252, 1.0
      %v1254 = vrcp.pop %v1253
      %v1255 = vmul.f32 1.0, %v1254
      %s1256 = scalar_lea.vmem %s443, 4
      %v1257 = vld [vmem:[%s1256] sm:$0x3]
      %v1258 = vadd.f32 %v1257, %v1174
      %v1259 = vxor.u32 %v1258, 2147483648
      %v1260 = vmul.f32 %v1259, 1.442695
      %v1261 = vpow.pop %v1260
      %v1262 = vadd.f32 %v1261, 1.0
      %v1263 = vrcp.pop %v1262
      %v1264 = vmul.f32 1.0, %v1263
      %s1265 = scalar_lea.vmem %s453, 4
      %v1266 = vld [vmem:[%s1265] sm:$0x3]
      %v1267 = vmul.f32 %v1255, %v1244
      %v1268 = vadd.f32 %v1266, %v1267
      %v1269 = vtanh.pop %v1268
      %v1270 = vsub.f32 1.0, %v1264
      %v1271 = vmul.f32 %v1270, %v1269
      %v1272 = vmul.f32 %v1264, %v1033
      %v1273 = vadd.f32 %v1271, %v1272
      %s1274 = sadd.s32 %s490, 2
      %v1275 = vstv %s1274
      %vm1276 = vcmp.lt.s32.totalorder %v1275, %v489
      %v1277 = vsel %vm1276, 1, 0
      %1278 = vset.pattern.permute.xlu0 0
      %1279 = vperm.xlu0 %1278, %v1277
      %v1280 = vpop.permute.xlu0 %1279
      %vm1281 = vcmp.eq.s32.totalorder %v1280, 1
      %v1282 = vsel %vm1281, %v1273, %v1033
      %1283 = vst.msk [vmem:[#allocation2] sm:$0x3] %vm775, %v1282
      %v1284 = vsel %vm1281, %v1273, 0.0
      %s1285 = scalar_lea.vmem %s476, 4
      %1286 = vst.msk [vmem:[%s1285] sm:$0x3] %vm775, %v1284
      %v1287 = vld [vmem:[#allocation2] sm:$0x3]
      %v1289 = vsel %vm517, %v1287, 0
      %1291 = vmatprep.subr.mxu0 0.0
      %1292 = vmatpush1.msra.mxu0 0.0
      %1293 = vmatprep.subr.mxu0 0.0
      %1294 = vmatpush1.msra.mxu0 0.0
      %1295 = vmatprep.subr.mxu0 0.0
      %1296 = vmatpush1.msra.mxu0 0.0
      %1297 = vmatprep.subr.mxu0 0.0
      %1298 = vmatpush1.msra.mxu0 0.0
      %1299 = vmatprep.subr.mxu0 0.0
      %1300 = vmatpush1.msra.mxu0 0.0
      %1301 = vmatprep.subr.mxu0 0.0
      %1302 = vmatpush1.msra.mxu0 0.0
      %1303 = vmatprep.subr.mxu0 0.0
      %1304 = vmatpush1.msra.mxu0 0.0
      %1305 = vmatprep.subr.mxu0 0.0
      %1306 = vmatpush1.msra.mxu0 0.0
      %1307 = vmatprep.subr.mxu0 0.0
      %1308 = vmatpush1.msra.mxu0 0.0
      %1309 = vmatprep.subr.mxu0 0.0
      %1310 = vmatpush1.msra.mxu0 0.0
      %1311 = vmatprep.subr.mxu0 0.0
      %1312 = vmatpush1.msra.mxu0 0.0
      %1313 = vmatprep.subr.mxu0 0.0
      %1314 = vmatpush1.msra.mxu0 0.0
      %1315 = vmatprep.subr.mxu0 0.0
      %1316 = vmatpush1.msra.mxu0 %v494
      %1317 = vmatprep.subr.mxu0 0.0
      %1318 = vmatpush1.msra.mxu0 %v493
      %1319 = vmatprep.subr.mxu0 0.0
      %1320 = vmatpush1.msra.mxu0 %v492
      %1321 = vmatprep.subr.mxu0 0.0
      %1322 = vmatpush1.msra.mxu0 %v491
      %1323 = vmatprep.subr.mxu0 0.0
      %1324 = vmatpush2.msra.mxu0 0.0
      %1325 = vmatprep.subr.mxu0 0.0
      %1326 = vmatpush2.msra.mxu0 0.0
      %1327 = vmatprep.subr.mxu0 0.0
      %1328 = vmatpush2.msra.mxu0 0.0
      %1329 = vmatprep.subr.mxu0 0.0
      %1330 = vmatpush2.msra.mxu0 0.0
      %1331 = vmatprep.subr.mxu0 0.0
      %1332 = vmatpush2.msra.mxu0 0.0
      %1333 = vmatprep.subr.mxu0 0.0
      %1334 = vmatpush2.msra.mxu0 0.0
      %1335 = vmatprep.subr.mxu0 0.0
      %1336 = vmatpush2.msra.mxu0 0.0
      %1337 = vmatprep.subr.mxu0 0.0
      %1338 = vmatpush2.msra.mxu0 0.0
      %1339 = vmatprep.subr.mxu0 0.0
      %1340 = vmatpush2.msra.mxu0 0.0
      %1341 = vmatprep.subr.mxu0 0.0
      %1342 = vmatpush2.msra.mxu0 0.0
      %1343 = vmatprep.subr.mxu0 0.0
      %1344 = vmatpush2.msra.mxu0 0.0
      %1345 = vmatprep.subr.mxu0 0.0
      %1346 = vmatpush2.msra.mxu0 0.0
      %1347 = vmatprep.subr.mxu0 0.0
      %1348 = vmatpush2.msra.mxu0 0.0
      %1349 = vmatprep.subr.mxu0 0.0
      %1350 = vmatpush2.msra.mxu0 0.0
      %1351 = vmatprep.subr.mxu0 0.0
      %1352 = vmatpush2.msra.mxu0 0.0
      %1353 = vmatprep.subr.mxu0 0.0
      %1354 = vmatpush2.msra.mxu0 0.0
      %1355 = vmatprep.mubr.f32.mxu0 0.0
      %1356 = vmatmul.mubr.f32.gmra.mxu0 %v1289
      %v1357 = vpop.f32.mrf.mxu0
      %v1358 = vadd.f32 %v515, %v1357
      %v1359 = vpop.f32.mrf.mxu0
      %1360 = vdwg.mxu0
      %1361 = vmatprep.subr.mxu0 0.0
      %1362 = vmatpush1.msra.mxu0 0.0
      %1363 = vmatprep.subr.mxu0 0.0
      %1364 = vmatpush1.msra.mxu0 0.0
      %1365 = vmatprep.subr.mxu0 0.0
      %1366 = vmatpush1.msra.mxu0 0.0
      %1367 = vmatprep.subr.mxu0 0.0
      %1368 = vmatpush1.msra.mxu0 0.0
      %1369 = vmatprep.subr.mxu0 0.0
      %1370 = vmatpush1.msra.mxu0 0.0
      %1371 = vmatprep.subr.mxu0 0.0
      %1372 = vmatpush1.msra.mxu0 0.0
      %1373 = vmatprep.subr.mxu0 0.0
      %1374 = vmatpush1.msra.mxu0 0.0
      %1375 = vmatprep.subr.mxu0 0.0
      %1376 = vmatpush1.msra.mxu0 0.0
      %1377 = vmatprep.subr.mxu0 0.0
      %1378 = vmatpush1.msra.mxu0 0.0
      %1379 = vmatprep.subr.mxu0 0.0
      %1380 = vmatpush1.msra.mxu0 0.0
      %1381 = vmatprep.subr.mxu0 0.0
      %1382 = vmatpush1.msra.mxu0 0.0
      %1383 = vmatprep.subr.mxu0 0.0
      %1384 = vmatpush1.msra.mxu0 0.0
      %1385 = vmatprep.subr.mxu0 0.0
      %1386 = vmatpush1.msra.mxu0 %v499
      %1387 = vmatprep.subr.mxu0 0.0
      %1388 = vmatpush1.msra.mxu0 %v498
      %1389 = vmatprep.subr.mxu0 0.0
      %1390 = vmatpush1.msra.mxu0 %v497
      %1391 = vmatprep.subr.mxu0 0.0
      %1392 = vmatpush1.msra.mxu0 %v496
      %1393 = vmatprep.subr.mxu0 0.0
      %1394 = vmatpush2.msra.mxu0 0.0
      %1395 = vmatprep.subr.mxu0 0.0
      %1396 = vmatpush2.msra.mxu0 0.0
      %1397 = vmatprep.subr.mxu0 0.0
      %1398 = vmatpush2.msra.mxu0 0.0
      %1399 = vmatprep.subr.mxu0 0.0
      %1400 = vmatpush2.msra.mxu0 0.0
      %1401 = vmatprep.subr.mxu0 0.0
      %1402 = vmatpush2.msra.mxu0 0.0
      %1403 = vmatprep.subr.mxu0 0.0
      %1404 = vmatpush2.msra.mxu0 0.0
      %1405 = vmatprep.subr.mxu0 0.0
      %1406 = vmatpush2.msra.mxu0 0.0
      %1407 = vmatprep.subr.mxu0 0.0
      %1408 = vmatpush2.msra.mxu0 0.0
      %1409 = vmatprep.subr.mxu0 0.0
      %1410 = vmatpush2.msra.mxu0 0.0
      %1411 = vmatprep.subr.mxu0 0.0
      %1412 = vmatpush2.msra.mxu0 0.0
      %1413 = vmatprep.subr.mxu0 0.0
      %1414 = vmatpush2.msra.mxu0 0.0
      %1415 = vmatprep.subr.mxu0 0.0
      %1416 = vmatpush2.msra.mxu0 0.0
      %1417 = vmatprep.subr.mxu0 0.0
      %1418 = vmatpush2.msra.mxu0 0.0
      %1419 = vmatprep.subr.mxu0 0.0
      %1420 = vmatpush2.msra.mxu0 0.0
      %1421 = vmatprep.subr.mxu0 0.0
      %1422 = vmatpush2.msra.mxu0 0.0
      %1423 = vmatprep.subr.mxu0 0.0
      %1424 = vmatpush2.msra.mxu0 0.0
      %1425 = vmatprep.mubr.f32.mxu0 0.0
      %1426 = vmatmul.mubr.f32.gmra.mxu0 %v1289
      %v1427 = vpop.f32.mrf.mxu0
      %v1428 = vadd.f32 %v595, %v1427
      %v1429 = vpop.f32.mrf.mxu0
      %1430 = vdwg.mxu0
      %1431 = vmatprep.subr.mxu0 0.0
      %1432 = vmatpush1.msra.mxu0 0.0
      %1433 = vmatprep.subr.mxu0 0.0
      %1434 = vmatpush1.msra.mxu0 0.0
      %1435 = vmatprep.subr.mxu0 0.0
      %1436 = vmatpush1.msra.mxu0 0.0
      %1437 = vmatprep.subr.mxu0 0.0
      %1438 = vmatpush1.msra.mxu0 0.0
      %1439 = vmatprep.subr.mxu0 0.0
      %1440 = vmatpush1.msra.mxu0 0.0
      %1441 = vmatprep.subr.mxu0 0.0
      %1442 = vmatpush1.msra.mxu0 0.0
      %1443 = vmatprep.subr.mxu0 0.0
      %1444 = vmatpush1.msra.mxu0 0.0
      %1445 = vmatprep.subr.mxu0 0.0
      %1446 = vmatpush1.msra.mxu0 0.0
      %1447 = vmatprep.subr.mxu0 0.0
      %1448 = vmatpush1.msra.mxu0 0.0
      %1449 = vmatprep.subr.mxu0 0.0
      %1450 = vmatpush1.msra.mxu0 0.0
      %1451 = vmatprep.subr.mxu0 0.0
      %1452 = vmatpush1.msra.mxu0 0.0
      %1453 = vmatprep.subr.mxu0 0.0
      %1454 = vmatpush1.msra.mxu0 0.0
      %1455 = vmatprep.subr.mxu0 0.0
      %1456 = vmatpush1.msra.mxu0 %v504
      %1457 = vmatprep.subr.mxu0 0.0
      %1458 = vmatpush1.msra.mxu0 %v503
      %1459 = vmatprep.subr.mxu0 0.0
      %1460 = vmatpush1.msra.mxu0 %v502
      %1461 = vmatprep.subr.mxu0 0.0
      %1462 = vmatpush1.msra.mxu0 %v501
      %1463 = vmatprep.subr.mxu0 0.0
      %1464 = vmatpush2.msra.mxu0 0.0
      %1465 = vmatprep.subr.mxu0 0.0
      %1466 = vmatpush2.msra.mxu0 0.0
      %1467 = vmatprep.subr.mxu0 0.0
      %1468 = vmatpush2.msra.mxu0 0.0
      %1469 = vmatprep.subr.mxu0 0.0
      %1470 = vmatpush2.msra.mxu0 0.0
      %1471 = vmatprep.subr.mxu0 0.0
      %1472 = vmatpush2.msra.mxu0 0.0
      %1473 = vmatprep.subr.mxu0 0.0
      %1474 = vmatpush2.msra.mxu0 0.0
      %1475 = vmatprep.subr.mxu0 0.0
      %1476 = vmatpush2.msra.mxu0 0.0
      %1477 = vmatprep.subr.mxu0 0.0
      %1478 = vmatpush2.msra.mxu0 0.0
      %1479 = vmatprep.subr.mxu0 0.0
      %1480 = vmatpush2.msra.mxu0 0.0
      %1481 = vmatprep.subr.mxu0 0.0
      %1482 = vmatpush2.msra.mxu0 0.0
      %1483 = vmatprep.subr.mxu0 0.0
      %1484 = vmatpush2.msra.mxu0 0.0
      %1485 = vmatprep.subr.mxu0 0.0
      %1486 = vmatpush2.msra.mxu0 0.0
      %1487 = vmatprep.subr.mxu0 0.0
      %1488 = vmatpush2.msra.mxu0 0.0
      %1489 = vmatprep.subr.mxu0 0.0
      %1490 = vmatpush2.msra.mxu0 0.0
      %1491 = vmatprep.subr.mxu0 0.0
      %1492 = vmatpush2.msra.mxu0 0.0
      %1493 = vmatprep.subr.mxu0 0.0
      %1494 = vmatpush2.msra.mxu0 0.0
      %1495 = vmatprep.mubr.f32.mxu0 0.0
      %1496 = vmatmul.mubr.f32.gmra.mxu0 %v1289
      %v1497 = vpop.f32.mrf.mxu0
      %v1498 = vadd.f32 %v671, %v1497
      %v1499 = vpop.f32.mrf.mxu0
      %1500 = vdwg.mxu0
      %s1501 = scalar_lea.vmem %s433, 6
      %v1502 = vld [vmem:[%s1501] sm:$0x3]
      %v1503 = vadd.f32 %v1502, %v1358
      %v1504 = vxor.u32 %v1503, 2147483648
      %v1505 = vmul.f32 %v1504, 1.442695
      %v1506 = vpow.pop %v1505
      %v1507 = vadd.f32 %v1506, 1.0
      %v1508 = vrcp.pop %v1507
      %v1509 = vmul.f32 1.0, %v1508
      %s1510 = scalar_lea.vmem %s443, 6
      %v1511 = vld [vmem:[%s1510] sm:$0x3]
      %v1512 = vadd.f32 %v1511, %v1428
      %v1513 = vxor.u32 %v1512, 2147483648
      %v1514 = vmul.f32 %v1513, 1.442695
      %v1515 = vpow.pop %v1514
      %v1516 = vadd.f32 %v1515, 1.0
      %v1517 = vrcp.pop %v1516
      %v1518 = vmul.f32 1.0, %v1517
      %s1519 = scalar_lea.vmem %s453, 6
      %v1520 = vld [vmem:[%s1519] sm:$0x3]
      %v1521 = vmul.f32 %v1509, %v1498
      %v1522 = vadd.f32 %v1520, %v1521
      %v1523 = vtanh.pop %v1522
      %v1524 = vsub.f32 1.0, %v1518
      %v1525 = vmul.f32 %v1524, %v1523
      %v1526 = vmul.f32 %v1518, %v1287
      %v1527 = vadd.f32 %v1525, %v1526
      %s1528 = sadd.s32 %s490, 3
      %v1529 = vstv %s1528
      %vm1530 = vcmp.lt.s32.totalorder %v1529, %v489
      %v1531 = vsel %vm1530, 1, 0
      %1532 = vset.pattern.permute.xlu0 0
      %1533 = vperm.xlu0 %1532, %v1531
      %v1534 = vpop.permute.xlu0 %1533
      %vm1535 = vcmp.eq.s32.totalorder %v1534, 1
      %v1536 = vsel %vm1535, %v1527, %v1287
      %1537 = vst.msk [vmem:[#allocation2] sm:$0x3] %vm775, %v1536
      %v1538 = vsel %vm1535, %v1527, 0.0
      %s1539 = scalar_lea.vmem %s476, 6
      %1540 = vst.msk [vmem:[%s1539] sm:$0x3] %vm775, %v1538
      %v1541 = vld [vmem:[#allocation2] sm:$0x3]
      %1542 = vst.msk [vmem:[%s481] sm:$0x3] %vm775, %v1541
      %s1543 = smul.u32 4, %s25
      %p1544 = scmp.lt.s32.totalorder %s24, 1
      %s1545 = scalar_select %p1544, %s24, 1
      %p1546 = scmp.lt.s32.totalorder %s1543, 7
      %s1547 = scalar_select %p1546, %s1543, 7
      %s1548 = smul.addr %s1545, 8
      %s1549 = sadd.s32 %s1547, %s1548
      %s1550 = smul.addr %s1549, 2
      %s1551 = scalar_lea.vmem %s7, %s1550
      %p1552 = scmp.lt.s32.totalorder %s24, 1
      %s1553 = scalar_select %p1552, %s24, 1
      %s1554 = smul.addr %s1553, 2
      %s1555 = scalar_lea.vmem %s8, %s1554
      // Predicated region
      $region53: #{plain_seq2seq_forward.4} parent=47 // pred_check
        %p1556 = pneg %p235
      $region54: #{plain_seq2seq_forward.4} parent=47 // pred_check_branch
        %1558 = sbr.rel (%p1556) target = $region56
      $region55: #{plain_seq2seq_forward.4} parent=47 // pred_region
        %s1559 = smul.u32 4, %s25
      $region56: #{plain_seq2seq_forward.4} parent=47 // pred_fallthru
        _
      // Predicated region
      $region57: #{plain_seq2seq_forward.4} parent=47 // pred_check
        %p1560 = pneg %p261
      $region58: #{plain_seq2seq_forward.4} parent=47 // pred_check_branch
        %1562 = sbr.rel (%p1560) target = $region60
      $region59: #{plain_seq2seq_forward.4} parent=47 // pred_region
        _
      $region60: #{plain_seq2seq_forward.4} parent=47 // pred_fallthru
        _
    $region48: #{plain_seq2seq_forward.4} parent=5 // pred_fallthru
      _
    %p1563 = scmp.le.s32.totalorder 2, %s15
    // Predicated region
    $region61: #{plain_seq2seq_forward.4} parent=5 // pred_check
      %p1564 = pneg %p1563
    $region62: #{plain_seq2seq_forward.4} parent=5 // pred_check_branch
      %1566 = sbr.rel (%p1564) target = $region64
    $region63: #{plain_seq2seq_forward.4} parent=5 // pred_region
      %s1567 = ssub.s32 %s15, 2
      // Predicated region
      $region65: #{plain_seq2seq_forward.4} parent=63 // pred_check
        %p1568 = pneg %p241
      $region66: #{plain_seq2seq_forward.4} parent=63 // pred_check_branch
        %1570 = sbr.rel (%p1568) target = $region68
      $region67: #{plain_seq2seq_forward.4} parent=63 // pred_region
        %s1571 = smul.u32 4, %s27
        %p1572 = scmp.lt.s32.totalorder %s26, 1
        %s1573 = scalar_select %p1572, %s26, 1
        %p1574 = scmp.lt.s32.totalorder %s1571, 7
        %s1575 = scalar_select %p1574, %s1571, 7
        %s1576 = smul.addr %s1573, 8
        %s1577 = sadd.s32 %s1575, %s1576
        %s1578 = smul.addr %s1577, 2
        %s1579 = scalar_lea.vmem %s7, %s1578
      $region68: #{plain_seq2seq_forward.4} parent=63 // pred_fallthru
        _
      // Predicated region
      $region69: #{plain_seq2seq_forward.4} parent=63 // pred_check
        %p1580 = pneg %p267
      $region70: #{plain_seq2seq_forward.4} parent=63 // pred_check_branch
        %1582 = sbr.rel (%p1580) target = $region72
      $region71: #{plain_seq2seq_forward.4} parent=63 // pred_region
        %p1583 = scmp.lt.s32.totalorder %s26, 1
        %s1584 = scalar_select %p1583, %s26, 1
        %s1585 = smul.addr %s1584, 2
        %s1586 = scalar_lea.vmem %s8, %s1585
      $region72: #{plain_seq2seq_forward.4} parent=63 // pred_fallthru
        _
    $region64: #{plain_seq2seq_forward.4} parent=5 // pred_fallthru
      _
  $region6: #{plain_seq2seq_forward.4} parent=0 // loop_footer
    %s19 = sadd.s32 1, %s15
  $region7: #{plain_seq2seq_forward.4} parent=0 // loop_footer_branch
    %14 = sbr.rel target = $region3
  $region8: #{plain_seq2seq_forward.4} parent=0 // loop_exit
    _

// kernel: plain_seq2seq_forward.5
$region0: #{plain_seq2seq_forward.5}
  #allocation0 [shape = 'u32[]', space=smem, size = 0x4, offset = 0x4, fixed_abs, tag = 'smem constant byte address 0x4 - core index']
  #allocation1 [shape = 'u32[144,128]{1,0:T(1,128)}', space=vmem, size = 0x12000, scoped, tag = 'internal scratch']
  #allocation2 [shape = 'f32[2,32]{1,0:T(2,128)}', space=vmem, size = 0x400, scoped, tag = 'scratch operand']
  %s0 = inlined_call_operand.vmem [shape: f32[1,8,2,32], index: 0, kind: input, shape index: {}]
  %s1 = inlined_call_operand.vmem [shape: f32[1,8,2,32], index: 1, kind: input, shape index: {}]
  %s2 = inlined_call_operand.vmem [shape: f32[1,8,2,32], index: 2, kind: input, shape index: {}]
  %s3 = inlined_call_operand.vmem [shape: f32[1,2,32], index: 3, kind: input, shape index: {}]
  %s4 = inlined_call_operand.vmem [shape: s32[2,1], index: 4, kind: input, shape index: {}]
  %s5 = inlined_call_operand.vmem [shape: f32[1,3,32,32], index: 5, kind: input, shape index: {}]
  %s6 = inlined_call_operand.vmem [shape: f32[1,3,1,32], index: 6, kind: input, shape index: {}]
  %s7 = inlined_call_operand.vmem [shape: f32[1,8,2,32], index: 7, kind: output, shape index: {0}]
  %s8 = inlined_call_operand.hbm [shape: f32[1,2,32], index: 8, kind: output, shape index: {1}]
  %9 = xla_tuple %s7, %s8
  %s10 = sld [smem:[#allocation0]]
  $region73: #{plain_seq2seq_forward.5} parent=0
    _
  %s12 = ssub.s32 1, %s10
  %s13 = scalar_select 0, %s12, %s10
  $region1: #{plain_seq2seq_forward.5} parent=0
    #allocation3 [shape = 'u8[1024]{0}', space=vmem, size = 0x400, scoped, tag = 'output window, operand 1, single buffered']
    #allocation4 [shape = 's32[2]{0}', space=sflag, size = 0x8, scoped, tag = 'scoped memory for plain_seq2seq_forward.5']
    %14 = vsyncpa [#allocation4], 0
    loop: start=0, step=1, limit=4
    $region2: #{plain_seq2seq_forward.5} parent=1 // loop_pre_header
      _
    $region3: #{plain_seq2seq_forward.5} parent=1 // loop_header
      %s16 = sphi 0, %s20
      %p17 = scmp.ge.s32.totalorder %s16, 4
      %s23 = sphi 0, %s35
      %s24 = sphi 0, %s31
      %s25 = sphi 0, %s23
      %s26 = sphi 0, %s24
      %s27 = sphi 0, %s25
      %s28 = sphi 0, %s26
      %s40 = sphi 0, %s42
      %s43 = sphi 0, %s40
      %s44 = sphi 0, %s43
      %s60 = sphi 0, %s44
      %s68 = sphi 0, %s70
      %s71 = sphi 0, %s68
      %s72 = sphi 0, %s71
      %s88 = sphi 0, %s72
      %s96 = sphi 0, %s98
      %s99 = sphi 0, %s96
      %s100 = sphi 0, %s99
      %s116 = sphi 0, %s100
      %s122 = sphi 0, %s124
      %s125 = sphi 0, %s122
      %s126 = sphi 0, %s125
      %s142 = sphi 0, %s126
      %s146 = sphi 0, %s146
      %s148 = sphi 0, %s146
      %s149 = sphi 0, %s148
      %s163 = sphi 0, %s149
      %s169 = sphi 0, %s171
      %s172 = sphi 0, %s169
      %s173 = sphi 0, %s172
      %s189 = sphi 0, %s173
      %s195 = sphi 0, %s197
      %s198 = sphi 0, %s195
      %s199 = sphi 0, %s198
      %s215 = sphi 0, %s199
      %s223 = sphi 0, %s225
      %s226 = sphi 0, %s223
      %s227 = sphi 0, %s226
      %s243 = sphi 0, %s227
      %s249 = sphi 0, %s251
      %s252 = sphi 0, %s249
      %s253 = sphi 0, %s252
      %s269 = sphi 0, %s253
    $region4: #{plain_seq2seq_forward.5} parent=1 // loop_header_branch
      %19 = sbr.rel (%p17) target = $region8
    $region5: #{plain_seq2seq_forward.5} parent=1 // loop_body
      %s21 = ssub.s32 %s16, 1
      %s22 = ssub.s32 %s16, 2
      %s29 = sadd.s32 1, %s24
      %p30 = scmp.ge.s32.totalorder %s29, 2
      %s31 = scalar_select %p30, 0, %s29
      %s32 = sadd.s32 1, %s23
      %s33 = scalar_select %p30, %s32, %s23
      %p34 = scmp.ge.s32.totalorder %s33, 1
      %s35 = scalar_select %p34, 0, %s33
      %s36 = ssub.s32 %s23, %s35
      %s37 = ssub.s32 %s24, %s31
      %s38 = sor.u32 %s36, %s37
      %p39 = scmp.eq.s32.totalorder %s38, 0
      %s41 = sadd.s32 %s40, 1
      %s42 = scalar_select %p39, %s40, %s41
      %p45 = pneg %p39
      %p46 = scmp.eq.s32.totalorder %s16, 1
      %p47 = por %p45, %p46
      %p48 = scmp.ne.s32.totalorder %s40, %s43
      %p49 = scmp.eq.s32.totalorder %s16, 0
      %p50 = por %p48, %p49
      %p51 = scmp.ne.s32.totalorder %s40, %s43
      %p52 = scmp.eq.s32.totalorder %s21, 1
      %p53 = por %p51, %p52
      %p54 = scmp.ne.s32.totalorder %s43, %s44
      %p55 = scmp.eq.s32.totalorder %s21, 0
      %p56 = por %p54, %p55
      %p57 = scmp.ne.s32.totalorder %s43, %s44
      %p58 = scmp.eq.s32.totalorder %s22, 1
      %p59 = por %p57, %p58
      %p61 = scmp.ne.s32.totalorder %s44, %s60
      %p62 = scmp.eq.s32.totalorder %s22, 0
      %p63 = por %p61, %p62
      %s64 = ssub.s32 %s23, %s35
      %s65 = ssub.s32 %s24, %s31
      %s66 = sor.u32 %s64, %s65
      %p67 = scmp.eq.s32.totalorder %s66, 0
      %s69 = sadd.s32 %s68, 1
      %s70 = scalar_select %p67, %s68, %s69
      %p73 = pneg %p67
      %p74 = scmp.eq.s32.totalorder %s16, 1
      %p75 = por %p73, %p74
      %p76 = scmp.ne.s32.totalorder %s68, %s71
      %p77 = scmp.eq.s32.totalorder %s16, 0
      %p78 = por %p76, %p77
      %p79 = scmp.ne.s32.totalorder %s68, %s71
      %p80 = scmp.eq.s32.totalorder %s21, 1
      %p81 = por %p79, %p80
      %p82 = scmp.ne.s32.totalorder %s71, %s72
      %p83 = scmp.eq.s32.totalorder %s21, 0
      %p84 = por %p82, %p83
      %p85 = scmp.ne.s32.totalorder %s71, %s72
      %p86 = scmp.eq.s32.totalorder %s22, 1
      %p87 = por %p85, %p86
      %p89 = scmp.ne.s32.totalorder %s72, %s88
      %p90 = scmp.eq.s32.totalorder %s22, 0
      %p91 = por %p89, %p90
      %s92 = ssub.s32 %s23, %s35
      %s93 = ssub.s32 %s24, %s31
      %s94 = sor.u32 %s92, %s93
      %p95 = scmp.eq.s32.totalorder %s94, 0
      %s97 = sadd.s32 %s96, 1
      %s98 = scalar_select %p95, %s96, %s97
      %p101 = pneg %p95
      %p102 = scmp.eq.s32.totalorder %s16, 1
      %p103 = por %p101, %p102
      %p104 = scmp.ne.s32.totalorder %s96, %s99
      %p105 = scmp.eq.s32.totalorder %s16, 0
      %p106 = por %p104, %p105
      %p107 = scmp.ne.s32.totalorder %s96, %s99
      %p108 = scmp.eq.s32.totalorder %s21, 1
      %p109 = por %p107, %p108
      %p110 = scmp.ne.s32.totalorder %s99, %s100
      %p111 = scmp.eq.s32.totalorder %s21, 0
      %p112 = por %p110, %p111
      %p113 = scmp.ne.s32.totalorder %s99, %s100
      %p114 = scmp.eq.s32.totalorder %s22, 1
      %p115 = por %p113, %p114
      %p117 = scmp.ne.s32.totalorder %s100, %s116
      %p118 = scmp.eq.s32.totalorder %s22, 0
      %p119 = por %p117, %p118
      %s120 = ssub.s32 %s23, %s35
      %p121 = scmp.eq.s32.totalorder %s120, 0
      %s123 = sadd.s32 %s122, 1
      %s124 = scalar_select %p121, %s122, %s123
      %p127 = pneg %p121
      %p128 = scmp.eq.s32.totalorder %s16, 1
      %p129 = por %p127, %p128
      %p130 = scmp.ne.s32.totalorder %s122, %s125
      %p131 = scmp.eq.s32.totalorder %s16, 0
      %p132 = por %p130, %p131
      %p133 = scmp.ne.s32.totalorder %s122, %s125
      %p134 = scmp.eq.s32.totalorder %s21, 1
      %p135 = por %p133, %p134
      %p136 = scmp.ne.s32.totalorder %s125, %s126
      %p137 = scmp.eq.s32.totalorder %s21, 0
      %p138 = por %p136, %p137
      %p139 = scmp.ne.s32.totalorder %s125, %s126
      %p140 = scmp.eq.s32.totalorder %s22, 1
      %p141 = por %p139, %p140
      %p143 = scmp.ne.s32.totalorder %s126, %s142
      %p144 = scmp.eq.s32.totalorder %s22, 0
      %p145 = por %p143, %p144
      %s147 = sadd.s32 %s146, 1
      %p150 = scmp.eq.s32.totalorder %s16, 1
      %p151 = scmp.ne.s32.totalorder %s146, %s148
      %p152 = scmp.eq.s32.totalorder %s16, 0
      %p153 = por %p151, %p152
      %p154 = scmp.ne.s32.totalorder %s146, %s148
      %p155 = scmp.eq.s32.totalorder %s21, 1
      %p156 = por %p154, %p155
      %p157 = scmp.ne.s32.totalorder %s148, %s149
      %p158 = scmp.eq.s32.totalorder %s21, 0
      %p159 = por %p157, %p158
      %p160 = scmp.ne.s32.totalorder %s148, %s149
      %p161 = scmp.eq.s32.totalorder %s22, 1
      %p162 = por %p160, %p161
      %p164 = scmp.ne.s32.totalorder %s149, %s163
      %p165 = scmp.eq.s32.totalorder %s22, 0
      %p166 = por %p164, %p165
      %s167 = ssub.s32 %s23, %s35
      %p168 = scmp.eq.s32.totalorder %s167, 0
      %s170 = sadd.s32 %s169, 1
      %s171 = scalar_select %p168, %s169, %s170
      %p174 = pneg %p168
      %p175 = scmp.eq.s32.totalorder %s16, 1
      %p176 = por %p174, %p175
      %p177 = scmp.ne.s32.totalorder %s169, %s172
      %p178 = scmp.eq.s32.totalorder %s16, 0
      %p179 = por %p177, %p178
      %p180 = scmp.ne.s32.totalorder %s169, %s172
      %p181 = scmp.eq.s32.totalorder %s21, 1
      %p182 = por %p180, %p181
      %p183 = scmp.ne.s32.totalorder %s172, %s173
      %p184 = scmp.eq.s32.totalorder %s21, 0
      %p185 = por %p183, %p184
      %p186 = scmp.ne.s32.totalorder %s172, %s173
      %p187 = scmp.eq.s32.totalorder %s22, 1
      %p188 = por %p186, %p187
      %p190 = scmp.ne.s32.totalorder %s173, %s189
      %p191 = scmp.eq.s32.totalorder %s22, 0
      %p192 = por %p190, %p191
      %s193 = ssub.s32 %s23, %s35
      %p194 = scmp.eq.s32.totalorder %s193, 0
      %s196 = sadd.s32 %s195, 1
      %s197 = scalar_select %p194, %s195, %s196
      %p200 = pneg %p194
      %p201 = scmp.eq.s32.totalorder %s16, 1
      %p202 = por %p200, %p201
      %p203 = scmp.ne.s32.totalorder %s195, %s198
      %p204 = scmp.eq.s32.totalorder %s16, 0
      %p205 = por %p203, %p204
      %p206 = scmp.ne.s32.totalorder %s195, %s198
      %p207 = scmp.eq.s32.totalorder %s21, 1
      %p208 = por %p206, %p207
      %p209 = scmp.ne.s32.totalorder %s198, %s199
      %p210 = scmp.eq.s32.totalorder %s21, 0
      %p211 = por %p209, %p210
      %p212 = scmp.ne.s32.totalorder %s198, %s199
      %p213 = scmp.eq.s32.totalorder %s22, 1
      %p214 = por %p212, %p213
      %p216 = scmp.ne.s32.totalorder %s199, %s215
      %p217 = scmp.eq.s32.totalorder %s22, 0
      %p218 = por %p216, %p217
      %s219 = ssub.s32 %s23, %s35
      %s220 = ssub.s32 %s24, %s31
      %s221 = sor.u32 %s219, %s220
      %p222 = scmp.eq.s32.totalorder %s221, 0
      %s224 = sadd.s32 %s223, 1
      %s225 = scalar_select %p222, %s223, %s224
      %p228 = pneg %p222
      %p229 = scmp.eq.s32.totalorder %s16, 1
      %p230 = por %p228, %p229
      %p231 = scmp.ne.s32.totalorder %s223, %s226
      %p232 = scmp.eq.s32.totalorder %s16, 0
      %p233 = por %p231, %p232
      %p234 = scmp.ne.s32.totalorder %s223, %s226
      %p235 = scmp.eq.s32.totalorder %s21, 1
      %p236 = por %p234, %p235
      %p237 = scmp.ne.s32.totalorder %s226, %s227
      %p238 = scmp.eq.s32.totalorder %s21, 0
      %p239 = por %p237, %p238
      %p240 = scmp.ne.s32.totalorder %s226, %s227
      %p241 = scmp.eq.s32.totalorder %s22, 1
      %p242 = por %p240, %p241
      %p244 = scmp.ne.s32.totalorder %s227, %s243
      %p245 = scmp.eq.s32.totalorder %s22, 0
      %p246 = por %p244, %p245
      %s247 = ssub.s32 %s23, %s35
      %p248 = scmp.eq.s32.totalorder %s247, 0
      %s250 = sadd.s32 %s249, 1
      %s251 = scalar_select %p248, %s249, %s250
      %p254 = pneg %p248
      %p255 = scmp.eq.s32.totalorder %s16, 1
      %p256 = por %p254, %p255
      %p257 = scmp.ne.s32.totalorder %s249, %s252
      %p258 = scmp.eq.s32.totalorder %s16, 0
      %p259 = por %p257, %p258
      %p260 = scmp.ne.s32.totalorder %s249, %s252
      %p261 = scmp.eq.s32.totalorder %s21, 1
      %p262 = por %p260, %p261
      %p263 = scmp.ne.s32.totalorder %s252, %s253
      %p264 = scmp.eq.s32.totalorder %s21, 0
      %p265 = por %p263, %p264
      %p266 = scmp.ne.s32.totalorder %s252, %s253
      %p267 = scmp.eq.s32.totalorder %s22, 1
      %p268 = por %p266, %p267
      %p270 = scmp.ne.s32.totalorder %s253, %s269
      %p271 = scmp.eq.s32.totalorder %s22, 0
      %p272 = por %p270, %p271
      %p273 = scmp.le.s32.totalorder 1, %s16
      %p274 = scmp.lt.s32.totalorder %s16, 3
      %p275 = pnand %p273, %p274
      %p276 = pneg %p275
      // Predicated region
      $region9: #{plain_seq2seq_forward.5} parent=5 // pred_check
        _
      $region10: #{plain_seq2seq_forward.5} parent=5 // pred_check_branch
        %278 = sbr.rel (%p275) target = $region12
      $region11: #{plain_seq2seq_forward.5} parent=5 // pred_region
        %s279 = ssub.s32 %s16, 1
        // Predicated region
        $region13: #{plain_seq2seq_forward.5} parent=11 // pred_check
          %p280 = pneg %p138
        $region14: #{plain_seq2seq_forward.5} parent=11 // pred_check_branch
          %282 = sbr.rel (%p280) target = $region16
        $region15: #{plain_seq2seq_forward.5} parent=11 // pred_region
          %p283 = scmp.lt.s32.totalorder %s25, 0
          %s284 = scalar_select %p283, %s25, 0
          %s285 = smul.addr %s284, 2
          %s286 = scalar_lea.vmem %s3, %s285
        $region16: #{plain_seq2seq_forward.5} parent=11 // pred_fallthru
          _
        // Predicated region
        $region17: #{plain_seq2seq_forward.5} parent=11 // pred_check
          %p287 = pneg %p159
        $region18: #{plain_seq2seq_forward.5} parent=11 // pred_check_branch
          %289 = sbr.rel (%p287) target = $region20
        $region19: #{plain_seq2seq_forward.5} parent=11 // pred_region
          _
        $region20: #{plain_seq2seq_forward.5} parent=11 // pred_fallthru
          _
        // Predicated region
        $region21: #{plain_seq2seq_forward.5} parent=11 // pred_check
          %p290 = pneg %p185
        $region22: #{plain_seq2seq_forward.5} parent=11 // pred_check_branch
          %292 = sbr.rel (%p290) target = $region24
        $region23: #{plain_seq2seq_forward.5} parent=11 // pred_region
          %p293 = scmp.lt.s32.totalorder %s25, 0
          %s294 = scalar_select %p293, %s25, 0
          %s295 = smul.addr %s294, 12
          %s296 = smul.addr %s295, 8
          %s297 = scalar_lea.vmem %s5, %s296
        $region24: #{plain_seq2seq_forward.5} parent=11 // pred_fallthru
          _
        // Predicated region
        $region25: #{plain_seq2seq_forward.5} parent=11 // pred_check
          %p298 = pneg %p211
        $region26: #{plain_seq2seq_forward.5} parent=11 // pred_check_branch
          %300 = sbr.rel (%p298) target = $region28
        $region27: #{plain_seq2seq_forward.5} parent=11 // pred_region
          %p301 = scmp.lt.s32.totalorder %s25, 0
          %s302 = scalar_select %p301, %s25, 0
          %s303 = smul.addr %s302, 3
          %s304 = scalar_lea.vmem %s6, %s303
        $region28: #{plain_seq2seq_forward.5} parent=11 // pred_fallthru
          _
      $region12: #{plain_seq2seq_forward.5} parent=5 // pred_fallthru
        _
      %p305 = scmp.lt.s32.totalorder %s16, 2
      // Predicated region
      $region29: #{plain_seq2seq_forward.5} parent=5 // pred_check
        %p306 = pneg %p305
      $region30: #{plain_seq2seq_forward.5} parent=5 // pred_check_branch
        %308 = sbr.rel (%p306) target = $region32
      $region31: #{plain_seq2seq_forward.5} parent=5 // pred_region
        // Predicated region
        $region33: #{plain_seq2seq_forward.5} parent=31 // pred_check
          %p309 = pneg %p50
        $region34: #{plain_seq2seq_forward.5} parent=31 // pred_check_branch
          %311 = sbr.rel (%p309) target = $region36
        $region35: #{plain_seq2seq_forward.5} parent=31 // pred_region
          %s312 = smul.u32 4, %s24
          %p313 = scmp.lt.s32.totalorder %s23, 0
          %s314 = scalar_select %p313, %s23, 0
          %p315 = scmp.lt.s32.totalorder %s312, 7
          %s316 = scalar_select %p315, %s312, 7
          %s317 = smul.addr %s314, 8
          %s318 = sadd.s32 %s316, %s317
          %s319 = smul.addr %s318, 2
          %s320 = scalar_lea.vmem %s0, %s319
          %s321 = smul.u32 4, %s24
        $region36: #{plain_seq2seq_forward.5} parent=31 // pred_fallthru
          _
        // Predicated region
        $region37: #{plain_seq2seq_forward.5} parent=31 // pred_check
          %p322 = pneg %p78
        $region38: #{plain_seq2seq_forward.5} parent=31 // pred_check_branch
          %324 = sbr.rel (%p322) target = $region40
        $region39: #{plain_seq2seq_forward.5} parent=31 // pred_region
          %s325 = smul.u32 4, %s24
          %p326 = scmp.lt.s32.totalorder %s23, 0
          %s327 = scalar_select %p326, %s23, 0
          %p328 = scmp.lt.s32.totalorder %s325, 7
          %s329 = scalar_select %p328, %s325, 7
          %s330 = smul.addr %s327, 8
          %s331 = sadd.s32 %s329, %s330
          %s332 = smul.addr %s331, 2
          %s333 = scalar_lea.vmem %s1, %s332
          %s334 = smul.u32 4, %s24
        $region40: #{plain_seq2seq_forward.5} parent=31 // pred_fallthru
          _
        // Predicated region
        $region41: #{plain_seq2seq_forward.5} parent=31 // pred_check
          %p335 = pneg %p106
        $region42: #{plain_seq2seq_forward.5} parent=31 // pred_check_branch
          %337 = sbr.rel (%p335) target = $region44
        $region43: #{plain_seq2seq_forward.5} parent=31 // pred_region
          %s338 = smul.u32 4, %s24
          %p339 = scmp.lt.s32.totalorder %s23, 0
          %s340 = scalar_select %p339, %s23, 0
          %p341 = scmp.lt.s32.totalorder %s338, 7
          %s342 = scalar_select %p341, %s338, 7
          %s343 = smul.addr %s340, 8
          %s344 = sadd.s32 %s342, %s343
          %s345 = smul.addr %s344, 2
          %s346 = scalar_lea.vmem %s2, %s345
          %s347 = smul.u32 4, %s24
        $region44: #{plain_seq2seq_forward.5} parent=31 // pred_fallthru
          _
      $region32: #{plain_seq2seq_forward.5} parent=5 // pred_fallthru
        _
      %p348 = scmp.le.s32.totalorder 1, %s16
      %p349 = scmp.lt.s32.totalorder %s16, 3
      %p350 = pnand %p348, %p349
      %p351 = pneg %p350
      // Predicated region
      $region45: #{plain_seq2seq_forward.5} parent=5 // pred_check
        _
      $region46: #{plain_seq2seq_forward.5} parent=5 // pred_check_branch
        %353 = sbr.rel (%p350) target = $region48
      $region47: #{plain_seq2seq_forward.5} parent=5 // pred_region
        %s354 = ssub.s32 %s16, 1
        %s355 = smul.u32 4, %s26
        %p356 = scmp.lt.s32.totalorder %s25, 0
        %s357 = scalar_select %p356, %s25, 0
        %p358 = scmp.lt.s32.totalorder %s355, 7
        %s359 = scalar_select %p358, %s355, 7
        %s360 = smul.addr %s357, 8
        %s361 = sadd.s32 %s359, %s360
        %s362 = smul.addr %s361, 2
        %s363 = scalar_lea.vmem %s0, %s362
        %p364 = pneg %p56
        %p365 = pneg %p53
        %s366 = smul.u32 4, %s26
        %p367 = scmp.lt.s32.totalorder %s25, 0
        %s368 = scalar_select %p367, %s25, 0
        %p369 = scmp.lt.s32.totalorder %s366, 7
        %s370 = scalar_select %p369, %s366, 7
        %s371 = smul.addr %s368, 8
        %s372 = sadd.s32 %s370, %s371
        %s373 = smul.addr %s372, 2
        %s374 = scalar_lea.vmem %s1, %s373
        %p375 = pneg %p84
        %p376 = pneg %p81
        %s377 = smul.u32 4, %s26
        %p378 = scmp.lt.s32.totalorder %s25, 0
        %s379 = scalar_select %p378, %s25, 0
        %p380 = scmp.lt.s32.totalorder %s377, 7
        %s381 = scalar_select %p380, %s377, 7
        %s382 = smul.addr %s379, 8
        %s383 = sadd.s32 %s381, %s382
        %s384 = smul.addr %s383, 2
        %s385 = scalar_lea.vmem %s2, %s384
        %p386 = pneg %p112
        %p387 = pneg %p109
        %p388 = scmp.lt.s32.totalorder %s25, 0
        %s389 = scalar_select %p388, %s25, 0
        %s390 = smul.addr %s389, 2
        %s391 = scalar_lea.vmem %s3, %s390
        %p392 = pneg %p138
        %p393 = pneg %p135
        %p394 = pneg %p159
        %p395 = pneg %p156
        %p396 = scmp.lt.s32.totalorder %s25, 0
        %s397 = scalar_select %p396, %s25, 0
        %s398 = smul.addr %s397, 12
        %s399 = smul.addr %s398, 8
        %s400 = scalar_lea.vmem %s5, %s399
        %p401 = pneg %p185
        %p402 = pneg %p182
        %p403 = scmp.lt.s32.totalorder %s25, 0
        %s404 = scalar_select %p403, %s25, 0
        %s405 = smul.addr %s404, 3
        %s406 = scalar_lea.vmem %s6, %s405
        %p407 = pneg %p211
        %p408 = pneg %p208
        %p409 = pneg %p239
        %p410 = pneg %p236
        %s411 = smul.u32 4, %s26
        %p412 = scmp.lt.s32.totalorder %s25, 0
        %s413 = scalar_select %p412, %s25, 0
        %p414 = scmp.lt.s32.totalorder %s411, 7
        %s415 = scalar_select %p414, %s411, 7
        %s416 = smul.addr %s413, 8
        %s417 = sadd.s32 %s415, %s416
        %s418 = smul.addr %s417, 2
        %s419 = scalar_lea.vmem %s7, %s418
        %p420 = pneg %p265
        %p421 = pneg %p262
        %s422 = smul.u32 4, %s26
        %p423 = scmp.lt.s32.totalorder %s25, 0
        %s424 = scalar_select %p423, %s25, 0
        %p425 = scmp.lt.s32.totalorder %s422, 7
        %s426 = scalar_select %p425, %s422, 7
        %s427 = smul.addr %s424, 8
        %s428 = sadd.s32 %s426, %s427
        %s429 = smul.addr %s428, 2
        %s430 = scalar_lea.vmem %s0, %s429
        %s431 = smul.u32 4, %s26
        %s432 = smul.u32 4, %s26
        %p433 = scmp.lt.s32.totalorder %s25, 0
        %s434 = scalar_select %p433, %s25, 0
        %p435 = scmp.lt.s32.totalorder %s432, 7
        %s436 = scalar_select %p435, %s432, 7
        %s437 = smul.addr %s434, 8
        %s438 = sadd.s32 %s436, %s437
        %s439 = smul.addr %s438, 2
        %s440 = scalar_lea.vmem %s1, %s439
        %s441 = smul.u32 4, %s26
        %s442 = smul.u32 4, %s26
        %p443 = scmp.lt.s32.totalorder %s25, 0
        %s444 = scalar_select %p443, %s25, 0
        %p445 = scmp.lt.s32.totalorder %s442, 7
        %s446 = scalar_select %p445, %s442, 7
        %s447 = smul.addr %s444, 8
        %s448 = sadd.s32 %s446, %s447
        %s449 = smul.addr %s448, 2
        %s450 = scalar_lea.vmem %s2, %s449
        %s451 = smul.u32 4, %s26
        %p452 = scmp.lt.s32.totalorder %s25, 0
        %s453 = scalar_select %p452, %s25, 0
        %s454 = smul.addr %s453, 2
        %s455 = scalar_lea.vmem %s3, %s454
        %p456 = scmp.lt.s32.totalorder %s25, 0
        %s457 = scalar_select %p456, %s25, 0
        %s458 = smul.addr %s457, 12
        %s459 = smul.addr %s458, 8
        %s460 = scalar_lea.vmem %s5, %s459
        %p461 = scmp.lt.s32.totalorder %s25, 0
        %s462 = scalar_select %p461, %s25, 0
        %s463 = smul.addr %s462, 3
        %s464 = scalar_lea.vmem %s6, %s463
        %s465 = smul.u32 4, %s26
        %p466 = scmp.lt.s32.totalorder %s25, 0
        %s467 = scalar_select %p466, %s25, 0
        %p468 = scmp.lt.s32.totalorder %s465, 7
        %s469 = scalar_select %p468, %s465, 7
        %s470 = smul.addr %s467, 8
        %s471 = sadd.s32 %s469, %s470
        %s472 = smul.addr %s471, 2
        %s473 = scalar_lea.vmem %s7, %s472
        %s474 = smul.u32 4, %s26
        %p475 = scmp.eq.s32.totalorder %s26, 0
        // Predicated region
        $region49: #{plain_seq2seq_forward.5} parent=47 // pred_check
          %p476 = pneg %p475
        $region50: #{plain_seq2seq_forward.5} parent=47 // pred_check_branch
          %478 = sbr.rel (%p476) target = $region52
        $region51: #{plain_seq2seq_forward.5} parent=47 // pred_region
          %v479 = vld [vmem:[%s455] sm:$0x3]
          %vm480 = vcmask 254976
          %481 = vst.msk [vmem:[#allocation2] sm:$0x3] %vm480, %v479
        $region52: #{plain_seq2seq_forward.5} parent=47 // pred_fallthru
          _
        %v482 = vld [vmem:[%s4] sm:$0x3]
        %s483 = smul.u32 %s26, 4
        %v484 = vld [vmem:[%s460] sm:$0xff]
        %v485 = vld [vmem:[%s460 + $0x8] sm:$0xff]
        %v486 = vld [vmem:[%s460 + $0x10] sm:$0xff]
        %v487 = vld [vmem:[%s460 + $0x18] sm:$0xff]
        %s488 = scalar_lea.vmem %s460, 32
        %v489 = vld [vmem:[%s488] sm:$0xff]
        %v490 = vld [vmem:[%s488 + $0x8] sm:$0xff]
        %v491 = vld [vmem:[%s488 + $0x10] sm:$0xff]
        %v492 = vld [vmem:[%s488 + $0x18] sm:$0xff]
        %s493 = scalar_lea.vmem %s460, 64
        %v494 = vld [vmem:[%s493] sm:$0xff]
        %v495 = vld [vmem:[%s493 + $0x8] sm:$0xff]
        %v496 = vld [vmem:[%s493 + $0x10] sm:$0xff]
        %v497 = vld [vmem:[%s493 + $0x18] sm:$0xff]
        %v498 = vld [vmem:[%s464] sm:$0x1]
        %s499 = scalar_lea.vmem %s464, 1
        %v500 = vld [vmem:[%s499] sm:$0x1]
        %s501 = scalar_lea.vmem %s464, 2
        %v502 = vld [vmem:[%s501] sm:$0x1]
        %v503 = vld [vmem:[#allocation2] sm:$0x3]
        %v505 = vlaneseq
        %v506 = vshrl.u32 %v505, 7
        %v507 = vsub.s32 0, %v506
        %v508 = vrot.slane %v498, %v507
        %vm510 = vcmask 261120
        %v512 = vsel %vm510, %v503, 0
        %514 = vmatprep.subr.mxu0 0.0
        %515 = vmatpush1.msra.mxu0 0.0
        %516 = vmatprep.subr.mxu0 0.0
        %517 = vmatpush1.msra.mxu0 0.0
        %518 = vmatprep.subr.mxu0 0.0
        %519 = vmatpush1.msra.mxu0 0.0
        %520 = vmatprep.subr.mxu0 0.0
        %521 = vmatpush1.msra.mxu0 0.0
        %522 = vmatprep.subr.mxu0 0.0
        %523 = vmatpush1.msra.mxu0 0.0
        %524 = vmatprep.subr.mxu0 0.0
        %525 = vmatpush1.msra.mxu0 0.0
        %526 = vmatprep.subr.mxu0 0.0
        %527 = vmatpush1.msra.mxu0 0.0
        %528 = vmatprep.subr.mxu0 0.0
        %529 = vmatpush1.msra.mxu0 0.0
        %530 = vmatprep.subr.mxu0 0.0
        %531 = vmatpush1.msra.mxu0 0.0
        %532 = vmatprep.subr.mxu0 0.0
        %533 = vmatpush1.msra.mxu0 0.0
        %534 = vmatprep.subr.mxu0 0.0
        %535 = vmatpush1.msra.mxu0 0.0
        %536 = vmatprep.subr.mxu0 0.0
        %537 = vmatpush1.msra.mxu0 0.0
        %538 = vmatprep.subr.mxu0 0.0
        %539 = vmatpush1.msra.mxu0 %v487
        %540 = vmatprep.subr.mxu0 0.0
        %541 = vmatpush1.msra.mxu0 %v486
        %542 = vmatprep.subr.mxu0 0.0
        %543 = vmatpush1.msra.mxu0 %v485
        %544 = vmatprep.subr.mxu0 0.0
        %545 = vmatpush1.msra.mxu0 %v484
        %546 = vmatprep.subr.mxu0 0.0
        %547 = vmatpush2.msra.mxu0 0.0
        %548 = vmatprep.subr.mxu0 0.0
        %549 = vmatpush2.msra.mxu0 0.0
        %550 = vmatprep.subr.mxu0 0.0
        %551 = vmatpush2.msra.mxu0 0.0
        %552 = vmatprep.subr.mxu0 0.0
        %553 = vmatpush2.msra.mxu0 0.0
        %554 = vmatprep.subr.mxu0 0.0
        %555 = vmatpush2.msra.mxu0 0.0
        %556 = vmatprep.subr.mxu0 0.0
        %557 = vmatpush2.msra.mxu0 0.0
        %558 = vmatprep.subr.mxu0 0.0
        %559 = vmatpush2.msra.mxu0 0.0
        %560 = vmatprep.subr.mxu0 0.0
        %561 = vmatpush2.msra.mxu0 0.0
        %562 = vmatprep.subr.mxu0 0.0
        %563 = vmatpush2.msra.mxu0 0.0
        %564 = vmatprep.subr.mxu0 0.0
        %565 = vmatpush2.msra.mxu0 0.0
        %566 = vmatprep.subr.mxu0 0.0
        %567 = vmatpush2.msra.mxu0 0.0
        %568 = vmatprep.subr.mxu0 0.0
        %569 = vmatpush2.msra.mxu0 0.0
        %570 = vmatprep.subr.mxu0 0.0
        %571 = vmatpush2.msra.mxu0 0.0
        %572 = vmatprep.subr.mxu0 0.0
        %573 = vmatpush2.msra.mxu0 0.0
        %574 = vmatprep.subr.mxu0 0.0
        %575 = vmatpush2.msra.mxu0 0.0
        %576 = vmatprep.subr.mxu0 0.0
        %577 = vmatpush2.msra.mxu0 0.0
        %578 = vmatprep.mubr.f32.mxu0 0.0
        %579 = vmatmul.mubr.f32.gmra.mxu0 %v512
        %v580 = vpop.f32.mrf.mxu0
        %v581 = vadd.f32 %v508, %v580
        %v582 = vpop.f32.mrf.mxu0
        %583 = vdwg.mxu0
        %v585 = vlaneseq
        %v586 = vshrl.u32 %v585, 7
        %v587 = vsub.s32 0, %v586
        %v588 = vrot.slane %v500, %v587
        %590 = vmatprep.subr.mxu0 0.0
        %591 = vmatpush1.msra.mxu0 0.0
        %592 = vmatprep.subr.mxu0 0.0
        %593 = vmatpush1.msra.mxu0 0.0
        %594 = vmatprep.subr.mxu0 0.0
        %595 = vmatpush1.msra.mxu0 0.0
        %596 = vmatprep.subr.mxu0 0.0
        %597 = vmatpush1.msra.mxu0 0.0
        %598 = vmatprep.subr.mxu0 0.0
        %599 = vmatpush1.msra.mxu0 0.0
        %600 = vmatprep.subr.mxu0 0.0
        %601 = vmatpush1.msra.mxu0 0.0
        %602 = vmatprep.subr.mxu0 0.0
        %603 = vmatpush1.msra.mxu0 0.0
        %604 = vmatprep.subr.mxu0 0.0
        %605 = vmatpush1.msra.mxu0 0.0
        %606 = vmatprep.subr.mxu0 0.0
        %607 = vmatpush1.msra.mxu0 0.0
        %608 = vmatprep.subr.mxu0 0.0
        %609 = vmatpush1.msra.mxu0 0.0
        %610 = vmatprep.subr.mxu0 0.0
        %611 = vmatpush1.msra.mxu0 0.0
        %612 = vmatprep.subr.mxu0 0.0
        %613 = vmatpush1.msra.mxu0 0.0
        %614 = vmatprep.subr.mxu0 0.0
        %615 = vmatpush1.msra.mxu0 %v492
        %616 = vmatprep.subr.mxu0 0.0
        %617 = vmatpush1.msra.mxu0 %v491
        %618 = vmatprep.subr.mxu0 0.0
        %619 = vmatpush1.msra.mxu0 %v490
        %620 = vmatprep.subr.mxu0 0.0
        %621 = vmatpush1.msra.mxu0 %v489
        %622 = vmatprep.subr.mxu0 0.0
        %623 = vmatpush2.msra.mxu0 0.0
        %624 = vmatprep.subr.mxu0 0.0
        %625 = vmatpush2.msra.mxu0 0.0
        %626 = vmatprep.subr.mxu0 0.0
        %627 = vmatpush2.msra.mxu0 0.0
        %628 = vmatprep.subr.mxu0 0.0
        %629 = vmatpush2.msra.mxu0 0.0
        %630 = vmatprep.subr.mxu0 0.0
        %631 = vmatpush2.msra.mxu0 0.0
        %632 = vmatprep.subr.mxu0 0.0
        %633 = vmatpush2.msra.mxu0 0.0
        %634 = vmatprep.subr.mxu0 0.0
        %635 = vmatpush2.msra.mxu0 0.0
        %636 = vmatprep.subr.mxu0 0.0
        %637 = vmatpush2.msra.mxu0 0.0
        %638 = vmatprep.subr.mxu0 0.0
        %639 = vmatpush2.msra.mxu0 0.0
        %640 = vmatprep.subr.mxu0 0.0
        %641 = vmatpush2.msra.mxu0 0.0
        %642 = vmatprep.subr.mxu0 0.0
        %643 = vmatpush2.msra.mxu0 0.0
        %644 = vmatprep.subr.mxu0 0.0
        %645 = vmatpush2.msra.mxu0 0.0
        %646 = vmatprep.subr.mxu0 0.0
        %647 = vmatpush2.msra.mxu0 0.0
        %648 = vmatprep.subr.mxu0 0.0
        %649 = vmatpush2.msra.mxu0 0.0
        %650 = vmatprep.subr.mxu0 0.0
        %651 = vmatpush2.msra.mxu0 0.0
        %652 = vmatprep.subr.mxu0 0.0
        %653 = vmatpush2.msra.mxu0 0.0
        %654 = vmatprep.mubr.f32.mxu0 0.0
        %655 = vmatmul.mubr.f32.gmra.mxu0 %v512
        %v656 = vpop.f32.mrf.mxu0
        %v657 = vadd.f32 %v588, %v656
        %v658 = vpop.f32.mrf.mxu0
        %659 = vdwg.mxu0
        %v661 = vlaneseq
        %v662 = vshrl.u32 %v661, 7
        %v663 = vsub.s32 0, %v662
        %v664 = vrot.slane %v502, %v663
        %666 = vmatprep.subr.mxu0 0.0
        %667 = vmatpush1.msra.mxu0 0.0
        %668 = vmatprep.subr.mxu0 0.0
        %669 = vmatpush1.msra.mxu0 0.0
        %670 = vmatprep.subr.mxu0 0.0
        %671 = vmatpush1.msra.mxu0 0.0
        %672 = vmatprep.subr.mxu0 0.0
        %673 = vmatpush1.msra.mxu0 0.0
        %674 = vmatprep.subr.mxu0 0.0
        %675 = vmatpush1.msra.mxu0 0.0
        %676 = vmatprep.subr.mxu0 0.0
        %677 = vmatpush1.msra.mxu0 0.0
        %678 = vmatprep.subr.mxu0 0.0
        %679 = vmatpush1.msra.mxu0 0.0
        %680 = vmatprep.subr.mxu0 0.0
        %681 = vmatpush1.msra.mxu0 0.0
        %682 = vmatprep.subr.mxu0 0.0
        %683 = vmatpush1.msra.mxu0 0.0
        %684 = vmatprep.subr.mxu0 0.0
        %685 = vmatpush1.msra.mxu0 0.0
        %686 = vmatprep.subr.mxu0 0.0
        %687 = vmatpush1.msra.mxu0 0.0
        %688 = vmatprep.subr.mxu0 0.0
        %689 = vmatpush1.msra.mxu0 0.0
        %690 = vmatprep.subr.mxu0 0.0
        %691 = vmatpush1.msra.mxu0 %v497
        %692 = vmatprep.subr.mxu0 0.0
        %693 = vmatpush1.msra.mxu0 %v496
        %694 = vmatprep.subr.mxu0 0.0
        %695 = vmatpush1.msra.mxu0 %v495
        %696 = vmatprep.subr.mxu0 0.0
        %697 = vmatpush1.msra.mxu0 %v494
        %698 = vmatprep.subr.mxu0 0.0
        %699 = vmatpush2.msra.mxu0 0.0
        %700 = vmatprep.subr.mxu0 0.0
        %701 = vmatpush2.msra.mxu0 0.0
        %702 = vmatprep.subr.mxu0 0.0
        %703 = vmatpush2.msra.mxu0 0.0
        %704 = vmatprep.subr.mxu0 0.0
        %705 = vmatpush2.msra.mxu0 0.0
        %706 = vmatprep.subr.mxu0 0.0
        %707 = vmatpush2.msra.mxu0 0.0
        %708 = vmatprep.subr.mxu0 0.0
        %709 = vmatpush2.msra.mxu0 0.0
        %710 = vmatprep.subr.mxu0 0.0
        %711 = vmatpush2.msra.mxu0 0.0
        %712 = vmatprep.subr.mxu0 0.0
        %713 = vmatpush2.msra.mxu0 0.0
        %714 = vmatprep.subr.mxu0 0.0
        %715 = vmatpush2.msra.mxu0 0.0
        %716 = vmatprep.subr.mxu0 0.0
        %717 = vmatpush2.msra.mxu0 0.0
        %718 = vmatprep.subr.mxu0 0.0
        %719 = vmatpush2.msra.mxu0 0.0
        %720 = vmatprep.subr.mxu0 0.0
        %721 = vmatpush2.msra.mxu0 0.0
        %722 = vmatprep.subr.mxu0 0.0
        %723 = vmatpush2.msra.mxu0 0.0
        %724 = vmatprep.subr.mxu0 0.0
        %725 = vmatpush2.msra.mxu0 0.0
        %726 = vmatprep.subr.mxu0 0.0
        %727 = vmatpush2.msra.mxu0 0.0
        %728 = vmatprep.subr.mxu0 0.0
        %729 = vmatpush2.msra.mxu0 0.0
        %730 = vmatprep.mubr.f32.mxu0 0.0
        %731 = vmatmul.mubr.f32.gmra.mxu0 %v512
        %v732 = vpop.f32.mrf.mxu0
        %v733 = vadd.f32 %v664, %v732
        %v734 = vpop.f32.mrf.mxu0
        %735 = vdwg.mxu0
        %v736 = vld [vmem:[%s430] sm:$0x3]
        %v737 = vadd.f32 %v736, %v581
        %v738 = vxor.u32 %v737, 2147483648
        %v739 = vmul.f32 %v738, 1.442695
        %v740 = vpow.pop %v739
        %v741 = vadd.f32 %v740, 1.0
        %v742 = vrcp.pop %v741
        %v743 = vmul.f32 1.0, %v742
        %v744 = vld [vmem:[%s440] sm:$0x3]
        %v745 = vadd.f32 %v744, %v657
        %v746 = vxor.u32 %v745, 2147483648
        %v747 = vmul.f32 %v746, 1.442695
        %v748 = vpow.pop %v747
        %v749 = vadd.f32 %v748, 1.0
        %v750 = vrcp.pop %v749
        %v751 = vmul.f32 1.0, %v750
        %v752 = vld [vmem:[%s450] sm:$0x3]
        %v753 = vmul.f32 %v743, %v733
        %v754 = vadd.f32 %v752, %v753
        %v755 = vtanh.pop %v754
        %v756 = vsub.f32 1.0, %v751
        %v757 = vmul.f32 %v756, %v755
        %v758 = vmul.f32 %v751, %v503
        %v759 = vadd.f32 %v757, %v758
        %v760 = vstv %s483
        %vm761 = vcmp.lt.s32.totalorder %v760, %v482
        %v762 = vsel %vm761, 1, 0
        %763 = vset.pattern.permute.xlu0 0
        %764 = vperm.xlu0 %763, %v762
        %v765 = vpop.permute.xlu0 %764
        %vm766 = vcmp.eq.s32.totalorder %v765, 1
        %v767 = vsel %vm766, %v759, %v503
        %vm768 = vcmask 254976
        %769 = vst.msk [vmem:[#allocation2] sm:$0x3] %vm768, %v767
        %v770 = vsel %vm766, %v759, 0.0
        %771 = vst.msk [vmem:[%s473] sm:$0x3] %vm768, %v770
        %v772 = vld [vmem:[#allocation2] sm:$0x3]
        %v774 = vsel %vm510, %v772, 0
        %776 = vmatprep.subr.mxu0 0.0
        %777 = vmatpush1.msra.mxu0 0.0
        %778 = vmatprep.subr.mxu0 0.0
        %779 = vmatpush1.msra.mxu0 0.0
        %780 = vmatprep.subr.mxu0 0.0
        %781 = vmatpush1.msra.mxu0 0.0
        %782 = vmatprep.subr.mxu0 0.0
        %783 = vmatpush1.msra.mxu0 0.0
        %784 = vmatprep.subr.mxu0 0.0
        %785 = vmatpush1.msra.mxu0 0.0
        %786 = vmatprep.subr.mxu0 0.0
        %787 = vmatpush1.msra.mxu0 0.0
        %788 = vmatprep.subr.mxu0 0.0
        %789 = vmatpush1.msra.mxu0 0.0
        %790 = vmatprep.subr.mxu0 0.0
        %791 = vmatpush1.msra.mxu0 0.0
        %792 = vmatprep.subr.mxu0 0.0
        %793 = vmatpush1.msra.mxu0 0.0
        %794 = vmatprep.subr.mxu0 0.0
        %795 = vmatpush1.msra.mxu0 0.0
        %796 = vmatprep.subr.mxu0 0.0
        %797 = vmatpush1.msra.mxu0 0.0
        %798 = vmatprep.subr.mxu0 0.0
        %799 = vmatpush1.msra.mxu0 0.0
        %800 = vmatprep.subr.mxu0 0.0
        %801 = vmatpush1.msra.mxu0 %v487
        %802 = vmatprep.subr.mxu0 0.0
        %803 = vmatpush1.msra.mxu0 %v486
        %804 = vmatprep.subr.mxu0 0.0
        %805 = vmatpush1.msra.mxu0 %v485
        %806 = vmatprep.subr.mxu0 0.0
        %807 = vmatpush1.msra.mxu0 %v484
        %808 = vmatprep.subr.mxu0 0.0
        %809 = vmatpush2.msra.mxu0 0.0
        %810 = vmatprep.subr.mxu0 0.0
        %811 = vmatpush2.msra.mxu0 0.0
        %812 = vmatprep.subr.mxu0 0.0
        %813 = vmatpush2.msra.mxu0 0.0
        %814 = vmatprep.subr.mxu0 0.0
        %815 = vmatpush2.msra.mxu0 0.0
        %816 = vmatprep.subr.mxu0 0.0
        %817 = vmatpush2.msra.mxu0 0.0
        %818 = vmatprep.subr.mxu0 0.0
        %819 = vmatpush2.msra.mxu0 0.0
        %820 = vmatprep.subr.mxu0 0.0
        %821 = vmatpush2.msra.mxu0 0.0
        %822 = vmatprep.subr.mxu0 0.0
        %823 = vmatpush2.msra.mxu0 0.0
        %824 = vmatprep.subr.mxu0 0.0
        %825 = vmatpush2.msra.mxu0 0.0
        %826 = vmatprep.subr.mxu0 0.0
        %827 = vmatpush2.msra.mxu0 0.0
        %828 = vmatprep.subr.mxu0 0.0
        %829 = vmatpush2.msra.mxu0 0.0
        %830 = vmatprep.subr.mxu0 0.0
        %831 = vmatpush2.msra.mxu0 0.0
        %832 = vmatprep.subr.mxu0 0.0
        %833 = vmatpush2.msra.mxu0 0.0
        %834 = vmatprep.subr.mxu0 0.0
        %835 = vmatpush2.msra.mxu0 0.0
        %836 = vmatprep.subr.mxu0 0.0
        %837 = vmatpush2.msra.mxu0 0.0
        %838 = vmatprep.subr.mxu0 0.0
        %839 = vmatpush2.msra.mxu0 0.0
        %840 = vmatprep.mubr.f32.mxu0 0.0
        %841 = vmatmul.mubr.f32.gmra.mxu0 %v774
        %v842 = vpop.f32.mrf.mxu0
        %v843 = vadd.f32 %v508, %v842
        %v844 = vpop.f32.mrf.mxu0
        %845 = vdwg.mxu0
        %846 = vmatprep.subr.mxu0 0.0
        %847 = vmatpush1.msra.mxu0 0.0
        %848 = vmatprep.subr.mxu0 0.0
        %849 = vmatpush1.msra.mxu0 0.0
        %850 = vmatprep.subr.mxu0 0.0
        %851 = vmatpush1.msra.mxu0 0.0
        %852 = vmatprep.subr.mxu0 0.0
        %853 = vmatpush1.msra.mxu0 0.0
        %854 = vmatprep.subr.mxu0 0.0
        %855 = vmatpush1.msra.mxu0 0.0
        %856 = vmatprep.subr.mxu0 0.0
        %857 = vmatpush1.msra.mxu0 0.0
        %858 = vmatprep.subr.mxu0 0.0
        %859 = vmatpush1.msra.mxu0 0.0
        %860 = vmatprep.subr.mxu0 0.0
        %861 = vmatpush1.msra.mxu0 0.0
        %862 = vmatprep.subr.mxu0 0.0
        %863 = vmatpush1.msra.mxu0 0.0
        %864 = vmatprep.subr.mxu0 0.0
        %865 = vmatpush1.msra.mxu0 0.0
        %866 = vmatprep.subr.mxu0 0.0
        %867 = vmatpush1.msra.mxu0 0.0
        %868 = vmatprep.subr.mxu0 0.0
        %869 = vmatpush1.msra.mxu0 0.0
        %870 = vmatprep.subr.mxu0 0.0
        %871 = vmatpush1.msra.mxu0 %v492
        %872 = vmatprep.subr.mxu0 0.0
        %873 = vmatpush1.msra.mxu0 %v491
        %874 = vmatprep.subr.mxu0 0.0
        %875 = vmatpush1.msra.mxu0 %v490
        %876 = vmatprep.subr.mxu0 0.0
        %877 = vmatpush1.msra.mxu0 %v489
        %878 = vmatprep.subr.mxu0 0.0
        %879 = vmatpush2.msra.mxu0 0.0
        %880 = vmatprep.subr.mxu0 0.0
        %881 = vmatpush2.msra.mxu0 0.0
        %882 = vmatprep.subr.mxu0 0.0
        %883 = vmatpush2.msra.mxu0 0.0
        %884 = vmatprep.subr.mxu0 0.0
        %885 = vmatpush2.msra.mxu0 0.0
        %886 = vmatprep.subr.mxu0 0.0
        %887 = vmatpush2.msra.mxu0 0.0
        %888 = vmatprep.subr.mxu0 0.0
        %889 = vmatpush2.msra.mxu0 0.0
        %890 = vmatprep.subr.mxu0 0.0
        %891 = vmatpush2.msra.mxu0 0.0
        %892 = vmatprep.subr.mxu0 0.0
        %893 = vmatpush2.msra.mxu0 0.0
        %894 = vmatprep.subr.mxu0 0.0
        %895 = vmatpush2.msra.mxu0 0.0
        %896 = vmatprep.subr.mxu0 0.0
        %897 = vmatpush2.msra.mxu0 0.0
        %898 = vmatprep.subr.mxu0 0.0
        %899 = vmatpush2.msra.mxu0 0.0
        %900 = vmatprep.subr.mxu0 0.0
        %901 = vmatpush2.msra.mxu0 0.0
        %902 = vmatprep.subr.mxu0 0.0
        %903 = vmatpush2.msra.mxu0 0.0
        %904 = vmatprep.subr.mxu0 0.0
        %905 = vmatpush2.msra.mxu0 0.0
        %906 = vmatprep.subr.mxu0 0.0
        %907 = vmatpush2.msra.mxu0 0.0
        %908 = vmatprep.subr.mxu0 0.0
        %909 = vmatpush2.msra.mxu0 0.0
        %910 = vmatprep.mubr.f32.mxu0 0.0
        %911 = vmatmul.mubr.f32.gmra.mxu0 %v774
        %v912 = vpop.f32.mrf.mxu0
        %v913 = vadd.f32 %v588, %v912
        %v914 = vpop.f32.mrf.mxu0
        %915 = vdwg.mxu0
        %916 = vmatprep.subr.mxu0 0.0
        %917 = vmatpush1.msra.mxu0 0.0
        %918 = vmatprep.subr.mxu0 0.0
        %919 = vmatpush1.msra.mxu0 0.0
        %920 = vmatprep.subr.mxu0 0.0
        %921 = vmatpush1.msra.mxu0 0.0
        %922 = vmatprep.subr.mxu0 0.0
        %923 = vmatpush1.msra.mxu0 0.0
        %924 = vmatprep.subr.mxu0 0.0
        %925 = vmatpush1.msra.mxu0 0.0
        %926 = vmatprep.subr.mxu0 0.0
        %927 = vmatpush1.msra.mxu0 0.0
        %928 = vmatprep.subr.mxu0 0.0
        %929 = vmatpush1.msra.mxu0 0.0
        %930 = vmatprep.subr.mxu0 0.0
        %931 = vmatpush1.msra.mxu0 0.0
        %932 = vmatprep.subr.mxu0 0.0
        %933 = vmatpush1.msra.mxu0 0.0
        %934 = vmatprep.subr.mxu0 0.0
        %935 = vmatpush1.msra.mxu0 0.0
        %936 = vmatprep.subr.mxu0 0.0
        %937 = vmatpush1.msra.mxu0 0.0
        %938 = vmatprep.subr.mxu0 0.0
        %939 = vmatpush1.msra.mxu0 0.0
        %940 = vmatprep.subr.mxu0 0.0
        %941 = vmatpush1.msra.mxu0 %v497
        %942 = vmatprep.subr.mxu0 0.0
        %943 = vmatpush1.msra.mxu0 %v496
        %944 = vmatprep.subr.mxu0 0.0
        %945 = vmatpush1.msra.mxu0 %v495
        %946 = vmatprep.subr.mxu0 0.0
        %947 = vmatpush1.msra.mxu0 %v494
        %948 = vmatprep.subr.mxu0 0.0
        %949 = vmatpush2.msra.mxu0 0.0
        %950 = vmatprep.subr.mxu0 0.0
        %951 = vmatpush2.msra.mxu0 0.0
        %952 = vmatprep.subr.mxu0 0.0
        %953 = vmatpush2.msra.mxu0 0.0
        %954 = vmatprep.subr.mxu0 0.0
        %955 = vmatpush2.msra.mxu0 0.0
        %956 = vmatprep.subr.mxu0 0.0
        %957 = vmatpush2.msra.mxu0 0.0
        %958 = vmatprep.subr.mxu0 0.0
        %959 = vmatpush2.msra.mxu0 0.0
        %960 = vmatprep.subr.mxu0 0.0
        %961 = vmatpush2.msra.mxu0 0.0
        %962 = vmatprep.subr.mxu0 0.0
        %963 = vmatpush2.msra.mxu0 0.0
        %964 = vmatprep.subr.mxu0 0.0
        %965 = vmatpush2.msra.mxu0 0.0
        %966 = vmatprep.subr.mxu0 0.0
        %967 = vmatpush2.msra.mxu0 0.0
        %968 = vmatprep.subr.mxu0 0.0
        %969 = vmatpush2.msra.mxu0 0.0
        %970 = vmatprep.subr.mxu0 0.0
        %971 = vmatpush2.msra.mxu0 0.0
        %972 = vmatprep.subr.mxu0 0.0
        %973 = vmatpush2.msra.mxu0 0.0
        %974 = vmatprep.subr.mxu0 0.0
        %975 = vmatpush2.msra.mxu0 0.0
        %976 = vmatprep.subr.mxu0 0.0
        %977 = vmatpush2.msra.mxu0 0.0
        %978 = vmatprep.subr.mxu0 0.0
        %979 = vmatpush2.msra.mxu0 0.0
        %980 = vmatprep.mubr.f32.mxu0 0.0
        %981 = vmatmul.mubr.f32.gmra.mxu0 %v774
        %v982 = vpop.f32.mrf.mxu0
        %v983 = vadd.f32 %v664, %v982
        %v984 = vpop.f32.mrf.mxu0
        %985 = vdwg.mxu0
        %s986 = scalar_lea.vmem %s430, 2
        %v987 = vld [vmem:[%s986] sm:$0x3]
        %v988 = vadd.f32 %v987, %v843
        %v989 = vxor.u32 %v988, 2147483648
        %v990 = vmul.f32 %v989, 1.442695
        %v991 = vpow.pop %v990
        %v992 = vadd.f32 %v991, 1.0
        %v993 = vrcp.pop %v992
        %v994 = vmul.f32 1.0, %v993
        %s995 = scalar_lea.vmem %s440, 2
        %v996 = vld [vmem:[%s995] sm:$0x3]
        %v997 = vadd.f32 %v996, %v913
        %v998 = vxor.u32 %v997, 2147483648
        %v999 = vmul.f32 %v998, 1.442695
        %v1000 = vpow.pop %v999
        %v1001 = vadd.f32 %v1000, 1.0
        %v1002 = vrcp.pop %v1001
        %v1003 = vmul.f32 1.0, %v1002
        %s1004 = scalar_lea.vmem %s450, 2
        %v1005 = vld [vmem:[%s1004] sm:$0x3]
        %v1006 = vmul.f32 %v994, %v983
        %v1007 = vadd.f32 %v1005, %v1006
        %v1008 = vtanh.pop %v1007
        %v1009 = vsub.f32 1.0, %v1003
        %v1010 = vmul.f32 %v1009, %v1008
        %v1011 = vmul.f32 %v1003, %v772
        %v1012 = vadd.f32 %v1010, %v1011
        %s1013 = sadd.s32 %s483, 1
        %v1014 = vstv %s1013
        %vm1015 = vcmp.lt.s32.totalorder %v1014, %v482
        %v1016 = vsel %vm1015, 1, 0
        %1017 = vset.pattern.permute.xlu0 0
        %1018 = vperm.xlu0 %1017, %v1016
        %v1019 = vpop.permute.xlu0 %1018
        %vm1020 = vcmp.eq.s32.totalorder %v1019, 1
        %v1021 = vsel %vm1020, %v1012, %v772
        %1022 = vst.msk [vmem:[#allocation2] sm:$0x3] %vm768, %v1021
        %v1023 = vsel %vm1020, %v1012, 0.0
        %s1024 = scalar_lea.vmem %s473, 2
        %1025 = vst.msk [vmem:[%s1024] sm:$0x3] %vm768, %v1023
        %v1026 = vld [vmem:[#allocation2] sm:$0x3]
        %v1028 = vsel %vm510, %v1026, 0
        %1030 = vmatprep.subr.mxu0 0.0
        %1031 = vmatpush1.msra.mxu0 0.0
        %1032 = vmatprep.subr.mxu0 0.0
        %1033 = vmatpush1.msra.mxu0 0.0
        %1034 = vmatprep.subr.mxu0 0.0
        %1035 = vmatpush1.msra.mxu0 0.0
        %1036 = vmatprep.subr.mxu0 0.0
        %1037 = vmatpush1.msra.mxu0 0.0
        %1038 = vmatprep.subr.mxu0 0.0
        %1039 = vmatpush1.msra.mxu0 0.0
        %1040 = vmatprep.subr.mxu0 0.0
        %1041 = vmatpush1.msra.mxu0 0.0
        %1042 = vmatprep.subr.mxu0 0.0
        %1043 = vmatpush1.msra.mxu0 0.0
        %1044 = vmatprep.subr.mxu0 0.0
        %1045 = vmatpush1.msra.mxu0 0.0
        %1046 = vmatprep.subr.mxu0 0.0
        %1047 = vmatpush1.msra.mxu0 0.0
        %1048 = vmatprep.subr.mxu0 0.0
        %1049 = vmatpush1.msra.mxu0 0.0
        %1050 = vmatprep.subr.mxu0 0.0
        %1051 = vmatpush1.msra.mxu0 0.0
        %1052 = vmatprep.subr.mxu0 0.0
        %1053 = vmatpush1.msra.mxu0 0.0
        %1054 = vmatprep.subr.mxu0 0.0
        %1055 = vmatpush1.msra.mxu0 %v487
        %1056 = vmatprep.subr.mxu0 0.0
        %1057 = vmatpush1.msra.mxu0 %v486
        %1058 = vmatprep.subr.mxu0 0.0
        %1059 = vmatpush1.msra.mxu0 %v485
        %1060 = vmatprep.subr.mxu0 0.0
        %1061 = vmatpush1.msra.mxu0 %v484
        %1062 = vmatprep.subr.mxu0 0.0
        %1063 = vmatpush2.msra.mxu0 0.0
        %1064 = vmatprep.subr.mxu0 0.0
        %1065 = vmatpush2.msra.mxu0 0.0
        %1066 = vmatprep.subr.mxu0 0.0
        %1067 = vmatpush2.msra.mxu0 0.0
        %1068 = vmatprep.subr.mxu0 0.0
        %1069 = vmatpush2.msra.mxu0 0.0
        %1070 = vmatprep.subr.mxu0 0.0
        %1071 = vmatpush2.msra.mxu0 0.0
        %1072 = vmatprep.subr.mxu0 0.0
        %1073 = vmatpush2.msra.mxu0 0.0
        %1074 = vmatprep.subr.mxu0 0.0
        %1075 = vmatpush2.msra.mxu0 0.0
        %1076 = vmatprep.subr.mxu0 0.0
        %1077 = vmatpush2.msra.mxu0 0.0
        %1078 = vmatprep.subr.mxu0 0.0
        %1079 = vmatpush2.msra.mxu0 0.0
        %1080 = vmatprep.subr.mxu0 0.0
        %1081 = vmatpush2.msra.mxu0 0.0
        %1082 = vmatprep.subr.mxu0 0.0
        %1083 = vmatpush2.msra.mxu0 0.0
        %1084 = vmatprep.subr.mxu0 0.0
        %1085 = vmatpush2.msra.mxu0 0.0
        %1086 = vmatprep.subr.mxu0 0.0
        %1087 = vmatpush2.msra.mxu0 0.0
        %1088 = vmatprep.subr.mxu0 0.0
        %1089 = vmatpush2.msra.mxu0 0.0
        %1090 = vmatprep.subr.mxu0 0.0
        %1091 = vmatpush2.msra.mxu0 0.0
        %1092 = vmatprep.subr.mxu0 0.0
        %1093 = vmatpush2.msra.mxu0 0.0
        %1094 = vmatprep.mubr.f32.mxu0 0.0
        %1095 = vmatmul.mubr.f32.gmra.mxu0 %v1028
        %v1096 = vpop.f32.mrf.mxu0
        %v1097 = vadd.f32 %v508, %v1096
        %v1098 = vpop.f32.mrf.mxu0
        %1099 = vdwg.mxu0
        %1100 = vmatprep.subr.mxu0 0.0
        %1101 = vmatpush1.msra.mxu0 0.0
        %1102 = vmatprep.subr.mxu0 0.0
        %1103 = vmatpush1.msra.mxu0 0.0
        %1104 = vmatprep.subr.mxu0 0.0
        %1105 = vmatpush1.msra.mxu0 0.0
        %1106 = vmatprep.subr.mxu0 0.0
        %1107 = vmatpush1.msra.mxu0 0.0
        %1108 = vmatprep.subr.mxu0 0.0
        %1109 = vmatpush1.msra.mxu0 0.0
        %1110 = vmatprep.subr.mxu0 0.0
        %1111 = vmatpush1.msra.mxu0 0.0
        %1112 = vmatprep.subr.mxu0 0.0
        %1113 = vmatpush1.msra.mxu0 0.0
        %1114 = vmatprep.subr.mxu0 0.0
        %1115 = vmatpush1.msra.mxu0 0.0
        %1116 = vmatprep.subr.mxu0 0.0
        %1117 = vmatpush1.msra.mxu0 0.0
        %1118 = vmatprep.subr.mxu0 0.0
        %1119 = vmatpush1.msra.mxu0 0.0
        %1120 = vmatprep.subr.mxu0 0.0
        %1121 = vmatpush1.msra.mxu0 0.0
        %1122 = vmatprep.subr.mxu0 0.0
        %1123 = vmatpush1.msra.mxu0 0.0
        %1124 = vmatprep.subr.mxu0 0.0
        %1125 = vmatpush1.msra.mxu0 %v492
        %1126 = vmatprep.subr.mxu0 0.0
        %1127 = vmatpush1.msra.mxu0 %v491
        %1128 = vmatprep.subr.mxu0 0.0
        %1129 = vmatpush1.msra.mxu0 %v490
        %1130 = vmatprep.subr.mxu0 0.0
        %1131 = vmatpush1.msra.mxu0 %v489
        %1132 = vmatprep.subr.mxu0 0.0
        %1133 = vmatpush2.msra.mxu0 0.0
        %1134 = vmatprep.subr.mxu0 0.0
        %1135 = vmatpush2.msra.mxu0 0.0
        %1136 = vmatprep.subr.mxu0 0.0
        %1137 = vmatpush2.msra.mxu0 0.0
        %1138 = vmatprep.subr.mxu0 0.0
        %1139 = vmatpush2.msra.mxu0 0.0
        %1140 = vmatprep.subr.mxu0 0.0
        %1141 = vmatpush2.msra.mxu0 0.0
        %1142 = vmatprep.subr.mxu0 0.0
        %1143 = vmatpush2.msra.mxu0 0.0
        %1144 = vmatprep.subr.mxu0 0.0
        %1145 = vmatpush2.msra.mxu0 0.0
        %1146 = vmatprep.subr.mxu0 0.0
        %1147 = vmatpush2.msra.mxu0 0.0
        %1148 = vmatprep.subr.mxu0 0.0
        %1149 = vmatpush2.msra.mxu0 0.0
        %1150 = vmatprep.subr.mxu0 0.0
        %1151 = vmatpush2.msra.mxu0 0.0
        %1152 = vmatprep.subr.mxu0 0.0
        %1153 = vmatpush2.msra.mxu0 0.0
        %1154 = vmatprep.subr.mxu0 0.0
        %1155 = vmatpush2.msra.mxu0 0.0
        %1156 = vmatprep.subr.mxu0 0.0
        %1157 = vmatpush2.msra.mxu0 0.0
        %1158 = vmatprep.subr.mxu0 0.0
        %1159 = vmatpush2.msra.mxu0 0.0
        %1160 = vmatprep.subr.mxu0 0.0
        %1161 = vmatpush2.msra.mxu0 0.0
        %1162 = vmatprep.subr.mxu0 0.0
        %1163 = vmatpush2.msra.mxu0 0.0
        %1164 = vmatprep.mubr.f32.mxu0 0.0
        %1165 = vmatmul.mubr.f32.gmra.mxu0 %v1028
        %v1166 = vpop.f32.mrf.mxu0
        %v1167 = vadd.f32 %v588, %v1166
        %v1168 = vpop.f32.mrf.mxu0
        %1169 = vdwg.mxu0
        %1170 = vmatprep.subr.mxu0 0.0
        %1171 = vmatpush1.msra.mxu0 0.0
        %1172 = vmatprep.subr.mxu0 0.0
        %1173 = vmatpush1.msra.mxu0 0.0
        %1174 = vmatprep.subr.mxu0 0.0
        %1175 = vmatpush1.msra.mxu0 0.0
        %1176 = vmatprep.subr.mxu0 0.0
        %1177 = vmatpush1.msra.mxu0 0.0
        %1178 = vmatprep.subr.mxu0 0.0
        %1179 = vmatpush1.msra.mxu0 0.0
        %1180 = vmatprep.subr.mxu0 0.0
        %1181 = vmatpush1.msra.mxu0 0.0
        %1182 = vmatprep.subr.mxu0 0.0
        %1183 = vmatpush1.msra.mxu0 0.0
        %1184 = vmatprep.subr.mxu0 0.0
        %1185 = vmatpush1.msra.mxu0 0.0
        %1186 = vmatprep.subr.mxu0 0.0
        %1187 = vmatpush1.msra.mxu0 0.0
        %1188 = vmatprep.subr.mxu0 0.0
        %1189 = vmatpush1.msra.mxu0 0.0
        %1190 = vmatprep.subr.mxu0 0.0
        %1191 = vmatpush1.msra.mxu0 0.0
        %1192 = vmatprep.subr.mxu0 0.0
        %1193 = vmatpush1.msra.mxu0 0.0
        %1194 = vmatprep.subr.mxu0 0.0
        %1195 = vmatpush1.msra.mxu0 %v497
        %1196 = vmatprep.subr.mxu0 0.0
        %1197 = vmatpush1.msra.mxu0 %v496
        %1198 = vmatprep.subr.mxu0 0.0
        %1199 = vmatpush1.msra.mxu0 %v495
        %1200 = vmatprep.subr.mxu0 0.0
        %1201 = vmatpush1.msra.mxu0 %v494
        %1202 = vmatprep.subr.mxu0 0.0
        %1203 = vmatpush2.msra.mxu0 0.0
        %1204 = vmatprep.subr.mxu0 0.0
        %1205 = vmatpush2.msra.mxu0 0.0
        %1206 = vmatprep.subr.mxu0 0.0
        %1207 = vmatpush2.msra.mxu0 0.0
        %1208 = vmatprep.subr.mxu0 0.0
        %1209 = vmatpush2.msra.mxu0 0.0
        %1210 = vmatprep.subr.mxu0 0.0
        %1211 = vmatpush2.msra.mxu0 0.0
        %1212 = vmatprep.subr.mxu0 0.0
        %1213 = vmatpush2.msra.mxu0 0.0
        %1214 = vmatprep.subr.mxu0 0.0
        %1215 = vmatpush2.msra.mxu0 0.0
        %1216 = vmatprep.subr.mxu0 0.0
        %1217 = vmatpush2.msra.mxu0 0.0
        %1218 = vmatprep.subr.mxu0 0.0
        %1219 = vmatpush2.msra.mxu0 0.0
        %1220 = vmatprep.subr.mxu0 0.0
        %1221 = vmatpush2.msra.mxu0 0.0
        %1222 = vmatprep.subr.mxu0 0.0
        %1223 = vmatpush2.msra.mxu0 0.0
        %1224 = vmatprep.subr.mxu0 0.0
        %1225 = vmatpush2.msra.mxu0 0.0
        %1226 = vmatprep.subr.mxu0 0.0
        %1227 = vmatpush2.msra.mxu0 0.0
        %1228 = vmatprep.subr.mxu0 0.0
        %1229 = vmatpush2.msra.mxu0 0.0
        %1230 = vmatprep.subr.mxu0 0.0
        %1231 = vmatpush2.msra.mxu0 0.0
        %1232 = vmatprep.subr.mxu0 0.0
        %1233 = vmatpush2.msra.mxu0 0.0
        %1234 = vmatprep.mubr.f32.mxu0 0.0
        %1235 = vmatmul.mubr.f32.gmra.mxu0 %v1028
        %v1236 = vpop.f32.mrf.mxu0
        %v1237 = vadd.f32 %v664, %v1236
        %v1238 = vpop.f32.mrf.mxu0
        %1239 = vdwg.mxu0
        %s1240 = scalar_lea.vmem %s430, 4
        %v1241 = vld [vmem:[%s1240] sm:$0x3]
        %v1242 = vadd.f32 %v1241, %v1097
        %v1243 = vxor.u32 %v1242, 2147483648
        %v1244 = vmul.f32 %v1243, 1.442695
        %v1245 = vpow.pop %v1244
        %v1246 = vadd.f32 %v1245, 1.0
        %v1247 = vrcp.pop %v1246
        %v1248 = vmul.f32 1.0, %v1247
        %s1249 = scalar_lea.vmem %s440, 4
        %v1250 = vld [vmem:[%s1249] sm:$0x3]
        %v1251 = vadd.f32 %v1250, %v1167
        %v1252 = vxor.u32 %v1251, 2147483648
        %v1253 = vmul.f32 %v1252, 1.442695
        %v1254 = vpow.pop %v1253
        %v1255 = vadd.f32 %v1254, 1.0
        %v1256 = vrcp.pop %v1255
        %v1257 = vmul.f32 1.0, %v1256
        %s1258 = scalar_lea.vmem %s450, 4
        %v1259 = vld [vmem:[%s1258] sm:$0x3]
        %v1260 = vmul.f32 %v1248, %v1237
        %v1261 = vadd.f32 %v1259, %v1260
        %v1262 = vtanh.pop %v1261
        %v1263 = vsub.f32 1.0, %v1257
        %v1264 = vmul.f32 %v1263, %v1262
        %v1265 = vmul.f32 %v1257, %v1026
        %v1266 = vadd.f32 %v1264, %v1265
        %s1267 = sadd.s32 %s483, 2
        %v1268 = vstv %s1267
        %vm1269 = vcmp.lt.s32.totalorder %v1268, %v482
        %v1270 = vsel %vm1269, 1, 0
        %1271 = vset.pattern.permute.xlu0 0
        %1272 = vperm.xlu0 %1271, %v1270
        %v1273 = vpop.permute.xlu0 %1272
        %vm1274 = vcmp.eq.s32.totalorder %v1273, 1
        %v1275 = vsel %vm1274, %v1266, %v1026
        %1276 = vst.msk [vmem:[#allocation2] sm:$0x3] %vm768, %v1275
        %v1277 = vsel %vm1274, %v1266, 0.0
        %s1278 = scalar_lea.vmem %s473, 4
        %1279 = vst.msk [vmem:[%s1278] sm:$0x3] %vm768, %v1277
        %v1280 = vld [vmem:[#allocation2] sm:$0x3]
        %v1282 = vsel %vm510, %v1280, 0
        %1284 = vmatprep.subr.mxu0 0.0
        %1285 = vmatpush1.msra.mxu0 0.0
        %1286 = vmatprep.subr.mxu0 0.0
        %1287 = vmatpush1.msra.mxu0 0.0
        %1288 = vmatprep.subr.mxu0 0.0
        %1289 = vmatpush1.msra.mxu0 0.0
        %1290 = vmatprep.subr.mxu0 0.0
        %1291 = vmatpush1.msra.mxu0 0.0
        %1292 = vmatprep.subr.mxu0 0.0
        %1293 = vmatpush1.msra.mxu0 0.0
        %1294 = vmatprep.subr.mxu0 0.0
        %1295 = vmatpush1.msra.mxu0 0.0
        %1296 = vmatprep.subr.mxu0 0.0
        %1297 = vmatpush1.msra.mxu0 0.0
        %1298 = vmatprep.subr.mxu0 0.0
        %1299 = vmatpush1.msra.mxu0 0.0
        %1300 = vmatprep.subr.mxu0 0.0
        %1301 = vmatpush1.msra.mxu0 0.0
        %1302 = vmatprep.subr.mxu0 0.0
        %1303 = vmatpush1.msra.mxu0 0.0
        %1304 = vmatprep.subr.mxu0 0.0
        %1305 = vmatpush1.msra.mxu0 0.0
        %1306 = vmatprep.subr.mxu0 0.0
        %1307 = vmatpush1.msra.mxu0 0.0
        %1308 = vmatprep.subr.mxu0 0.0
        %1309 = vmatpush1.msra.mxu0 %v487
        %1310 = vmatprep.subr.mxu0 0.0
        %1311 = vmatpush1.msra.mxu0 %v486
        %1312 = vmatprep.subr.mxu0 0.0
        %1313 = vmatpush1.msra.mxu0 %v485
        %1314 = vmatprep.subr.mxu0 0.0
        %1315 = vmatpush1.msra.mxu0 %v484
        %1316 = vmatprep.subr.mxu0 0.0
        %1317 = vmatpush2.msra.mxu0 0.0
        %1318 = vmatprep.subr.mxu0 0.0
        %1319 = vmatpush2.msra.mxu0 0.0
        %1320 = vmatprep.subr.mxu0 0.0
        %1321 = vmatpush2.msra.mxu0 0.0
        %1322 = vmatprep.subr.mxu0 0.0
        %1323 = vmatpush2.msra.mxu0 0.0
        %1324 = vmatprep.subr.mxu0 0.0
        %1325 = vmatpush2.msra.mxu0 0.0
        %1326 = vmatprep.subr.mxu0 0.0
        %1327 = vmatpush2.msra.mxu0 0.0
        %1328 = vmatprep.subr.mxu0 0.0
        %1329 = vmatpush2.msra.mxu0 0.0
        %1330 = vmatprep.subr.mxu0 0.0
        %1331 = vmatpush2.msra.mxu0 0.0
        %1332 = vmatprep.subr.mxu0 0.0
        %1333 = vmatpush2.msra.mxu0 0.0
        %1334 = vmatprep.subr.mxu0 0.0
        %1335 = vmatpush2.msra.mxu0 0.0
        %1336 = vmatprep.subr.mxu0 0.0
        %1337 = vmatpush2.msra.mxu0 0.0
        %1338 = vmatprep.subr.mxu0 0.0
        %1339 = vmatpush2.msra.mxu0 0.0
        %1340 = vmatprep.subr.mxu0 0.0
        %1341 = vmatpush2.msra.mxu0 0.0
        %1342 = vmatprep.subr.mxu0 0.0
        %1343 = vmatpush2.msra.mxu0 0.0
        %1344 = vmatprep.subr.mxu0 0.0
        %1345 = vmatpush2.msra.mxu0 0.0
        %1346 = vmatprep.subr.mxu0 0.0
        %1347 = vmatpush2.msra.mxu0 0.0
        %1348 = vmatprep.mubr.f32.mxu0 0.0
        %1349 = vmatmul.mubr.f32.gmra.mxu0 %v1282
        %v1350 = vpop.f32.mrf.mxu0
        %v1351 = vadd.f32 %v508, %v1350
        %v1352 = vpop.f32.mrf.mxu0
        %1353 = vdwg.mxu0
        %1354 = vmatprep.subr.mxu0 0.0
        %1355 = vmatpush1.msra.mxu0 0.0
        %1356 = vmatprep.subr.mxu0 0.0
        %1357 = vmatpush1.msra.mxu0 0.0
        %1358 = vmatprep.subr.mxu0 0.0
        %1359 = vmatpush1.msra.mxu0 0.0
        %1360 = vmatprep.subr.mxu0 0.0
        %1361 = vmatpush1.msra.mxu0 0.0
        %1362 = vmatprep.subr.mxu0 0.0
        %1363 = vmatpush1.msra.mxu0 0.0
        %1364 = vmatprep.subr.mxu0 0.0
        %1365 = vmatpush1.msra.mxu0 0.0
        %1366 = vmatprep.subr.mxu0 0.0
        %1367 = vmatpush1.msra.mxu0 0.0
        %1368 = vmatprep.subr.mxu0 0.0
        %1369 = vmatpush1.msra.mxu0 0.0
        %1370 = vmatprep.subr.mxu0 0.0
        %1371 = vmatpush1.msra.mxu0 0.0
        %1372 = vmatprep.subr.mxu0 0.0
        %1373 = vmatpush1.msra.mxu0 0.0
        %1374 = vmatprep.subr.mxu0 0.0
        %1375 = vmatpush1.msra.mxu0 0.0
        %1376 = vmatprep.subr.mxu0 0.0
        %1377 = vmatpush1.msra.mxu0 0.0
        %1378 = vmatprep.subr.mxu0 0.0
        %1379 = vmatpush1.msra.mxu0 %v492
        %1380 = vmatprep.subr.mxu0 0.0
        %1381 = vmatpush1.msra.mxu0 %v491
        %1382 = vmatprep.subr.mxu0 0.0
        %1383 = vmatpush1.msra.mxu0 %v490
        %1384 = vmatprep.subr.mxu0 0.0
        %1385 = vmatpush1.msra.mxu0 %v489
        %1386 = vmatprep.subr.mxu0 0.0
        %1387 = vmatpush2.msra.mxu0 0.0
        %1388 = vmatprep.subr.mxu0 0.0
        %1389 = vmatpush2.msra.mxu0 0.0
        %1390 = vmatprep.subr.mxu0 0.0
        %1391 = vmatpush2.msra.mxu0 0.0
        %1392 = vmatprep.subr.mxu0 0.0
        %1393 = vmatpush2.msra.mxu0 0.0
        %1394 = vmatprep.subr.mxu0 0.0
        %1395 = vmatpush2.msra.mxu0 0.0
        %1396 = vmatprep.subr.mxu0 0.0
        %1397 = vmatpush2.msra.mxu0 0.0
        %1398 = vmatprep.subr.mxu0 0.0
        %1399 = vmatpush2.msra.mxu0 0.0
        %1400 = vmatprep.subr.mxu0 0.0
        %1401 = vmatpush2.msra.mxu0 0.0
        %1402 = vmatprep.subr.mxu0 0.0
        %1403 = vmatpush2.msra.mxu0 0.0
        %1404 = vmatprep.subr.mxu0 0.0
        %1405 = vmatpush2.msra.mxu0 0.0
        %1406 = vmatprep.subr.mxu0 0.0
        %1407 = vmatpush2.msra.mxu0 0.0
        %1408 = vmatprep.subr.mxu0 0.0
        %1409 = vmatpush2.msra.mxu0 0.0
        %1410 = vmatprep.subr.mxu0 0.0
        %1411 = vmatpush2.msra.mxu0 0.0
        %1412 = vmatprep.subr.mxu0 0.0
        %1413 = vmatpush2.msra.mxu0 0.0
        %1414 = vmatprep.subr.mxu0 0.0
        %1415 = vmatpush2.msra.mxu0 0.0
        %1416 = vmatprep.subr.mxu0 0.0
        %1417 = vmatpush2.msra.mxu0 0.0
        %1418 = vmatprep.mubr.f32.mxu0 0.0
        %1419 = vmatmul.mubr.f32.gmra.mxu0 %v1282
        %v1420 = vpop.f32.mrf.mxu0
        %v1421 = vadd.f32 %v588, %v1420
        %v1422 = vpop.f32.mrf.mxu0
        %1423 = vdwg.mxu0
        %1424 = vmatprep.subr.mxu0 0.0
        %1425 = vmatpush1.msra.mxu0 0.0
        %1426 = vmatprep.subr.mxu0 0.0
        %1427 = vmatpush1.msra.mxu0 0.0
        %1428 = vmatprep.subr.mxu0 0.0
        %1429 = vmatpush1.msra.mxu0 0.0
        %1430 = vmatprep.subr.mxu0 0.0
        %1431 = vmatpush1.msra.mxu0 0.0
        %1432 = vmatprep.subr.mxu0 0.0
        %1433 = vmatpush1.msra.mxu0 0.0
        %1434 = vmatprep.subr.mxu0 0.0
        %1435 = vmatpush1.msra.mxu0 0.0
        %1436 = vmatprep.subr.mxu0 0.0
        %1437 = vmatpush1.msra.mxu0 0.0
        %1438 = vmatprep.subr.mxu0 0.0
        %1439 = vmatpush1.msra.mxu0 0.0
        %1440 = vmatprep.subr.mxu0 0.0
        %1441 = vmatpush1.msra.mxu0 0.0
        %1442 = vmatprep.subr.mxu0 0.0
        %1443 = vmatpush1.msra.mxu0 0.0
        %1444 = vmatprep.subr.mxu0 0.0
        %1445 = vmatpush1.msra.mxu0 0.0
        %1446 = vmatprep.subr.mxu0 0.0
        %1447 = vmatpush1.msra.mxu0 0.0
        %1448 = vmatprep.subr.mxu0 0.0
        %1449 = vmatpush1.msra.mxu0 %v497
        %1450 = vmatprep.subr.mxu0 0.0
        %1451 = vmatpush1.msra.mxu0 %v496
        %1452 = vmatprep.subr.mxu0 0.0
        %1453 = vmatpush1.msra.mxu0 %v495
        %1454 = vmatprep.subr.mxu0 0.0
        %1455 = vmatpush1.msra.mxu0 %v494
        %1456 = vmatprep.subr.mxu0 0.0
        %1457 = vmatpush2.msra.mxu0 0.0
        %1458 = vmatprep.subr.mxu0 0.0
        %1459 = vmatpush2.msra.mxu0 0.0
        %1460 = vmatprep.subr.mxu0 0.0
        %1461 = vmatpush2.msra.mxu0 0.0
        %1462 = vmatprep.subr.mxu0 0.0
        %1463 = vmatpush2.msra.mxu0 0.0
        %1464 = vmatprep.subr.mxu0 0.0
        %1465 = vmatpush2.msra.mxu0 0.0
        %1466 = vmatprep.subr.mxu0 0.0
        %1467 = vmatpush2.msra.mxu0 0.0
        %1468 = vmatprep.subr.mxu0 0.0
        %1469 = vmatpush2.msra.mxu0 0.0
        %1470 = vmatprep.subr.mxu0 0.0
        %1471 = vmatpush2.msra.mxu0 0.0
        %1472 = vmatprep.subr.mxu0 0.0
        %1473 = vmatpush2.msra.mxu0 0.0
        %1474 = vmatprep.subr.mxu0 0.0
        %1475 = vmatpush2.msra.mxu0 0.0
        %1476 = vmatprep.subr.mxu0 0.0
        %1477 = vmatpush2.msra.mxu0 0.0
        %1478 = vmatprep.subr.mxu0 0.0
        %1479 = vmatpush2.msra.mxu0 0.0
        %1480 = vmatprep.subr.mxu0 0.0
        %1481 = vmatpush2.msra.mxu0 0.0
        %1482 = vmatprep.subr.mxu0 0.0
        %1483 = vmatpush2.msra.mxu0 0.0
        %1484 = vmatprep.subr.mxu0 0.0
        %1485 = vmatpush2.msra.mxu0 0.0
        %1486 = vmatprep.subr.mxu0 0.0
        %1487 = vmatpush2.msra.mxu0 0.0
        %1488 = vmatprep.mubr.f32.mxu0 0.0
        %1489 = vmatmul.mubr.f32.gmra.mxu0 %v1282
        %v1490 = vpop.f32.mrf.mxu0
        %v1491 = vadd.f32 %v664, %v1490
        %v1492 = vpop.f32.mrf.mxu0
        %1493 = vdwg.mxu0
        %s1494 = scalar_lea.vmem %s430, 6
        %v1495 = vld [vmem:[%s1494] sm:$0x3]
        %v1496 = vadd.f32 %v1495, %v1351
        %v1497 = vxor.u32 %v1496, 2147483648
        %v1498 = vmul.f32 %v1497, 1.442695
        %v1499 = vpow.pop %v1498
        %v1500 = vadd.f32 %v1499, 1.0
        %v1501 = vrcp.pop %v1500
        %v1502 = vmul.f32 1.0, %v1501
        %s1503 = scalar_lea.vmem %s440, 6
        %v1504 = vld [vmem:[%s1503] sm:$0x3]
        %v1505 = vadd.f32 %v1504, %v1421
        %v1506 = vxor.u32 %v1505, 2147483648
        %v1507 = vmul.f32 %v1506, 1.442695
        %v1508 = vpow.pop %v1507
        %v1509 = vadd.f32 %v1508, 1.0
        %v1510 = vrcp.pop %v1509
        %v1511 = vmul.f32 1.0, %v1510
        %s1512 = scalar_lea.vmem %s450, 6
        %v1513 = vld [vmem:[%s1512] sm:$0x3]
        %v1514 = vmul.f32 %v1502, %v1491
        %v1515 = vadd.f32 %v1513, %v1514
        %v1516 = vtanh.pop %v1515
        %v1517 = vsub.f32 1.0, %v1511
        %v1518 = vmul.f32 %v1517, %v1516
        %v1519 = vmul.f32 %v1511, %v1280
        %v1520 = vadd.f32 %v1518, %v1519
        %s1521 = sadd.s32 %s483, 3
        %v1522 = vstv %s1521
        %vm1523 = vcmp.lt.s32.totalorder %v1522, %v482
        %v1524 = vsel %vm1523, 1, 0
        %1525 = vset.pattern.permute.xlu0 0
        %1526 = vperm.xlu0 %1525, %v1524
        %v1527 = vpop.permute.xlu0 %1526
        %vm1528 = vcmp.eq.s32.totalorder %v1527, 1
        %v1529 = vsel %vm1528, %v1520, %v1280
        %1530 = vst.msk [vmem:[#allocation2] sm:$0x3] %vm768, %v1529
        %v1531 = vsel %vm1528, %v1520, 0.0
        %s1532 = scalar_lea.vmem %s473, 6
        %1533 = vst.msk [vmem:[%s1532] sm:$0x3] %vm768, %v1531
        %v1534 = vld [vmem:[#allocation2] sm:$0x3]
        %1535 = vst.msk [vmem:[#allocation3] sm:$0x3] %vm768, %v1534
        %s1536 = smul.u32 4, %s26
        %p1537 = scmp.lt.s32.totalorder %s25, 0
        %s1538 = scalar_select %p1537, %s25, 0
        %p1539 = scmp.lt.s32.totalorder %s1536, 7
        %s1540 = scalar_select %p1539, %s1536, 7
        %s1541 = smul.addr %s1538, 8
        %s1542 = sadd.s32 %s1540, %s1541
        %s1543 = smul.addr %s1542, 2
        %s1544 = scalar_lea.vmem %s7, %s1543
        // Predicated region
        $region53: #{plain_seq2seq_forward.5} parent=47 // pred_check
          %p1545 = pneg %p236
        $region54: #{plain_seq2seq_forward.5} parent=47 // pred_check_branch
          %1547 = sbr.rel (%p1545) target = $region56
        $region55: #{plain_seq2seq_forward.5} parent=47 // pred_region
          %s1548 = smul.u32 4, %s26
        $region56: #{plain_seq2seq_forward.5} parent=47 // pred_fallthru
          _
        // Predicated region
        $region57: #{plain_seq2seq_forward.5} parent=47 // pred_check
          %p1549 = pneg %p262
        $region58: #{plain_seq2seq_forward.5} parent=47 // pred_check_branch
          %1551 = sbr.rel (%p1549) target = $region60
        $region59: #{plain_seq2seq_forward.5} parent=47 // pred_region
          %s1553 = ssub.s32 32, 32
          %1554 = vsyncadd [#allocation4], %s1553
          %s1555 = smul.addr %s25, 32
          %s1556 = scalar_lea.hbm %s8, %s1555
          %s1558 = sshll.u32 [#allocation3], 4
          %s1559 = int_to_ptr.vmem [resolvable:$true] %s1558
          %1561 = dma.vmem_to_hbm [thread:$0]  %s1559, 32, %s1556, [#allocation4]
        $region60: #{plain_seq2seq_forward.5} parent=47 // pred_fallthru
          _
        // Predicated region
        $region61: #{plain_seq2seq_forward.5} parent=47 // pred_check
          %p1562 = pneg %p262
        $region62: #{plain_seq2seq_forward.5} parent=47 // pred_check_branch
          %1564 = sbr.rel (%p1562) target = $region64
        $region63: #{plain_seq2seq_forward.5} parent=47 // pred_region
          %1565 = dma.done [#allocation4], 32
        $region64: #{plain_seq2seq_forward.5} parent=47 // pred_fallthru
          _
      $region48: #{plain_seq2seq_forward.5} parent=5 // pred_fallthru
        _
      %p1566 = scmp.le.s32.totalorder 2, %s16
      // Predicated region
      $region65: #{plain_seq2seq_forward.5} parent=5 // pred_check
        %p1567 = pneg %p1566
      $region66: #{plain_seq2seq_forward.5} parent=5 // pred_check_branch
        %1569 = sbr.rel (%p1567) target = $region68
      $region67: #{plain_seq2seq_forward.5} parent=5 // pred_region
        %s1570 = ssub.s32 %s16, 2
        // Predicated region
        $region69: #{plain_seq2seq_forward.5} parent=67 // pred_check
          %p1571 = pneg %p242
        $region70: #{plain_seq2seq_forward.5} parent=67 // pred_check_branch
          %1573 = sbr.rel (%p1571) target = $region72
        $region71: #{plain_seq2seq_forward.5} parent=67 // pred_region
          %s1574 = smul.u32 4, %s28
          %p1575 = scmp.lt.s32.totalorder %s27, 0
          %s1576 = scalar_select %p1575, %s27, 0
          %p1577 = scmp.lt.s32.totalorder %s1574, 7
          %s1578 = scalar_select %p1577, %s1574, 7
          %s1579 = smul.addr %s1576, 8
          %s1580 = sadd.s32 %s1578, %s1579
          %s1581 = smul.addr %s1580, 2
          %s1582 = scalar_lea.vmem %s7, %s1581
        $region72: #{plain_seq2seq_forward.5} parent=67 // pred_fallthru
          _
      $region68: #{plain_seq2seq_forward.5} parent=5 // pred_fallthru
        _
    $region6: #{plain_seq2seq_forward.5} parent=1 // loop_footer
      %s20 = sadd.s32 1, %s16
    $region7: #{plain_seq2seq_forward.5} parent=1 // loop_footer_branch
      %15 = sbr.rel target = $region3
    $region8: #{plain_seq2seq_forward.5} parent=1 // loop_exit
      _
    %1583 = vsyncpa [#allocation4], 1
    %s1584 = scalar_lea.sflag [#allocation4], 1
    %1585 = vsyncpa %s1584, 1

// kernel: plain_seq2seq_forward.7
$region0: #{plain_seq2seq_forward.7}
  #allocation0 [shape = 'u32[]', space=smem, size = 0x4, offset = 0x4, fixed_abs, tag = 'smem constant byte address 0x4 - core index']
  #allocation1 [shape = 'u32[144,128]{1,0:T(1,128)}', space=vmem, size = 0x12000, scoped, tag = 'internal scratch']
  %s0 = inlined_call_operand.vmem [shape: f32[16,32], index: 0, kind: input, shape index: {}]
  %s1 = inlined_call_operand.vmem [shape: f32[32,60], index: 1, kind: input, shape index: {}]
  %s2 = inlined_call_operand.vmem [shape: f32[1,60], index: 2, kind: input, shape index: {}]
  %s3 = inlined_call_operand.hbm [shape: f32[16,60], index: 3, kind: output, shape index: {}]
  %s4 = sld [smem:[#allocation0]]
  $region22: #{plain_seq2seq_forward.7} parent=0
    _
  %s6 = ssub.s32 1, %s4
  %s7 = scalar_select 0, %s6, %s4
  $region1: #{plain_seq2seq_forward.7} parent=0
    #allocation2 [shape = 'u8[8192]{0}', space=vmem, size = 0x2000, scoped, tag = 'output window, operand 0, single buffered']
    #allocation3 [shape = 's32[1]{0}', space=sflag, size = 0x4, scoped, tag = 'scoped memory for plain_seq2seq_forward.7']
    %8 = vsyncpa [#allocation3], 0
    // Predicated region
    $region2: #{plain_seq2seq_forward.7} parent=1 // pred_check
      _
    $region3: #{plain_seq2seq_forward.7} parent=1 // pred_check_branch
      %10 = sbr.rel (0) target = $region5
    $region4: #{plain_seq2seq_forward.7} parent=1 // pred_region
      _
    $region5: #{plain_seq2seq_forward.7} parent=1 // pred_fallthru
      _
    // Predicated region
    $region6: #{plain_seq2seq_forward.7} parent=1 // pred_check
      _
    $region7: #{plain_seq2seq_forward.7} parent=1 // pred_check_branch
      %12 = sbr.rel (0) target = $region9
    $region8: #{plain_seq2seq_forward.7} parent=1 // pred_region
      _
    $region9: #{plain_seq2seq_forward.7} parent=1 // pred_fallthru
      _
    // Predicated region
    $region10: #{plain_seq2seq_forward.7} parent=1 // pred_check
      _
    $region11: #{plain_seq2seq_forward.7} parent=1 // pred_check_branch
      %14 = sbr.rel (0) target = $region13
    $region12: #{plain_seq2seq_forward.7} parent=1 // pred_region
      _
    $region13: #{plain_seq2seq_forward.7} parent=1 // pred_fallthru
      _
    %v15 = vld [vmem:[%s0] sm:$0xff]
    %v16 = vld [vmem:[%s0 + $0x8] sm:$0xff]
    %v17 = vld [vmem:[%s1] sm:$0xff]
    %v18 = vld [vmem:[%s1 + $0x8] sm:$0xff]
    %v19 = vld [vmem:[%s1 + $0x10] sm:$0xff]
    %v20 = vld [vmem:[%s1 + $0x18] sm:$0xff]
    %v21 = vld [vmem:[%s2] sm:$0x1]
    %v23 = vlaneseq
    %v24 = vshrl.u32 %v23, 7
    %v25 = vsub.s32 0, %v24
    %v26 = vrot.slane %v21, %v25
    %vm28 = vcmask 261120
    %v30 = vsel %vm28, %v15, 0
    %v33 = vsel %vm28, %v16, 0
    %35 = vmatprep.subr.mxu0 0.0
    %36 = vmatpush1.msra.mxu0 0.0
    %37 = vmatprep.subr.mxu0 0.0
    %38 = vmatpush1.msra.mxu0 0.0
    %39 = vmatprep.subr.mxu0 0.0
    %40 = vmatpush1.msra.mxu0 0.0
    %41 = vmatprep.subr.mxu0 0.0
    %42 = vmatpush1.msra.mxu0 0.0
    %43 = vmatprep.subr.mxu0 0.0
    %44 = vmatpush1.msra.mxu0 0.0
    %45 = vmatprep.subr.mxu0 0.0
    %46 = vmatpush1.msra.mxu0 0.0
    %47 = vmatprep.subr.mxu0 0.0
    %48 = vmatpush1.msra.mxu0 0.0
    %49 = vmatprep.subr.mxu0 0.0
    %50 = vmatpush1.msra.mxu0 0.0
    %51 = vmatprep.subr.mxu0 0.0
    %52 = vmatpush1.msra.mxu0 0.0
    %53 = vmatprep.subr.mxu0 0.0
    %54 = vmatpush1.msra.mxu0 0.0
    %55 = vmatprep.subr.mxu0 0.0
    %56 = vmatpush1.msra.mxu0 0.0
    %57 = vmatprep.subr.mxu0 0.0
    %58 = vmatpush1.msra.mxu0 0.0
    %59 = vmatprep.subr.mxu0 0.0
    %60 = vmatpush1.msra.mxu0 %v20
    %61 = vmatprep.subr.mxu0 0.0
    %62 = vmatpush1.msra.mxu0 %v19
    %63 = vmatprep.subr.mxu0 0.0
    %64 = vmatpush1.msra.mxu0 %v18
    %65 = vmatprep.subr.mxu0 0.0
    %66 = vmatpush1.msra.mxu0 %v17
    %67 = vmatprep.subr.mxu0 0.0
    %68 = vmatpush2.msra.mxu0 0.0
    %69 = vmatprep.subr.mxu0 0.0
    %70 = vmatpush2.msra.mxu0 0.0
    %71 = vmatprep.subr.mxu0 0.0
    %72 = vmatpush2.msra.mxu0 0.0
    %73 = vmatprep.subr.mxu0 0.0
    %74 = vmatpush2.msra.mxu0 0.0
    %75 = vmatprep.subr.mxu0 0.0
    %76 = vmatpush2.msra.mxu0 0.0
    %77 = vmatprep.subr.mxu0 0.0
    %78 = vmatpush2.msra.mxu0 0.0
    %79 = vmatprep.subr.mxu0 0.0
    %80 = vmatpush2.msra.mxu0 0.0
    %81 = vmatprep.subr.mxu0 0.0
    %82 = vmatpush2.msra.mxu0 0.0
    %83 = vmatprep.subr.mxu0 0.0
    %84 = vmatpush2.msra.mxu0 0.0
    %85 = vmatprep.subr.mxu0 0.0
    %86 = vmatpush2.msra.mxu0 0.0
    %87 = vmatprep.subr.mxu0 0.0
    %88 = vmatpush2.msra.mxu0 0.0
    %89 = vmatprep.subr.mxu0 0.0
    %90 = vmatpush2.msra.mxu0 0.0
    %91 = vmatprep.subr.mxu0 0.0
    %92 = vmatpush2.msra.mxu0 0.0
    %93 = vmatprep.subr.mxu0 0.0
    %94 = vmatpush2.msra.mxu0 0.0
    %95 = vmatprep.subr.mxu0 0.0
    %96 = vmatpush2.msra.mxu0 0.0
    %97 = vmatprep.subr.mxu0 0.0
    %98 = vmatpush2.msra.mxu0 0.0
    %99 = vmatprep.mubr.f32.mxu0 0.0
    %100 = vmatmul.mubr.f32.gmra.mxu0 %v30
    %v101 = vpop.f32.mrf.mxu0
    %v102 = vadd.f32 %v26, %v101
    %v103 = vpop.f32.mrf.mxu0
    %104 = vmatprep.mubr.f32.mxu0 0.0
    %105 = vmatmul.mubr.f32.gmra.mxu0 %v33
    %v106 = vpop.f32.mrf.mxu0
    %v107 = vadd.f32 %v26, %v106
    %v108 = vpop.f32.mrf.mxu0
    %109 = vdwg.mxu0
    %vm110 = vcmask 490496
    %v111 = vsel %vm110, %v102, -inf
    %112 = vmax.xlane.f32.xlu0 %v111
    %v113 = vpop.xlane.xlu0 %112
    %v114 = vsel %vm110, %v107, -inf
    %115 = vmax.xlane.f32.xlu0 %v114
    %v116 = vpop.xlane.xlu0 %115
    %v117 = vsub.f32 %v102, %v113
    %v118 = vsub.f32 %v107, %v116
    %v119 = vmul.f32 %v117, 1.442695
    %v120 = vpow.pop %v119
    %v121 = vmul.f32 %v118, 1.442695
    %v122 = vpow.pop %v121
    %v123 = vsel %vm110, %v120, 0.0
    %124 = vadd.xlane.f32.xlu0 %v123
    %v125 = vpop.xlane.xlu0 %124
    %v126 = vsel %vm110, %v122, 0.0
    %127 = vadd.xlane.f32.xlu0 %v126
    %v128 = vpop.xlane.xlu0 %127
    %v129 = vlog2.pop %v125
    %v130 = vmul.f32 %v129, 0.6931472
    %v131 = vlog2.pop %v128
    %v132 = vmul.f32 %v131, 0.6931472
    %v133 = vsub.f32 %v117, %v130
    %v134 = vsub.f32 %v118, %v132
    %135 = vst.msk [vmem:[#allocation2] sm:$0xff] %vm110, %v133
    %136 = vst.msk [vmem:[#allocation2 + $0x8] sm:$0xff] %vm110, %v134
    // Predicated region
    $region14: #{plain_seq2seq_forward.7} parent=1 // pred_check
      _
    $region15: #{plain_seq2seq_forward.7} parent=1 // pred_check_branch
      %138 = sbr.rel (0) target = $region17
    $region16: #{plain_seq2seq_forward.7} parent=1 // pred_region
      %s140 = ssub.s32 256, 256
      %141 = vsyncadd [#allocation3], %s140
      %s142 = sshll.u32 [#allocation2], 4
      %s143 = int_to_ptr.vmem [resolvable:$true] %s142
      %148 = dma.vmem_to_hbm [thread:$0]  %s143, 256, %s3, [#allocation3], 128, 128, 8
    $region17: #{plain_seq2seq_forward.7} parent=1 // pred_fallthru
      _
    // Predicated region
    $region18: #{plain_seq2seq_forward.7} parent=1 // pred_check
      _
    $region19: #{plain_seq2seq_forward.7} parent=1 // pred_check_branch
      %150 = sbr.rel (0) target = $region21
    $region20: #{plain_seq2seq_forward.7} parent=1 // pred_region
      %151 = dma.done [#allocation3], 256
    $region21: #{plain_seq2seq_forward.7} parent=1 // pred_fallthru
      _
    %152 = vsyncpa [#allocation3], 1

// kernel: plain_seq2seq_forward.6
$region0: #{plain_seq2seq_forward.6}
  #allocation0 [shape = 'u32[]', space=smem, size = 0x4, offset = 0x4, fixed_abs, tag = 'smem constant byte address 0x4 - core index']
  #allocation1 [shape = 'u32[144,128]{1,0:T(1,128)}', space=vmem, size = 0x12000, scoped, tag = 'internal scratch']
  %s0 = inlined_call_operand.vmem [shape: f32[2,8,32], index: 0, kind: input, shape index: {}]
  %s1 = inlined_call_operand.vmem [shape: f32[2,8,64], index: 1, kind: input, shape index: {}]
  %s2 = inlined_call_operand.vmem [shape: f32[64,32], index: 2, kind: input, shape index: {}]
  %s3 = inlined_call_operand.vmem [shape: f32[64,32], index: 3, kind: input, shape index: {}]
  %s4 = inlined_call_operand.vmem [shape: f32[32,32], index: 4, kind: input, shape index: {}]
  %s5 = inlined_call_operand.vmem [shape: f32[1,32], index: 5, kind: input, shape index: {}]
  %s6 = inlined_call_operand.vmem [shape: f32[16,32], index: 6, kind: output, shape index: {}]
  %s7 = sld [smem:[#allocation0]]
  $region57: #{plain_seq2seq_forward.6} parent=0
    _
  %s9 = ssub.s32 1, %s7
  %s10 = scalar_select 0, %s9, %s7
  loop: start=0, step=1, limit=4
  $region2: #{plain_seq2seq_forward.6} parent=0 // loop_pre_header
    _
  $region3: #{plain_seq2seq_forward.6} parent=0 // loop_header
    %s12 = sphi 0, %s16
    %p13 = scmp.ge.s32.totalorder %s12, 4
    %s22 = sphi 0, %s24
    %s25 = sphi 0, %s22
    %s26 = sphi 0, %s25
    %s42 = sphi 0, %s26
    %s48 = sphi 0, %s50
    %s51 = sphi 0, %s48
    %s52 = sphi 0, %s51
    %s68 = sphi 0, %s52
    %s72 = sphi 0, %s72
    %s74 = sphi 0, %s72
    %s75 = sphi 0, %s74
    %s89 = sphi 0, %s75
    %s93 = sphi 0, %s93
    %s95 = sphi 0, %s93
    %s96 = sphi 0, %s95
    %s110 = sphi 0, %s96
    %s114 = sphi 0, %s114
    %s116 = sphi 0, %s114
    %s117 = sphi 0, %s116
    %s131 = sphi 0, %s117
    %s135 = sphi 0, %s135
    %s137 = sphi 0, %s135
    %s138 = sphi 0, %s137
    %s152 = sphi 0, %s138
    %s158 = sphi 0, %s160
    %s161 = sphi 0, %s158
    %s162 = sphi 0, %s161
    %s178 = sphi 0, %s162
  $region4: #{plain_seq2seq_forward.6} parent=0 // loop_header_branch
    %15 = sbr.rel (%p13) target = $region8
  $region5: #{plain_seq2seq_forward.6} parent=0 // loop_body
    %s17 = ssub.s32 %s12, 1
    %s18 = ssub.s32 %s12, 2
    %s19 = sadd.s32 %s12, 1
    %s20 = ssub.s32 %s12, %s19
    %p21 = scmp.eq.s32.totalorder %s20, 0
    %s23 = sadd.s32 %s22, 1
    %s24 = scalar_select %p21, %s22, %s23
    %p27 = pneg %p21
    %p28 = scmp.eq.s32.totalorder %s12, 1
    %p29 = por %p27, %p28
    %p30 = scmp.ne.s32.totalorder %s22, %s25
    %p31 = scmp.eq.s32.totalorder %s12, 0
    %p32 = por %p30, %p31
    %p33 = scmp.ne.s32.totalorder %s22, %s25
    %p34 = scmp.eq.s32.totalorder %s17, 1
    %p35 = por %p33, %p34
    %p36 = scmp.ne.s32.totalorder %s25, %s26
    %p37 = scmp.eq.s32.totalorder %s17, 0
    %p38 = por %p36, %p37
    %p39 = scmp.ne.s32.totalorder %s25, %s26
    %p40 = scmp.eq.s32.totalorder %s18, 1
    %p41 = por %p39, %p40
    %p43 = scmp.ne.s32.totalorder %s26, %s42
    %p44 = scmp.eq.s32.totalorder %s18, 0
    %p45 = por %p43, %p44
    %s46 = ssub.s32 %s12, %s19
    %p47 = scmp.eq.s32.totalorder %s46, 0
    %s49 = sadd.s32 %s48, 1
    %s50 = scalar_select %p47, %s48, %s49
    %p53 = pneg %p47
    %p54 = scmp.eq.s32.totalorder %s12, 1
    %p55 = por %p53, %p54
    %p56 = scmp.ne.s32.totalorder %s48, %s51
    %p57 = scmp.eq.s32.totalorder %s12, 0
    %p58 = por %p56, %p57
    %p59 = scmp.ne.s32.totalorder %s48, %s51
    %p60 = scmp.eq.s32.totalorder %s17, 1
    %p61 = por %p59, %p60
    %p62 = scmp.ne.s32.totalorder %s51, %s52
    %p63 = scmp.eq.s32.totalorder %s17, 0
    %p64 = por %p62, %p63
    %p65 = scmp.ne.s32.totalorder %s51, %s52
    %p66 = scmp.eq.s32.totalorder %s18, 1
    %p67 = por %p65, %p66
    %p69 = scmp.ne.s32.totalorder %s52, %s68
    %p70 = scmp.eq.s32.totalorder %s18, 0
    %p71 = por %p69, %p70
    %s73 = sadd.s32 %s72, 1
    %p76 = scmp.eq.s32.totalorder %s12, 1
    %p77 = scmp.ne.s32.totalorder %s72, %s74
    %p78 = scmp.eq.s32.totalorder %s12, 0
    %p79 = por %p77, %p78
    %p80 = scmp.ne.s32.totalorder %s72, %s74
    %p81 = scmp.eq.s32.totalorder %s17, 1
    %p82 = por %p80, %p81
    %p83 = scmp.ne.s32.totalorder %s74, %s75
    %p84 = scmp.eq.s32.totalorder %s17, 0
    %p85 = por %p83, %p84
    %p86 = scmp.ne.s32.totalorder %s74, %s75
    %p87 = scmp.eq.s32.totalorder %s18, 1
    %p88 = por %p86, %p87
    %p90 = scmp.ne.s32.totalorder %s75, %s89
    %p91 = scmp.eq.s32.totalorder %s18, 0
    %p92 = por %p90, %p91
    %s94 = sadd.s32 %s93, 1
    %p97 = scmp.eq.s32.totalorder %s12, 1
    %p98 = scmp.ne.s32.totalorder %s93, %s95
    %p99 = scmp.eq.s32.totalorder %s12, 0
    %p100 = por %p98, %p99
    %p101 = scmp.ne.s32.totalorder %s93, %s95
    %p102 = scmp.eq.s32.totalorder %s17, 1
    %p103 = por %p101, %p102
    %p104 = scmp.ne.s32.totalorder %s95, %s96
    %p105 = scmp.eq.s32.totalorder %s17, 0
    %p106 = por %p104, %p105
    %p107 = scmp.ne.s32.totalorder %s95, %s96
    %p108 = scmp.eq.s32.totalorder %s18, 1
    %p109 = por %p107, %p108
    %p111 = scmp.ne.s32.totalorder %s96, %s110
    %p112 = scmp.eq.s32.totalorder %s18, 0
    %p113 = por %p111, %p112
    %s115 = sadd.s32 %s114, 1
    %p118 = scmp.eq.s32.totalorder %s12, 1
    %p119 = scmp.ne.s32.totalorder %s114, %s116
    %p120 = scmp.eq.s32.totalorder %s12, 0
    %p121 = por %p119, %p120
    %p122 = scmp.ne.s32.totalorder %s114, %s116
    %p123 = scmp.eq.s32.totalorder %s17, 1
    %p124 = por %p122, %p123
    %p125 = scmp.ne.s32.totalorder %s116, %s117
    %p126 = scmp.eq.s32.totalorder %s17, 0
    %p127 = por %p125, %p126
    %p128 = scmp.ne.s32.totalorder %s116, %s117
    %p129 = scmp.eq.s32.totalorder %s18, 1
    %p130 = por %p128, %p129
    %p132 = scmp.ne.s32.totalorder %s117, %s131
    %p133 = scmp.eq.s32.totalorder %s18, 0
    %p134 = por %p132, %p133
    %s136 = sadd.s32 %s135, 1
    %p139 = scmp.eq.s32.totalorder %s12, 1
    %p140 = scmp.ne.s32.totalorder %s135, %s137
    %p141 = scmp.eq.s32.totalorder %s12, 0
    %p142 = por %p140, %p141
    %p143 = scmp.ne.s32.totalorder %s135, %s137
    %p144 = scmp.eq.s32.totalorder %s17, 1
    %p145 = por %p143, %p144
    %p146 = scmp.ne.s32.totalorder %s137, %s138
    %p147 = scmp.eq.s32.totalorder %s17, 0
    %p148 = por %p146, %p147
    %p149 = scmp.ne.s32.totalorder %s137, %s138
    %p150 = scmp.eq.s32.totalorder %s18, 1
    %p151 = por %p149, %p150
    %p153 = scmp.ne.s32.totalorder %s138, %s152
    %p154 = scmp.eq.s32.totalorder %s18, 0
    %p155 = por %p153, %p154
    %s156 = ssub.s32 %s12, %s19
    %p157 = scmp.eq.s32.totalorder %s156, 0
    %s159 = sadd.s32 %s158, 1
    %s160 = scalar_select %p157, %s158, %s159
    %p163 = pneg %p157
    %p164 = scmp.eq.s32.totalorder %s12, 1
    %p165 = por %p163, %p164
    %p166 = scmp.ne.s32.totalorder %s158, %s161
    %p167 = scmp.eq.s32.totalorder %s12, 0
    %p168 = por %p166, %p167
    %p169 = scmp.ne.s32.totalorder %s158, %s161
    %p170 = scmp.eq.s32.totalorder %s17, 1
    %p171 = por %p169, %p170
    %p172 = scmp.ne.s32.totalorder %s161, %s162
    %p173 = scmp.eq.s32.totalorder %s17, 0
    %p174 = por %p172, %p173
    %p175 = scmp.ne.s32.totalorder %s161, %s162
    %p176 = scmp.eq.s32.totalorder %s18, 1
    %p177 = por %p175, %p176
    %p179 = scmp.ne.s32.totalorder %s162, %s178
    %p180 = scmp.eq.s32.totalorder %s18, 0
    %p181 = por %p179, %p180
    %p182 = scmp.le.s32.totalorder 1, %s12
    %p183 = scmp.lt.s32.totalorder %s12, 3
    %p184 = pnand %p182, %p183
    %p185 = pneg %p184
    // Predicated region
    $region9: #{plain_seq2seq_forward.6} parent=5 // pred_check
      _
    $region10: #{plain_seq2seq_forward.6} parent=5 // pred_check_branch
      %187 = sbr.rel (%p184) target = $region12
    $region11: #{plain_seq2seq_forward.6} parent=5 // pred_region
      %s188 = ssub.s32 %s12, 1
      // Predicated region
      $region13: #{plain_seq2seq_forward.6} parent=11 // pred_check
        %p189 = pneg %p85
      $region14: #{plain_seq2seq_forward.6} parent=11 // pred_check_branch
        %191 = sbr.rel (%p189) target = $region16
      $region15: #{plain_seq2seq_forward.6} parent=11 // pred_region
        _
      $region16: #{plain_seq2seq_forward.6} parent=11 // pred_fallthru
        _
      // Predicated region
      $region17: #{plain_seq2seq_forward.6} parent=11 // pred_check
        %p192 = pneg %p106
      $region18: #{plain_seq2seq_forward.6} parent=11 // pred_check_branch
        %194 = sbr.rel (%p192) target = $region20
      $region19: #{plain_seq2seq_forward.6} parent=11 // pred_region
        _
      $region20: #{plain_seq2seq_forward.6} parent=11 // pred_fallthru
        _
      // Predicated region
      $region21: #{plain_seq2seq_forward.6} parent=11 // pred_check
        %p195 = pneg %p127
      $region22: #{plain_seq2seq_forward.6} parent=11 // pred_check_branch
        %197 = sbr.rel (%p195) target = $region24
      $region23: #{plain_seq2seq_forward.6} parent=11 // pred_region
        _
      $region24: #{plain_seq2seq_forward.6} parent=11 // pred_fallthru
        _
      // Predicated region
      $region25: #{plain_seq2seq_forward.6} parent=11 // pred_check
        %p198 = pneg %p148
      $region26: #{plain_seq2seq_forward.6} parent=11 // pred_check_branch
        %200 = sbr.rel (%p198) target = $region28
      $region27: #{plain_seq2seq_forward.6} parent=11 // pred_region
        _
      $region28: #{plain_seq2seq_forward.6} parent=11 // pred_fallthru
        _
    $region12: #{plain_seq2seq_forward.6} parent=5 // pred_fallthru
      _
    %p201 = scmp.lt.s32.totalorder %s12, 2
    // Predicated region
    $region29: #{plain_seq2seq_forward.6} parent=5 // pred_check
      %p202 = pneg %p201
    $region30: #{plain_seq2seq_forward.6} parent=5 // pred_check_branch
      %204 = sbr.rel (%p202) target = $region32
    $region31: #{plain_seq2seq_forward.6} parent=5 // pred_region
      // Predicated region
      $region33: #{plain_seq2seq_forward.6} parent=31 // pred_check
        %p205 = pneg %p32
      $region34: #{plain_seq2seq_forward.6} parent=31 // pred_check_branch
        %207 = sbr.rel (%p205) target = $region36
      $region35: #{plain_seq2seq_forward.6} parent=31 // pred_region
        %p208 = scmp.lt.s32.totalorder %s12, 1
        %s209 = scalar_select %p208, %s12, 1
        %s210 = smul.addr %s209, 8
        %s211 = scalar_lea.vmem %s0, %s210
      $region36: #{plain_seq2seq_forward.6} parent=31 // pred_fallthru
        _
      // Predicated region
      $region37: #{plain_seq2seq_forward.6} parent=31 // pred_check
        %p212 = pneg %p58
      $region38: #{plain_seq2seq_forward.6} parent=31 // pred_check_branch
        %214 = sbr.rel (%p212) target = $region40
      $region39: #{plain_seq2seq_forward.6} parent=31 // pred_region
        %p215 = scmp.lt.s32.totalorder %s12, 1
        %s216 = scalar_select %p215, %s12, 1
        %s217 = smul.addr %s216, 8
        %s218 = scalar_lea.vmem %s1, %s217
      $region40: #{plain_seq2seq_forward.6} parent=31 // pred_fallthru
        _
    $region32: #{plain_seq2seq_forward.6} parent=5 // pred_fallthru
      _
    %p219 = scmp.le.s32.totalorder 1, %s12
    %p220 = scmp.lt.s32.totalorder %s12, 3
    %p221 = pnand %p219, %p220
    %p222 = pneg %p221
    // Predicated region
    $region41: #{plain_seq2seq_forward.6} parent=5 // pred_check
      _
    $region42: #{plain_seq2seq_forward.6} parent=5 // pred_check_branch
      %224 = sbr.rel (%p221) target = $region44
    $region43: #{plain_seq2seq_forward.6} parent=5 // pred_region
      %s225 = ssub.s32 %s12, 1
      %p226 = scmp.lt.s32.totalorder %s17, 1
      %s227 = scalar_select %p226, %s17, 1
      %s228 = smul.addr %s227, 8
      %s229 = scalar_lea.vmem %s0, %s228
      %p230 = pneg %p38
      %p231 = pneg %p35
      %p232 = scmp.lt.s32.totalorder %s17, 1
      %s233 = scalar_select %p232, %s17, 1
      %s234 = smul.addr %s233, 8
      %s235 = scalar_lea.vmem %s1, %s234
      %p236 = pneg %p64
      %p237 = pneg %p61
      %p238 = pneg %p85
      %p239 = pneg %p82
      %p240 = pneg %p106
      %p241 = pneg %p103
      %p242 = pneg %p127
      %p243 = pneg %p124
      %p244 = pneg %p148
      %p245 = pneg %p145
      %p246 = pneg %p174
      %p247 = pneg %p171
      %p248 = scmp.lt.s32.totalorder %s17, 1
      %s249 = scalar_select %p248, %s17, 1
      %s250 = smul.addr %s249, 8
      %s251 = scalar_lea.vmem %s6, %s250
      %p252 = scmp.lt.s32.totalorder %s17, 1
      %s253 = scalar_select %p252, %s17, 1
      %s254 = smul.addr %s253, 8
      %s255 = scalar_lea.vmem %s0, %s254
      %p256 = scmp.lt.s32.totalorder %s17, 1
      %s257 = scalar_select %p256, %s17, 1
      %s258 = smul.addr %s257, 8
      %s259 = scalar_lea.vmem %s1, %s258
      %p260 = scmp.lt.s32.totalorder %s17, 1
      %s261 = scalar_select %p260, %s17, 1
      %s262 = smul.addr %s261, 8
      %s263 = scalar_lea.vmem %s6, %s262
      %v264 = vld [vmem:[%s255] sm:$0xff]
      %v265 = vld [vmem:[%s259] sm:$0xff]
      %v266 = vld [vmem:[%s2] sm:$0xff]
      %v267 = vld [vmem:[%s2 + $0x8] sm:$0xff]
      %v268 = vld [vmem:[%s2 + $0x10] sm:$0xff]
      %v269 = vld [vmem:[%s2 + $0x18] sm:$0xff]
      %v270 = vld [vmem:[%s2 + $0x20] sm:$0xff]
      %v271 = vld [vmem:[%s2 + $0x28] sm:$0xff]
      %v272 = vld [vmem:[%s2 + $0x30] sm:$0xff]
      %v273 = vld [vmem:[%s2 + $0x38] sm:$0xff]
      %vm274 = vcmask 523264
      %v276 = vsel %vm274, %v265, 0
      %278 = vmatprep.subr.mxu0 0.0
      %279 = vmatpush1.msra.mxu0 0.0
      %280 = vmatprep.subr.mxu0 0.0
      %281 = vmatpush1.msra.mxu0 0.0
      %282 = vmatprep.subr.mxu0 0.0
      %283 = vmatpush1.msra.mxu0 0.0
      %284 = vmatprep.subr.mxu0 0.0
      %285 = vmatpush1.msra.mxu0 0.0
      %286 = vmatprep.subr.mxu0 0.0
      %287 = vmatpush1.msra.mxu0 0.0
      %288 = vmatprep.subr.mxu0 0.0
      %289 = vmatpush1.msra.mxu0 0.0
      %290 = vmatprep.subr.mxu0 0.0
      %291 = vmatpush1.msra.mxu0 0.0
      %292 = vmatprep.subr.mxu0 0.0
      %293 = vmatpush1.msra.mxu0 0.0
      %294 = vmatprep.subr.mxu0 0.0
      %295 = vmatpush1.msra.mxu0 %v273
      %296 = vmatprep.subr.mxu0 0.0
      %297 = vmatpush1.msra.mxu0 %v272
      %298 = vmatprep.subr.mxu0 0.0
      %299 = vmatpush1.msra.mxu0 %v271
      %300 = vmatprep.subr.mxu0 0.0
      %301 = vmatpush1.msra.mxu0 %v270
      %302 = vmatprep.subr.mxu0 0.0
      %303 = vmatpush1.msra.mxu0 %v269
      %304 = vmatprep.subr.mxu0 0.0
      %305 = vmatpush1.msra.mxu0 %v268
      %306 = vmatprep.subr.mxu0 0.0
      %307 = vmatpush1.msra.mxu0 %v267
      %308 = vmatprep.subr.mxu0 0.0
      %309 = vmatpush1.msra.mxu0 %v266
      %310 = vmatprep.subr.mxu0 0.0
      %311 = vmatpush2.msra.mxu0 0.0
      %312 = vmatprep.subr.mxu0 0.0
      %313 = vmatpush2.msra.mxu0 0.0
      %314 = vmatprep.subr.mxu0 0.0
      %315 = vmatpush2.msra.mxu0 0.0
      %316 = vmatprep.subr.mxu0 0.0
      %317 = vmatpush2.msra.mxu0 0.0
      %318 = vmatprep.subr.mxu0 0.0
      %319 = vmatpush2.msra.mxu0 0.0
      %320 = vmatprep.subr.mxu0 0.0
      %321 = vmatpush2.msra.mxu0 0.0
      %322 = vmatprep.subr.mxu0 0.0
      %323 = vmatpush2.msra.mxu0 0.0
      %324 = vmatprep.subr.mxu0 0.0
      %325 = vmatpush2.msra.mxu0 0.0
      %326 = vmatprep.subr.mxu0 0.0
      %327 = vmatpush2.msra.mxu0 0.0
      %328 = vmatprep.subr.mxu0 0.0
      %329 = vmatpush2.msra.mxu0 0.0
      %330 = vmatprep.subr.mxu0 0.0
      %331 = vmatpush2.msra.mxu0 0.0
      %332 = vmatprep.subr.mxu0 0.0
      %333 = vmatpush2.msra.mxu0 0.0
      %334 = vmatprep.subr.mxu0 0.0
      %335 = vmatpush2.msra.mxu0 0.0
      %336 = vmatprep.subr.mxu0 0.0
      %337 = vmatpush2.msra.mxu0 0.0
      %338 = vmatprep.subr.mxu0 0.0
      %339 = vmatpush2.msra.mxu0 0.0
      %340 = vmatprep.subr.mxu0 0.0
      %341 = vmatpush2.msra.mxu0 0.0
      %342 = vmatprep.mubr.f32.mxu0 0.0
      %343 = vmatmul.mubr.f32.gmra.mxu0 %v276
      %v344 = vpop.f32.mrf.mxu0
      %v345 = vadd.f32 0.0, %v344
      %v346 = vpop.f32.mrf.mxu0
      %347 = vdwg.mxu0
      %vm348 = vcmask 261120
      %v350 = vsel %vm348, %v264, 0
      %v353 = vsel %vm348, %v345, 0
      %355 = vmatprep.subr.mxu0 0.0
      %356 = vmatpush1.xpose.msra.mxu0 0.0
      %357 = vmatprep.subr.mxu0 0.0
      %358 = vmatpush1.xpose.msra.mxu0 0.0
      %359 = vmatprep.subr.mxu0 0.0
      %360 = vmatpush1.xpose.msra.mxu0 0.0
      %361 = vmatprep.subr.mxu0 0.0
      %362 = vmatpush1.xpose.msra.mxu0 0.0
      %363 = vmatprep.subr.mxu0 0.0
      %364 = vmatpush1.xpose.msra.mxu0 0.0
      %365 = vmatprep.subr.mxu0 0.0
      %366 = vmatpush1.xpose.msra.mxu0 0.0
      %367 = vmatprep.subr.mxu0 0.0
      %368 = vmatpush1.xpose.msra.mxu0 0.0
      %369 = vmatprep.subr.mxu0 0.0
      %370 = vmatpush1.xpose.msra.mxu0 0.0
      %371 = vmatprep.subr.mxu0 0.0
      %372 = vmatpush1.xpose.msra.mxu0 0.0
      %373 = vmatprep.subr.mxu0 0.0
      %374 = vmatpush1.xpose.msra.mxu0 0.0
      %375 = vmatprep.subr.mxu0 0.0
      %376 = vmatpush1.xpose.msra.mxu0 0.0
      %377 = vmatprep.subr.mxu0 0.0
      %378 = vmatpush1.xpose.msra.mxu0 0.0
      %379 = vmatprep.subr.mxu0 0.0
      %380 = vmatpush1.xpose.msra.mxu0 0.0
      %381 = vmatprep.subr.mxu0 0.0
      %382 = vmatpush1.xpose.msra.mxu0 0.0
      %383 = vmatprep.subr.mxu0 0.0
      %384 = vmatpush1.xpose.msra.mxu0 0.0
      %385 = vmatprep.subr.mxu0 0.0
      %386 = vmatpush1.xpose.msra.mxu0 %v353
      %387 = vmatprep.subr.mxu0 0.0
      %388 = vmatpush2.xpose.msra.mxu0 0.0
      %389 = vmatprep.subr.mxu0 0.0
      %390 = vmatpush2.xpose.msra.mxu0 0.0
      %391 = vmatprep.subr.mxu0 0.0
      %392 = vmatpush2.xpose.msra.mxu0 0.0
      %393 = vmatprep.subr.mxu0 0.0
      %394 = vmatpush2.xpose.msra.mxu0 0.0
      %395 = vmatprep.subr.mxu0 0.0
      %396 = vmatpush2.xpose.msra.mxu0 0.0
      %397 = vmatprep.subr.mxu0 0.0
      %398 = vmatpush2.xpose.msra.mxu0 0.0
      %399 = vmatprep.subr.mxu0 0.0
      %400 = vmatpush2.xpose.msra.mxu0 0.0
      %401 = vmatprep.subr.mxu0 0.0
      %402 = vmatpush2.xpose.msra.mxu0 0.0
      %403 = vmatprep.subr.mxu0 0.0
      %404 = vmatpush2.xpose.msra.mxu0 0.0
      %405 = vmatprep.subr.mxu0 0.0
      %406 = vmatpush2.xpose.msra.mxu0 0.0
      %407 = vmatprep.subr.mxu0 0.0
      %408 = vmatpush2.xpose.msra.mxu0 0.0
      %409 = vmatprep.subr.mxu0 0.0
      %410 = vmatpush2.xpose.msra.mxu0 0.0
      %411 = vmatprep.subr.mxu0 0.0
      %412 = vmatpush2.xpose.msra.mxu0 0.0
      %413 = vmatprep.subr.mxu0 0.0
      %414 = vmatpush2.xpose.msra.mxu0 0.0
      %415 = vmatprep.subr.mxu0 0.0
      %416 = vmatpush2.xpose.msra.mxu0 0.0
      %417 = vmatprep.subr.mxu0 0.0
      %418 = vmatpush2.xpose.msra.mxu0 0.0
      %419 = vmatprep.mubr.f32.mxu0 0.0
      %420 = vmatmul.mubr.f32.gmra.mxu0 %v350
      %v421 = vpop.f32.mrf.mxu0
      %v422 = vadd.f32 0.0, %v421
      %v423 = vpop.f32.mrf.mxu0
      %424 = vdwg.mxu0
      %vm425 = vcmask 64512
      %v426 = vsel %vm425, %v422, -inf
      %427 = vmax.xlane.f32.xlu0 %v426
      %v428 = vpop.xlane.xlu0 %427
      %v429 = vsub.f32 %v422, %v428
      %v430 = vmul.f32 %v429, 1.442695
      %v431 = vpow.pop %v430
      %v432 = vsel %vm425, %v431, 0.0
      %433 = vadd.xlane.f32.xlu0 %v432
      %v434 = vpop.xlane.xlu0 %433
      %v435 = vrcp.pop %v434
      %v436 = vmul.f32 %v431, %v435
      %v438 = vsel %vm425, %v436, 0
      %440 = vmatprep.subr.mxu0 0.0
      %441 = vmatpush1.msra.mxu0 0.0
      %442 = vmatprep.subr.mxu0 0.0
      %443 = vmatpush1.msra.mxu0 0.0
      %444 = vmatprep.subr.mxu0 0.0
      %445 = vmatpush1.msra.mxu0 0.0
      %446 = vmatprep.subr.mxu0 0.0
      %447 = vmatpush1.msra.mxu0 0.0
      %448 = vmatprep.subr.mxu0 0.0
      %449 = vmatpush1.msra.mxu0 0.0
      %450 = vmatprep.subr.mxu0 0.0
      %451 = vmatpush1.msra.mxu0 0.0
      %452 = vmatprep.subr.mxu0 0.0
      %453 = vmatpush1.msra.mxu0 0.0
      %454 = vmatprep.subr.mxu0 0.0
      %455 = vmatpush1.msra.mxu0 0.0
      %456 = vmatprep.subr.mxu0 0.0
      %457 = vmatpush1.msra.mxu0 0.0
      %458 = vmatprep.subr.mxu0 0.0
      %459 = vmatpush1.msra.mxu0 0.0
      %460 = vmatprep.subr.mxu0 0.0
      %461 = vmatpush1.msra.mxu0 0.0
      %462 = vmatprep.subr.mxu0 0.0
      %463 = vmatpush1.msra.mxu0 0.0
      %464 = vmatprep.subr.mxu0 0.0
      %465 = vmatpush1.msra.mxu0 0.0
      %466 = vmatprep.subr.mxu0 0.0
      %467 = vmatpush1.msra.mxu0 0.0
      %468 = vmatprep.subr.mxu0 0.0
      %469 = vmatpush1.msra.mxu0 0.0
      %470 = vmatprep.subr.mxu0 0.0
      %471 = vmatpush1.msra.mxu0 %v265
      %472 = vmatprep.subr.mxu0 0.0
      %473 = vmatpush2.msra.mxu0 0.0
      %474 = vmatprep.subr.mxu0 0.0
      %475 = vmatpush2.msra.mxu0 0.0
      %476 = vmatprep.subr.mxu0 0.0
      %477 = vmatpush2.msra.mxu0 0.0
      %478 = vmatprep.subr.mxu0 0.0
      %479 = vmatpush2.msra.mxu0 0.0
      %480 = vmatprep.subr.mxu0 0.0
      %481 = vmatpush2.msra.mxu0 0.0
      %482 = vmatprep.subr.mxu0 0.0
      %483 = vmatpush2.msra.mxu0 0.0
      %484 = vmatprep.subr.mxu0 0.0
      %485 = vmatpush2.msra.mxu0 0.0
      %486 = vmatprep.subr.mxu0 0.0
      %487 = vmatpush2.msra.mxu0 0.0
      %488 = vmatprep.subr.mxu0 0.0
      %489 = vmatpush2.msra.mxu0 0.0
      %490 = vmatprep.subr.mxu0 0.0
      %491 = vmatpush2.msra.mxu0 0.0
      %492 = vmatprep.subr.mxu0 0.0
      %493 = vmatpush2.msra.mxu0 0.0
      %494 = vmatprep.subr.mxu0 0.0
      %495 = vmatpush2.msra.mxu0 0.0
      %496 = vmatprep.subr.mxu0 0.0
      %497 = vmatpush2.msra.mxu0 0.0
      %498 = vmatprep.subr.mxu0 0.0
      %499 = vmatpush2.msra.mxu0 0.0
      %500 = vmatprep.subr.mxu0 0.0
      %501 = vmatpush2.msra.mxu0 0.0
      %502 = vmatprep.subr.mxu0 0.0
      %503 = vmatpush2.msra.mxu0 0.0
      %504 = vmatprep.mubr.f32.mxu0 0.0
      %505 = vmatmul.mubr.f32.gmra.mxu0 %v438
      %v506 = vpop.f32.mrf.mxu0
      %v507 = vadd.f32 0.0, %v506
      %v508 = vpop.f32.mrf.mxu0
      %509 = vdwg.mxu0
      %v510 = vld [vmem:[%s3] sm:$0xff]
      %v511 = vld [vmem:[%s3 + $0x8] sm:$0xff]
      %v512 = vld [vmem:[%s3 + $0x10] sm:$0xff]
      %v513 = vld [vmem:[%s3 + $0x18] sm:$0xff]
      %v514 = vld [vmem:[%s3 + $0x20] sm:$0xff]
      %v515 = vld [vmem:[%s3 + $0x28] sm:$0xff]
      %v516 = vld [vmem:[%s3 + $0x30] sm:$0xff]
      %v517 = vld [vmem:[%s3 + $0x38] sm:$0xff]
      %v518 = vld [vmem:[%s4] sm:$0xff]
      %v519 = vld [vmem:[%s4 + $0x8] sm:$0xff]
      %v520 = vld [vmem:[%s4 + $0x10] sm:$0xff]
      %v521 = vld [vmem:[%s4 + $0x18] sm:$0xff]
      %522 = vmatprep.subr.mxu0 0.0
      %523 = vmatpush1.msra.mxu0 0.0
      %524 = vmatprep.subr.mxu0 0.0
      %525 = vmatpush1.msra.mxu0 0.0
      %526 = vmatprep.subr.mxu0 0.0
      %527 = vmatpush1.msra.mxu0 0.0
      %528 = vmatprep.subr.mxu0 0.0
      %529 = vmatpush1.msra.mxu0 0.0
      %530 = vmatprep.subr.mxu0 0.0
      %531 = vmatpush1.msra.mxu0 0.0
      %532 = vmatprep.subr.mxu0 0.0
      %533 = vmatpush1.msra.mxu0 0.0
      %534 = vmatprep.subr.mxu0 0.0
      %535 = vmatpush1.msra.mxu0 0.0
      %536 = vmatprep.subr.mxu0 0.0
      %537 = vmatpush1.msra.mxu0 0.0
      %538 = vmatprep.subr.mxu0 0.0
      %539 = vmatpush1.msra.mxu0 0.0
      %540 = vmatprep.subr.mxu0 0.0
      %541 = vmatpush1.msra.mxu0 0.0
      %542 = vmatprep.subr.mxu0 0.0
      %543 = vmatpush1.msra.mxu0 0.0
      %544 = vmatprep.subr.mxu0 0.0
      %545 = vmatpush1.msra.mxu0 0.0
      %546 = vmatprep.subr.mxu0 0.0
      %547 = vmatpush1.msra.mxu0 %v521
      %548 = vmatprep.subr.mxu0 0.0
      %549 = vmatpush1.msra.mxu0 %v520
      %550 = vmatprep.subr.mxu0 0.0
      %551 = vmatpush1.msra.mxu0 %v519
      %552 = vmatprep.subr.mxu0 0.0
      %553 = vmatpush1.msra.mxu0 %v518
      %554 = vmatprep.subr.mxu0 0.0
      %555 = vmatpush2.msra.mxu0 0.0
      %556 = vmatprep.subr.mxu0 0.0
      %557 = vmatpush2.msra.mxu0 0.0
      %558 = vmatprep.subr.mxu0 0.0
      %559 = vmatpush2.msra.mxu0 0.0
      %560 = vmatprep.subr.mxu0 0.0
      %561 = vmatpush2.msra.mxu0 0.0
      %562 = vmatprep.subr.mxu0 0.0
      %563 = vmatpush2.msra.mxu0 0.0
      %564 = vmatprep.subr.mxu0 0.0
      %565 = vmatpush2.msra.mxu0 0.0
      %566 = vmatprep.subr.mxu0 0.0
      %567 = vmatpush2.msra.mxu0 0.0
      %568 = vmatprep.subr.mxu0 0.0
      %569 = vmatpush2.msra.mxu0 0.0
      %570 = vmatprep.subr.mxu0 0.0
      %571 = vmatpush2.msra.mxu0 0.0
      %572 = vmatprep.subr.mxu0 0.0
      %573 = vmatpush2.msra.mxu0 0.0
      %574 = vmatprep.subr.mxu0 0.0
      %575 = vmatpush2.msra.mxu0 0.0
      %576 = vmatprep.subr.mxu0 0.0
      %577 = vmatpush2.msra.mxu0 0.0
      %578 = vmatprep.subr.mxu0 0.0
      %579 = vmatpush2.msra.mxu0 0.0
      %580 = vmatprep.subr.mxu0 0.0
      %581 = vmatpush2.msra.mxu0 0.0
      %582 = vmatprep.subr.mxu0 0.0
      %583 = vmatpush2.msra.mxu0 0.0
      %584 = vmatprep.subr.mxu0 0.0
      %585 = vmatpush2.msra.mxu0 0.0
      %586 = vmatprep.mubr.f32.mxu0 0.0
      %587 = vmatmul.mubr.f32.gmra.mxu0 %v350
      %v588 = vpop.f32.mrf.mxu0
      %v589 = vadd.f32 0.0, %v588
      %v590 = vpop.f32.mrf.mxu0
      %591 = vdwg.mxu0
      %v593 = vsel %vm274, %v507, 0
      %595 = vmatprep.subr.mxu0 0.0
      %596 = vmatpush1.msra.mxu0 0.0
      %597 = vmatprep.subr.mxu0 0.0
      %598 = vmatpush1.msra.mxu0 0.0
      %599 = vmatprep.subr.mxu0 0.0
      %600 = vmatpush1.msra.mxu0 0.0
      %601 = vmatprep.subr.mxu0 0.0
      %602 = vmatpush1.msra.mxu0 0.0
      %603 = vmatprep.subr.mxu0 0.0
      %604 = vmatpush1.msra.mxu0 0.0
      %605 = vmatprep.subr.mxu0 0.0
      %606 = vmatpush1.msra.mxu0 0.0
      %607 = vmatprep.subr.mxu0 0.0
      %608 = vmatpush1.msra.mxu0 0.0
      %609 = vmatprep.subr.mxu0 0.0
      %610 = vmatpush1.msra.mxu0 0.0
      %611 = vmatprep.subr.mxu0 0.0
      %612 = vmatpush1.msra.mxu0 %v517
      %613 = vmatprep.subr.mxu0 0.0
      %614 = vmatpush1.msra.mxu0 %v516
      %615 = vmatprep.subr.mxu0 0.0
      %616 = vmatpush1.msra.mxu0 %v515
      %617 = vmatprep.subr.mxu0 0.0
      %618 = vmatpush1.msra.mxu0 %v514
      %619 = vmatprep.subr.mxu0 0.0
      %620 = vmatpush1.msra.mxu0 %v513
      %621 = vmatprep.subr.mxu0 0.0
      %622 = vmatpush1.msra.mxu0 %v512
      %623 = vmatprep.subr.mxu0 0.0
      %624 = vmatpush1.msra.mxu0 %v511
      %625 = vmatprep.subr.mxu0 0.0
      %626 = vmatpush1.msra.mxu0 %v510
      %627 = vmatprep.subr.mxu0 0.0
      %628 = vmatpush2.msra.mxu0 0.0
      %629 = vmatprep.subr.mxu0 0.0
      %630 = vmatpush2.msra.mxu0 0.0
      %631 = vmatprep.subr.mxu0 0.0
      %632 = vmatpush2.msra.mxu0 0.0
      %633 = vmatprep.subr.mxu0 0.0
      %634 = vmatpush2.msra.mxu0 0.0
      %635 = vmatprep.subr.mxu0 0.0
      %636 = vmatpush2.msra.mxu0 0.0
      %637 = vmatprep.subr.mxu0 0.0
      %638 = vmatpush2.msra.mxu0 0.0
      %639 = vmatprep.subr.mxu0 0.0
      %640 = vmatpush2.msra.mxu0 0.0
      %641 = vmatprep.subr.mxu0 0.0
      %642 = vmatpush2.msra.mxu0 0.0
      %643 = vmatprep.subr.mxu0 0.0
      %644 = vmatpush2.msra.mxu0 0.0
      %645 = vmatprep.subr.mxu0 0.0
      %646 = vmatpush2.msra.mxu0 0.0
      %647 = vmatprep.subr.mxu0 0.0
      %648 = vmatpush2.msra.mxu0 0.0
      %649 = vmatprep.subr.mxu0 0.0
      %650 = vmatpush2.msra.mxu0 0.0
      %651 = vmatprep.subr.mxu0 0.0
      %652 = vmatpush2.msra.mxu0 0.0
      %653 = vmatprep.subr.mxu0 0.0
      %654 = vmatpush2.msra.mxu0 0.0
      %655 = vmatprep.subr.mxu0 0.0
      %656 = vmatpush2.msra.mxu0 0.0
      %657 = vmatprep.subr.mxu0 0.0
      %658 = vmatpush2.msra.mxu0 0.0
      %659 = vmatprep.mubr.f32.mxu0 0.0
      %660 = vmatmul.mubr.f32.gmra.mxu0 %v593
      %v661 = vpop.f32.mrf.mxu0
      %v662 = vadd.f32 %v589, %v661
      %v663 = vpop.f32.mrf.mxu0
      %664 = vdwg.mxu0
      %v665 = vld [vmem:[%s5] sm:$0x1]
      %v667 = vlaneseq
      %v668 = vshrl.u32 %v667, 7
      %v669 = vsub.s32 0, %v668
      %v670 = vrot.slane %v665, %v669
      %v672 = vadd.f32 %v662, %v670
      %v673 = vtanh.pop %v672
      %674 = vst.msk [vmem:[%s263] sm:$0xff] %vm348, %v673
      %p675 = scmp.lt.s32.totalorder %s17, 1
      %s676 = scalar_select %p675, %s17, 1
      %s677 = smul.addr %s676, 8
      %s678 = scalar_lea.vmem %s6, %s677
      // Predicated region
      $region45: #{plain_seq2seq_forward.6} parent=43 // pred_check
        %p679 = pneg %p171
      $region46: #{plain_seq2seq_forward.6} parent=43 // pred_check_branch
        %681 = sbr.rel (%p679) target = $region48
      $region47: #{plain_seq2seq_forward.6} parent=43 // pred_region
        _
      $region48: #{plain_seq2seq_forward.6} parent=43 // pred_fallthru
        _
    $region44: #{plain_seq2seq_forward.6} parent=5 // pred_fallthru
      _
    %p682 = scmp.le.s32.totalorder 2, %s12
    // Predicated region
    $region49: #{plain_seq2seq_forward.6} parent=5 // pred_check
      %p683 = pneg %p682
    $region50: #{plain_seq2seq_forward.6} parent=5 // pred_check_branch
      %685 = sbr.rel (%p683) target = $region52
    $region51: #{plain_seq2seq_forward.6} parent=5 // pred_region
      %s686 = ssub.s32 %s12, 2
      // Predicated region
      $region53: #{plain_seq2seq_forward.6} parent=51 // pred_check
        %p687 = pneg %p177
      $region54: #{plain_seq2seq_forward.6} parent=51 // pred_check_branch
        %689 = sbr.rel (%p687) target = $region56
      $region55: #{plain_seq2seq_forward.6} parent=51 // pred_region
        %p690 = scmp.lt.s32.totalorder %s18, 1
        %s691 = scalar_select %p690, %s18, 1
        %s692 = smul.addr %s691, 8
        %s693 = scalar_lea.vmem %s6, %s692
      $region56: #{plain_seq2seq_forward.6} parent=51 // pred_fallthru
        _
    $region52: #{plain_seq2seq_forward.6} parent=5 // pred_fallthru
      _
  $region6: #{plain_seq2seq_forward.6} parent=0 // loop_footer
    %s16 = sadd.s32 1, %s12
  $region7: #{plain_seq2seq_forward.6} parent=0 // loop_footer_branch
    %11 = sbr.rel target = $region3
  $region8: #{plain_seq2seq_forward.6} parent=0 // loop_exit
    _

</llo_original>
